<compile_context>
chip_gen: v7x
topology: tpu7x:2x2x1
jax: 0.10.0
libtpu: 0.0.40
codegen_flags: <defaults>
</compile_context>

<pallas_src>
import functools
import math

import jax
import jax.numpy as jnp
from jax.experimental import pallas as pl
from jax.experimental.pallas import tpu as pltpu

BN_EPS = 1e-5
EXPANSION = 4          # SE bottleneck expansion (in_planes = 512*4 = 2048)
SE_REDUCTION = 16
# Explicit footprints are kept far below this; 32 MiB is safe on
# v5e/v6e (128 MiB physical) and v7x (64 MiB physical / 32 MiB default scoped).
VMEM_LIMIT_BYTES = 32 * 1024 * 1024


def _rup(x, m):
    return ((x + m - 1) // m) * m


def _largest_tile(total, cap):
    """Largest divisor of `total` (a multiple of 8) that is <= cap, mult of 8."""
    if total <= cap:
        return total
    best, t = 8, 8
    while t <= cap:
        if total % t == 0:
            best = t
        t += 8
    return best


# --------------------------------------------------------------------------
# Fused matmul kernel (1x1 convs / shortcut convs)
# --------------------------------------------------------------------------

def _matmul_kernel(x_ref, w_ref, sh_ref, o_ref, acc_ref, *, act):
    """One (tm, tn) tile of act(x @ w + shift); K is the 'arbitrary' grid axis."""
    k = pl.program_id(2)

    @pl.when(k == 0)
    def _():
        acc_ref[...] = jnp.zeros_like(acc_ref)

    acc_ref[...] += jnp.dot(x_ref[...], w_ref[...],
                            preferred_element_type=jnp.float32)

    @pl.when(k == pl.num_programs(2) - 1)
    def _():
        y = acc_ref[...] + sh_ref[...]
        if act == "relu":
            y = jnp.maximum(y, 0.0)
        elif act == "sigmoid":
            y = jax.nn.sigmoid(y)
        o_ref[...] = y.astype(o_ref.dtype)


def fused_matmul(x, w, shift, act="none", out_dtype=jnp.bfloat16):
    """act(x @ w + shift).

    x:     (M, Kp)  any float dtype (cast to bf16 for the MXU)
    w:     (Kp, Np) bf16, BN-folded and padded once at init
    shift: (1, Np)  f32  (= bias*bn_scale + bn_shift, precomputed)
    """
    M, Kp = x.shape
    Kp2, Np = w.shape
    assert Kp == Kp2 and Kp % 128 == 0 and Np % 128 == 0

    # v6e/v7x MXU is 256 wide: keep 256-wide N/K tiles except when the padded
    # dim itself is only 128; grow K tiles to 512 where divisible.
    tn = 256 if Np % 256 == 0 else 128
    tk = 512 if Kp % 512 == 0 else (256 if Kp % 256 == 0 else 128)
    # Large M tiles amortize the ~0.35us per-grid-step overhead.
    tm = min(2048, _rup(M, 8))
    out_bytes = jnp.dtype(out_dtype).itemsize

    def footprint(tm_):
        # double-buffered in/out tiles + f32 accumulator scratch
        return (2 * tm_ * tk * 2 + 2 * tk * tn * 2
                + 2 * tm_ * tn * out_bytes + tm_ * tn * 4)

    while tm > 256 and footprint(tm) > (20 << 20):   # v7x-safe explicit budget
        tm //= 2
    # Keep at least one "parallel" grid axis with extent >= 2 (v7x megacore).
    if M > 8 and _rup(M, tm) == tm and Np == tn:
        tm = _rup((M + 1) // 2, 8)

    Mp = _rup(M, tm)
    xp = x.astype(jnp.bfloat16)
    if Mp != M:
        xp = jnp.pad(xp, ((0, Mp - M), (0, 0)))

    grid = (Mp // tm, Np // tn, Kp // tk)
    out = pl.pallas_call(
        functools.partial(_matmul_kernel, act=act),
        out_shape=jax.ShapeDtypeStruct((Mp, Np), out_dtype),
        grid_spec=pltpu.PrefetchScalarGridSpec(
            num_scalar_prefetch=0,
            grid=grid,
            in_specs=[
                pl.BlockSpec((tm, tk), lambda i, j, k: (i, k)),
                pl.BlockSpec((tk, tn), lambda i, j, k: (k, j)),
                pl.BlockSpec((1, tn), lambda i, j, k: (0, j)),
            ],
            out_specs=pl.BlockSpec((tm, tn), lambda i, j, k: (i, j)),
            scratch_shapes=[pltpu.VMEM((tm, tn), jnp.float32)],
        ),
        compiler_params=pltpu.CompilerParams(
            dimension_semantics=("parallel", "parallel", "arbitrary"),
            vmem_limit_bytes=VMEM_LIMIT_BYTES),
    )(xp, w, shift)
    return out[:M]


def conv1x1(x, w, shift, act="none", stride=1, out_dtype=jnp.bfloat16):
    if stride != 1:
        # TODO(synk): fold the stride-2 subsample into the matmul index_map
        # instead of this (small) XLA strided slice.
        x = x[:, ::stride, ::stride, :]
    N, H, W, Cp = x.shape
    Np = w.shape[-1]
    y = fused_matmul(x.reshape(-1, Cp), w, shift, act=act, out_dtype=out_dtype)
    return y.reshape(N, H, W, Np)


# --------------------------------------------------------------------------
# 3x3 convolutions (stride 1 and stride 2), BN folded, in-VMEM accumulation
# --------------------------------------------------------------------------

def _conv3x3_s1_kernel(x_ref, w_ref, sh_ref, o_ref, *, Wp, HWo, act):
    """3x3 / stride-1 / pad-1 conv = 9 shifted matmuls, local f32 accumulation.

    x_ref : (1, (H+3)*Wp, Cin)  row-padded flattened image (zero border), so
                                no edge masks are needed; shifted taps read the
                                zero-pad columns/rows.
    w_ref : (3, 3, Cin, tn)     BN-folded weights
    o_ref : (1, HWo, tn)        HWo = H*Wp; garbage cols (w >= W) sliced later.
    """
    acc = jnp.zeros((HWo, o_ref.shape[-1]), jnp.float32)
    for dh in range(3):
        for dw in range(3):
            # TODO(synk): the dw=1/2 taps are sublane-misaligned slices; a
            # pltpu.roll-based shift of the aligned dh slab would move this
            # onto the XLU once roll-on-sublane is verified for bf16 here.
            patch = x_ref[0, pl.ds(dh * Wp + dw, HWo), :]
            acc = acc + jnp.dot(patch, w_ref[dh, dw],
                                preferred_element_type=jnp.float32)
    y = acc + sh_ref[...]
    if act == "relu":
        y = jnp.maximum(y, 0.0)
    o_ref[0] = y.astype(o_ref.dtype)


def conv3x3_s1(x, taps, shift, act="relu"):
    """3x3 conv, stride 1, padding 1 (+ folded BN + act).  NHWC bf16 in/out."""
    # TODO(synk): tile the HW axis (with halo rows) for large feature maps;
    # whole-image VMEM residency is fine at these shapes.
    N, H, W, Cp = x.shape
    Np = taps.shape[-1]
    Wp = _rup(W + 2, 8)              # padded row width (>= W+2, lane-friendly)
    HWo = H * Wp                     # flattened output rows (incl. junk cols)

    # zero border: 1 top, 2 bottom (extra row keeps junk-column taps in range),
    # 1 left, (Wp - W - 1) right.
    xp = jnp.pad(x.astype(jnp.bfloat16),
                 ((0, 0), (1, 2), (1, Wp - W - 1), (0, 0)))
    xf = xp.reshape(N, (H + 3) * Wp, Cp)

    tn = 256 if Np % 256 == 0 else 128
    out = pl.pallas_call(
        functools.partial(_conv3x3_s1_kernel, Wp=Wp, HWo=HWo, act=act),
        out_shape=jax.ShapeDtypeStruct((N, HWo, Np), jnp.bfloat16),
        grid_spec=pltpu.PrefetchScalarGridSpec(
            num_scalar_prefetch=0,
            grid=(N, Np // tn),
            in_specs=[
                pl.BlockSpec((1, (H + 3) * Wp, Cp), lambda n, j: (n, 0, 0)),
                pl.BlockSpec((3, 3, Cp, tn), lambda n, j: (0, 0, 0, j)),
                pl.BlockSpec((1, tn), lambda n, j: (0, j)),
            ],
            out_specs=pl.BlockSpec((1, HWo, tn), lambda n, j: (n, 0, j)),
        ),
        compiler_params=pltpu.CompilerParams(
            dimension_semantics=("parallel", "parallel"),
            vmem_limit_bytes=VMEM_LIMIT_BYTES),
    )(xf, taps, shift)
    return out.reshape(N, H, Wp, Np)[:, :, :W, :]


def _conv3x3_s2_kernel(x_ref, w_ref, sh_ref, o_ref, *, Wpp, HWo, act):
    """3x3 / stride-2 / pad-1 conv over 4 even/odd phase slabs.

    x_ref : (1, 4, PF, Cin)   phase p = 2*a + b holds xpad[2i+a, 2j+b]
    o_ref : (1, HWo, tn)      HWo = Ho*Wpp; junk cols (wo >= Wo) sliced later.
    """
    acc = jnp.zeros((HWo, o_ref.shape[-1]), jnp.float32)
    for a in range(2):
        for b in range(2):
            p = 2 * a + b
            for rdh in range(2):
                dh = 2 * rdh + a
                if dh > 2:
                    continue
                for rdw in range(2):
                    dw = 2 * rdw + b
                    if dw > 2:
                        continue
                    patch = x_ref[0, p, pl.ds(rdh * Wpp + rdw, HWo), :]
                    acc = acc + jnp.dot(patch, w_ref[dh, dw],
                                        preferred_element_type=jnp.float32)
    y = acc + sh_ref[...]
    if act == "relu":
        y = jnp.maximum(y, 0.0)
    o_ref[0] = y.astype(o_ref.dtype)


def conv3x3_s2(x, taps, shift, act="relu"):
    """3x3 conv, stride 2, padding 1.  4-phase decomposition (no 9x im2col)."""
    N, H, W, Cp = x.shape
    Np = taps.shape[-1]
    Ho, Wo = (H - 1) // 2 + 1, (W - 1) // 2 + 1
    Wpp = _rup(Wo + 1, 8)
    PF = (Ho + 2) * Wpp
    HWo = Ho * Wpp

    xp = jnp.pad(x.astype(jnp.bfloat16), ((0, 0), (1, 1), (1, 1), (0, 0)))
    phases = []
    for a in range(2):
        for b in range(2):
            ph = xp[:, a::2, b::2, :]
            ra, ca = ph.shape[1], ph.shape[2]
            ph = jnp.pad(ph, ((0, 0), (0, Ho + 2 - ra), (0, Wpp - ca), (0, 0)))
            phases.append(ph.reshape(N, PF, Cp))
    xphase = jnp.stack(phases, axis=1)               # (N, 4, PF, Cp)

    tn = 256 if Np % 256 == 0 else 128
    out = pl.pallas_call(
        functools.partial(_conv3x3_s2_kernel, Wpp=Wpp, HWo=HWo, act=act),
        out_shape=jax.ShapeDtypeStruct((N, HWo, Np), jnp.bfloat16),
        grid_spec=pltpu.PrefetchScalarGridSpec(
            num_scalar_prefetch=0,
            grid=(N, Np // tn),
            in_specs=[
                pl.BlockSpec((1, 4, PF, Cp), lambda n, j: (n, 0, 0, 0)),
                pl.BlockSpec((3, 3, Cp, tn), lambda n, j: (0, 0, 0, j)),
                pl.BlockSpec((1, tn), lambda n, j: (0, j)),
            ],
            out_specs=pl.BlockSpec((1, HWo, tn), lambda n, j: (n, 0, j)),
        ),
        compiler_params=pltpu.CompilerParams(
            dimension_semantics=("parallel", "parallel"),
            vmem_limit_bytes=VMEM_LIMIT_BYTES),
    )(xphase, taps, shift)
    return out.reshape(N, Ho, Wpp, Np)[:, :, :Wo, :]


# --------------------------------------------------------------------------
# 1x1 conv with fused SE squeeze (global average pool) in the epilogue
# --------------------------------------------------------------------------

def _conv1x1_gap_kernel(x_ref, w_ref, sh_ref, o_ref, s_ref, acc_ref, *, hw, act):
    k = pl.program_id(2)

    @pl.when(k == 0)
    def _():
        acc_ref[...] = jnp.zeros_like(acc_ref)

    acc_ref[...] += jnp.dot(x_ref[0], w_ref[...],
                            preferred_element_type=jnp.float32)

    @pl.when(k == pl.num_programs(2) - 1)
    def _():
        sh = sh_ref[...]
        y = acc_ref[...] + sh
        if act == "relu":
            y = jnp.maximum(y, 0.0)
        o_ref[0] = y.astype(o_ref.dtype)
        # Global average pool over the valid HW rows.  Padded input rows are
        # all-zero, so their activation is exactly act(shift): subtract it.
        colsum = jnp.sum(y, axis=0, keepdims=True)
        pad_rows = acc_ref.shape[0] - hw
        if pad_rows:
            ypad = jnp.maximum(sh, 0.0) if act == "relu" else sh
            colsum = colsum - pad_rows * ypad
        s_ref[0] = colsum * (1.0 / hw)


def conv1x1_gap(x, w, shift, act="relu"):
    """1x1 conv (+BN fold + act) with a fused per-sample global average pool."""
    # TODO(synk): tile the HW axis for large feature maps; whole-image per grid
    # step is ample at these shapes.
    N, H, W, Cp = x.shape
    Kp, Np = w.shape
    HW = H * W
    HWp = _rup(HW, 8)
    x3 = x.reshape(N, HW, Cp).astype(jnp.bfloat16)
    if HWp != HW:
        x3 = jnp.pad(x3, ((0, 0), (0, HWp - HW), (0, 0)))

    tn = 256 if Np % 256 == 0 else 128
    tk = 512 if Kp % 512 == 0 else (256 if Kp % 256 == 0 else 128)
    grid = (N, Np // tn, Kp // tk)
    y, s = pl.pallas_call(
        functools.partial(_conv1x1_gap_kernel, hw=HW, act=act),
        out_shape=(jax.ShapeDtypeStruct((N, HWp, Np), jnp.bfloat16),
                   jax.ShapeDtypeStruct((N, 1, Np), jnp.float32)),
        grid_spec=pltpu.PrefetchScalarGridSpec(
            num_scalar_prefetch=0,
            grid=grid,
            in_specs=[
                pl.BlockSpec((1, HWp, tk), lambda n, j, k: (n, 0, k)),
                pl.BlockSpec((tk, tn), lambda n, j, k: (k, j)),
                pl.BlockSpec((1, tn), lambda n, j, k: (0, j)),
            ],
            out_specs=[
                pl.BlockSpec((1, HWp, tn), lambda n, j, k: (n, 0, j)),
                pl.BlockSpec((1, 1, tn), lambda n, j, k: (n, 0, j)),
            ],
            scratch_shapes=[pltpu.VMEM((HWp, tn), jnp.float32)],
        ),
        compiler_params=pltpu.CompilerParams(
            dimension_semantics=("parallel", "parallel", "arbitrary"),
            vmem_limit_bytes=VMEM_LIMIT_BYTES),
    )(x3, w, shift)
    return y[:, :HW, :].reshape(N, H, W, Np), s.reshape(N, Np)


# --------------------------------------------------------------------------
# Fused SE excitation MLP + channel scale + residual add + ReLU
# --------------------------------------------------------------------------

def _se_scale_kernel(sq_ref, w1_ref, b1_ref, w2_ref, b2_ref,
                     r_ref, s_ref, o_ref):
    # Tiny SE MLP recomputed per grid step (one HW tile per sample here).
    sq = jnp.broadcast_to(sq_ref[0], (8, sq_ref.shape[-1])).astype(jnp.bfloat16)
    hid = jnp.dot(sq, w1_ref[...], preferred_element_type=jnp.float32)
    hid = jnp.maximum(hid + b1_ref[...], 0.0)
    exc = jnp.dot(hid.astype(jnp.bfloat16), w2_ref[...],
                  preferred_element_type=jnp.float32)
    exc = jax.nn.sigmoid(exc + b2_ref[...])[0:1, :]            # (1, C) f32
    y = r_ref[0].astype(jnp.float32) * exc + s_ref[0].astype(jnp.float32)
    o_ref[0] = jnp.maximum(y, 0.0).astype(o_ref.dtype)


def se_scale_add_relu(residual, shortcut, sq, fc1_w, fc1_b, fc2_w, fc2_b):
    """relu(residual * sigmoid(relu(sq@w1+b1)@w2+b2) + shortcut)."""
    N, H, W, C = residual.shape
    HW = H * W
    HWp = _rup(HW, 8)
    r3 = residual.reshape(N, HW, C)
    s3 = shortcut.reshape(N, HW, C).astype(residual.dtype)
    if HWp != HW:
        pad = ((0, 0), (0, HWp - HW), (0, 0))
        r3, s3 = jnp.pad(r3, pad), jnp.pad(s3, pad)
    sq3 = sq.reshape(N, 1, C)
    thw = _largest_tile(HWp, 2048)

    out = pl.pallas_call(
        _se_scale_kernel,
        out_shape=jax.ShapeDtypeStruct((N, HWp, C), jnp.bfloat16),
        grid_spec=pltpu.PrefetchScalarGridSpec(
            num_scalar_prefetch=0,
            grid=(N, HWp // thw),
            in_specs=[
                pl.BlockSpec((1, 1, C), lambda n, t: (n, 0, 0)),
                pl.BlockSpec(fc1_w.shape, lambda n, t: (0, 0)),
                pl.BlockSpec(fc1_b.shape, lambda n, t: (0, 0)),
                pl.BlockSpec(fc2_w.shape, lambda n, t: (0, 0)),
                pl.BlockSpec(fc2_b.shape, lambda n, t: (0, 0)),
                pl.BlockSpec((1, thw, C), lambda n, t: (n, t, 0)),
                pl.BlockSpec((1, thw, C), lambda n, t: (n, t, 0)),
            ],
            out_specs=pl.BlockSpec((1, thw, C), lambda n, t: (n, t, 0)),
        ),
        compiler_params=pltpu.CompilerParams(
            dimension_semantics=("parallel", "parallel"),
            vmem_limit_bytes=VMEM_LIMIT_BYTES),
    )(sq3, fc1_w, fc1_b, fc2_w, fc2_b, r3, s3)
    return out[:, :HW, :].reshape(N, H, W, C)


# --------------------------------------------------------------------------
# Fused final GAP + (eval-mode) dropout + classifier
# --------------------------------------------------------------------------

def _gap_fc_kernel(x_ref, w_ref, sh_ref, o_ref, *, inv_hw):
    feat = jnp.sum(x_ref[0].astype(jnp.float32), axis=0, keepdims=True) * inv_hw
    featb = jnp.broadcast_to(feat, (8, feat.shape[-1])).astype(jnp.bfloat16)
    logits = jnp.dot(featb, w_ref[...], preferred_element_type=jnp.float32)
    o_ref[0] = logits[0:1, :] + sh_ref[...]


def gap_fc(x, w, shift):
    """adaptive_avg_pool2d(1) + dropout(eval: identity) + linear classifier."""
    N, H, W, Cp = x.shape
    Kp, Np = w.shape
    HW = H * W
    HWp = _rup(HW, 8)
    x3 = x.reshape(N, HW, Cp).astype(jnp.bfloat16)
    if HWp != HW:
        x3 = jnp.pad(x3, ((0, 0), (0, HWp - HW), (0, 0)))   # zero rows: no-op in sum
    out = pl.pallas_call(
        functools.partial(_gap_fc_kernel, inv_hw=1.0 / HW),
        out_shape=jax.ShapeDtypeStruct((N, 1, Np), jnp.float32),
        grid_spec=pltpu.PrefetchScalarGridSpec(
            num_scalar_prefetch=0,
            grid=(N,),
            in_specs=[
                pl.BlockSpec((1, HWp, Cp), lambda n: (n, 0, 0)),
                pl.BlockSpec((Kp, Np), lambda n: (0, 0)),
                pl.BlockSpec((1, Np), lambda n: (0, 0)),
            ],
            out_specs=pl.BlockSpec((1, 1, Np), lambda n: (n, 0, 0)),
        ),
        compiler_params=pltpu.CompilerParams(
            dimension_semantics=("parallel",),
            vmem_limit_bytes=VMEM_LIMIT_BYTES),
    )(x3, w, shift)
    return out.reshape(N, Np)


# --------------------------------------------------------------------------
# SE bottleneck block + SEResNet forward
# --------------------------------------------------------------------------

def se_block_forward(x, p):
    stride = p["stride"]

    if "sc_w" in p:
        shortcut = conv1x1(x, p["sc_w"], p["sc_sh"], act="none", stride=stride)
    else:
        shortcut = x

    # TODO(synk): for stride-1 blocks the shortcut and w1 convs read the same
    # x and could be emitted from one pallas_call with two outputs.
    h = conv1x1(x, p["w1"], p["sh1"], act="relu")
    if stride == 1:
        h = conv3x3_s1(h, p["w2_taps"], p["sh2"], act="relu")
    else:
        h = conv3x3_s2(h, p["w2_taps"], p["sh2"], act="relu")
    # conv3 + BN + ReLU (pre-SE, matching the reference block) with the SE
    # squeeze (GAP) fused into the same kernel's epilogue.
    h, sq = conv1x1_gap(h, p["w3"], p["sh3"], act="relu")

    return se_scale_add_relu(h, shortcut, sq,
                             p["fc1_w"], p["fc1_b"], p["fc2_w"], p["fc2_b"])


def seresnet_forward(x_nchw, params, class_num=45):
    # NCHW -> NHWC, channels padded to a lane-aligned (128) width, bf16.
    x = jnp.transpose(x_nchw, (0, 2, 3, 1)).astype(jnp.float32)
    C = x.shape[-1]
    x = jnp.pad(x, ((0, 0), (0, 0), (0, 0), (0, _rup(C, 128) - C)))
    x = x.astype(jnp.bfloat16)

    # pre: Conv2d(3,64,3,padding=1) + BN + ReLU
    x = conv3x3_s1(x, params["pre_w"], params["pre_sh"], act="relu")

    for stage in ("stage1", "stage2", "stage3", "stage4"):
        for bp in params[stage]:
            x = se_block_forward(x, bp)

    # Dropout(p=0.2) is identity in eval mode; GAP + classifier fused.
    logits = gap_fc(x, params["fc_w"], params["fc_sh"])
    return logits[:, :class_num]


# --------------------------------------------------------------------------
# Parameter preparation: BN folded into weights, padded + bf16-cast ONCE.
# --------------------------------------------------------------------------

def _bn_fold(c):
    # eval-mode BN with freshly-initialized stats (gamma=1, beta=0, mean=0, var=1)
    gamma = jnp.ones((c,), jnp.float32)
    beta = jnp.zeros((c,), jnp.float32)
    mean = jnp.zeros((c,), jnp.float32)
    var = jnp.ones((c,), jnp.float32)
    scale = gamma / jnp.sqrt(var + BN_EPS)
    shift = beta - mean * scale
    return scale, shift


def _prep_matmul_weight(w, b, kpad=None, fold_bn=True):
    """Fold BN into a (K, Cout) weight; pad to (Kp, Np); cast to bf16."""
    K, C = w.shape
    if fold_bn:
        scale, shift = _bn_fold(C)
    else:
        scale, shift = jnp.ones((C,), jnp.float32), jnp.zeros((C,), jnp.float32)
    wf = w * scale[None, :]
    sh = b * scale + shift
    Kp = _rup(K, 128) if kpad is None else kpad
    Np = _rup(C, 128)
    wp = jnp.pad(wf, ((0, Kp - K), (0, Np - C))).astype(jnp.bfloat16)
    shp = jnp.pad(sh, (0, Np - C)).astype(jnp.float32).reshape(1, Np)
    return wp, shp


def _prep_conv3x3_weight(w, b, cin_pad):
    """(3,3,Cin,Cout) -> (3,3,Cinp,Np) bf16 taps + (1,Np) f32 shift."""
    _, _, Cin, Cout = w.shape
    scale, shift = _bn_fold(Cout)
    wf = w * scale[None, None, None, :]
    sh = b * scale + shift
    Np = _rup(Cout, 128)
    taps = jnp.pad(wf, ((0, 0), (0, 0), (0, cin_pad - Cin),
                        (0, Np - Cout))).astype(jnp.bfloat16)
    shp = jnp.pad(sh, (0, Np - Cout)).astype(jnp.float32).reshape(1, Np)
    return taps, shp


def _prep_se_fc(w1, b1, w2, b2):
    C, hid = w1.shape
    hidp = _rup(hid, 128)
    w1p = jnp.pad(w1, ((0, 0), (0, hidp - hid))).astype(jnp.bfloat16)
    b1p = jnp.pad(b1, (0, hidp - hid)).astype(jnp.float32).reshape(1, hidp)
    w2p = jnp.pad(w2, ((0, hidp - hid), (0, 0))).astype(jnp.bfloat16)
    b2p = b2.astype(jnp.float32).reshape(1, C)
    return w1p, b1p, w2p, b2p


def _kaiming(key, shape, fan_out):
    # kaiming_normal_(mode='fan_out', nonlinearity='relu')
    std = math.sqrt(2.0 / fan_out)
    return std * jax.random.normal(key, shape, jnp.float32)


def _make_block_params(key, in_c, out_c, stride, r=SE_REDUCTION):
    exp_c = out_c * EXPANSION
    hid = exp_c // r
    in_cp, mid_cp = _rup(in_c, 128), _rup(out_c, 128)
    k = jax.random.split(key, 6)
    p = {"stride": stride}

    p["w1"], p["sh1"] = _prep_matmul_weight(
        _kaiming(k[0], (in_c, out_c), fan_out=out_c),
        jnp.zeros((out_c,), jnp.float32), kpad=in_cp)
    p["w2_taps"], p["sh2"] = _prep_conv3x3_weight(
        _kaiming(k[1], (3, 3, out_c, out_c), fan_out=out_c * 9),
        jnp.zeros((out_c,), jnp.float32), cin_pad=mid_cp)
    p["w3"], p["sh3"] = _prep_matmul_weight(
        _kaiming(k[2], (out_c, exp_c), fan_out=exp_c),
        jnp.zeros((exp_c,), jnp.float32), kpad=mid_cp)

    # SE excitation linears (deterministic stand-in for PyTorch Linear init)
    fc1 = jax.random.normal(k[3], (exp_c, hid), jnp.float32) / math.sqrt(exp_c)
    fc2 = jax.random.normal(k[4], (hid, exp_c), jnp.float32) / math.sqrt(hid)
    p["fc1_w"], p["fc1_b"], p["fc2_w"], p["fc2_b"] = _prep_se_fc(
        fc1, jnp.zeros((hid,), jnp.float32),
        fc2, jnp.zeros((exp_c,), jnp.float32))

    if stride != 1 or in_c != exp_c:
        p["sc_w"], p["sc_sh"] = _prep_matmul_weight(
            _kaiming(k[5], (in_c, exp_c), fan_out=exp_c),
            jnp.zeros((exp_c,), jnp.float32), kpad=in_cp)
    return p


def init_params(key, block_num=(1, 1, 1, 1), class_num=45):
    keys = iter(jax.random.split(key, 64))
    params = {}

    # pre: Conv2d(3,64,3,padding=1) + BN; input channels are padded to 128.
    params["pre_w"], params["pre_sh"] = _prep_conv3x3_weight(
        _kaiming(next(keys), (3, 3, 3, 64), fan_out=64 * 9),
        jnp.zeros((64,), jnp.float32), cin_pad=128)

    in_c = 64
    stage_cfg = [(64, 1, block_num[0]), (128, 2, block_num[1]),
                 (256, 2, block_num[2]), (512, 2, block_num[3])]
    for si, (out_c, stride, num) in enumerate(stage_cfg, start=1):
        blocks = []
        s = stride
        for _ in range(num):
            blocks.append(_make_block_params(next(keys), in_c, out_c, s))
            in_c = out_c * EXPANSION
            s = 1
        params[f"stage{si}"] = blocks

    # classifier: weights_init_classifier -> normal(std=0.001), bias=0; no BN.
    fc_w = 0.001 * jax.random.normal(next(keys), (in_c, class_num), jnp.float32)
    params["fc_w"], params["fc_sh"] = _prep_matmul_weight(
        fc_w, jnp.zeros((class_num,), jnp.float32), fold_bn=False)
    return params


# --------------------------------------------------------------------------

if __name__ == "__main__":
    key = jax.random.PRNGKey(0)
    pkey, xkey = jax.random.split(key)

    # small config: 1 SE-bottleneck block per stage, 45 classes, 16x16 RGB input
    params = init_params(pkey, block_num=(1, 1, 1, 1), class_num=45)
    x = jax.random.normal(xkey, (2, 3, 16, 16), jnp.float32)   # NCHW, like PyTorch

    logits = seresnet_forward(x, params, class_num=45)
    logits = jax.block_until_ready(logits)
    assert logits.shape == (2, 45), logits.shape
    assert bool(jnp.all(jnp.isfinite(logits)))
    print("KERNEL_OK")
</pallas_src>

<mosaic_0001>
module attributes {stable_mosaic.version = 11 : i64} {
  func.func @_conv3x3_s1_kernel(%arg0: i32, %arg1: i32, %arg2: memref<1x456x128xbf16, #tpu.memory_space<vmem>>, %arg3: memref<3x3x128x128xbf16, #tpu.memory_space<vmem>>, %arg4: memref<1x128xf32, #tpu.memory_space<vmem>>, %arg5: memref<1x384x128xbf16, #tpu.memory_space<vmem>>) attributes {dimension_semantics = [#tpu.dimension_semantics<parallel>, #tpu.dimension_semantics<parallel>], iteration_bounds = array<i64: 2, 1>, scalar_prefetch = 0 : i64, scratch_operands = 0 : i64, tpu.core_type = #tpu.core_type<tc>, window_params = [{transform_indices = @transform_0, window_bounds = array<i64: 1, 456, 128>}, {transform_indices = @transform_1, window_bounds = array<i64: 3, 3, 128, 128>}, {transform_indices = @transform_2, window_bounds = array<i64: 1, 128>}, {transform_indices = @transform_3, window_bounds = array<i64: 1, 384, 128>}]} {
    %cst = arith.constant 0.000000e+00 : f32
    %0 = vector.broadcast %cst : f32 to vector<384x128xf32>
    %c0 = arith.constant 0 : index
    %c0_0 = arith.constant 0 : index
    %c0_1 = arith.constant 0 : index
    %1 = vector.load %arg2[%c0, %c0_0, %c0_1] : memref<1x456x128xbf16, #tpu.memory_space<vmem>>, vector<1x384x128xbf16>
    %2 = vector.shape_cast %1 : vector<1x384x128xbf16> to vector<384x128xbf16>
    %c0_2 = arith.constant 0 : index
    %c0_3 = arith.constant 0 : index
    %c0_4 = arith.constant 0 : index
    %c0_5 = arith.constant 0 : index
    %3 = vector.load %arg3[%c0_2, %c0_3, %c0_4, %c0_5] : memref<3x3x128x128xbf16, #tpu.memory_space<vmem>>, vector<1x1x128x128xbf16>
    %4 = vector.shape_cast %3 : vector<1x1x128x128xbf16> to vector<128x128xbf16>
    %cst_6 = arith.constant dense<0.000000e+00> : vector<384x128xf32>
    %5 = tpu.matmul %2, %4, %cst_6 {dimension_numbers = #tpu.dot_dimension_numbers<[1], [0], [0], [1], [0, 0, 1, 1], [], []>} : vector<384x128xbf16>, vector<128x128xbf16>, vector<384x128xf32> -> vector<384x128xf32>
    %6 = arith.addf %0, %5 : vector<384x128xf32>
    %c0_7 = arith.constant 0 : index
    %c1 = arith.constant 1 : index
    %c0_8 = arith.constant 0 : index
    %7 = vector.load %arg2[%c0_7, %c1, %c0_8] : memref<1x456x128xbf16, #tpu.memory_space<vmem>>, vector<1x384x128xbf16>
    %8 = vector.shape_cast %7 : vector<1x384x128xbf16> to vector<384x128xbf16>
    %c0_9 = arith.constant 0 : index
    %c1_10 = arith.constant 1 : index
    %c0_11 = arith.constant 0 : index
    %c0_12 = arith.constant 0 : index
    %9 = vector.load %arg3[%c0_9, %c1_10, %c0_11, %c0_12] : memref<3x3x128x128xbf16, #tpu.memory_space<vmem>>, vector<1x1x128x128xbf16>
    %10 = vector.shape_cast %9 : vector<1x1x128x128xbf16> to vector<128x128xbf16>
    %cst_13 = arith.constant dense<0.000000e+00> : vector<384x128xf32>
    %11 = tpu.matmul %8, %10, %cst_13 {dimension_numbers = #tpu.dot_dimension_numbers<[1], [0], [0], [1], [0, 0, 1, 1], [], []>} : vector<384x128xbf16>, vector<128x128xbf16>, vector<384x128xf32> -> vector<384x128xf32>
    %12 = arith.addf %6, %11 : vector<384x128xf32>
    %c0_14 = arith.constant 0 : index
    %c2 = arith.constant 2 : index
    %c0_15 = arith.constant 0 : index
    %13 = vector.load %arg2[%c0_14, %c2, %c0_15] : memref<1x456x128xbf16, #tpu.memory_space<vmem>>, vector<1x384x128xbf16>
    %14 = vector.shape_cast %13 : vector<1x384x128xbf16> to vector<384x128xbf16>
    %c0_16 = arith.constant 0 : index
    %c2_17 = arith.constant 2 : index
    %c0_18 = arith.constant 0 : index
    %c0_19 = arith.constant 0 : index
    %15 = vector.load %arg3[%c0_16, %c2_17, %c0_18, %c0_19] : memref<3x3x128x128xbf16, #tpu.memory_space<vmem>>, vector<1x1x128x128xbf16>
    %16 = vector.shape_cast %15 : vector<1x1x128x128xbf16> to vector<128x128xbf16>
    %cst_20 = arith.constant dense<0.000000e+00> : vector<384x128xf32>
    %17 = tpu.matmul %14, %16, %cst_20 {dimension_numbers = #tpu.dot_dimension_numbers<[1], [0], [0], [1], [0, 0, 1, 1], [], []>} : vector<384x128xbf16>, vector<128x128xbf16>, vector<384x128xf32> -> vector<384x128xf32>
    %18 = arith.addf %12, %17 : vector<384x128xf32>
    %c0_21 = arith.constant 0 : index
    %c24 = arith.constant 24 : index
    %c0_22 = arith.constant 0 : index
    %19 = vector.load %arg2[%c0_21, %c24, %c0_22] : memref<1x456x128xbf16, #tpu.memory_space<vmem>>, vector<1x384x128xbf16>
    %20 = vector.shape_cast %19 : vector<1x384x128xbf16> to vector<384x128xbf16>
    %c1_23 = arith.constant 1 : index
    %c0_24 = arith.constant 0 : index
    %c0_25 = arith.constant 0 : index
    %c0_26 = arith.constant 0 : index
    %21 = vector.load %arg3[%c1_23, %c0_24, %c0_25, %c0_26] : memref<3x3x128x128xbf16, #tpu.memory_space<vmem>>, vector<1x1x128x128xbf16>
    %22 = vector.shape_cast %21 : vector<1x1x128x128xbf16> to vector<128x128xbf16>
    %cst_27 = arith.constant dense<0.000000e+00> : vector<384x128xf32>
    %23 = tpu.matmul %20, %22, %cst_27 {dimension_numbers = #tpu.dot_dimension_numbers<[1], [0], [0], [1], [0, 0, 1, 1], [], []>} : vector<384x128xbf16>, vector<128x128xbf16>, vector<384x128xf32> -> vector<384x128xf32>
    %24 = arith.addf %18, %23 : vector<384x128xf32>
    %c0_28 = arith.constant 0 : index
    %c25 = arith.constant 25 : index
    %c0_29 = arith.constant 0 : index
    %25 = vector.load %arg2[%c0_28, %c25, %c0_29] : memref<1x456x128xbf16, #tpu.memory_space<vmem>>, vector<1x384x128xbf16>
    %26 = vector.shape_cast %25 : vector<1x384x128xbf16> to vector<384x128xbf16>
    %c1_30 = arith.constant 1 : index
    %c1_31 = arith.constant 1 : index
    %c0_32 = arith.constant 0 : index
    %c0_33 = arith.constant 0 : index
    %27 = vector.load %arg3[%c1_30, %c1_31, %c0_32, %c0_33] : memref<3x3x128x128xbf16, #tpu.memory_space<vmem>>, vector<1x1x128x128xbf16>
    %28 = vector.shape_cast %27 : vector<1x1x128x128xbf16> to vector<128x128xbf16>
    %cst_34 = arith.constant dense<0.000000e+00> : vector<384x128xf32>
    %29 = tpu.matmul %26, %28, %cst_34 {dimension_numbers = #tpu.dot_dimension_numbers<[1], [0], [0], [1], [0, 0, 1, 1], [], []>} : vector<384x128xbf16>, vector<128x128xbf16>, vector<384x128xf32> -> vector<384x128xf32>
    %30 = arith.addf %24, %29 : vector<384x128xf32>
    %c0_35 = arith.constant 0 : index
    %c26 = arith.constant 26 : index
    %c0_36 = arith.constant 0 : index
    %31 = vector.load %arg2[%c0_35, %c26, %c0_36] : memref<1x456x128xbf16, #tpu.memory_space<vmem>>, vector<1x384x128xbf16>
    %32 = vector.shape_cast %31 : vector<1x384x128xbf16> to vector<384x128xbf16>
    %c1_37 = arith.constant 1 : index
    %c2_38 = arith.constant 2 : index
    %c0_39 = arith.constant 0 : index
    %c0_40 = arith.constant 0 : index
    %33 = vector.load %arg3[%c1_37, %c2_38, %c0_39, %c0_40] : memref<3x3x128x128xbf16, #tpu.memory_space<vmem>>, vector<1x1x128x128xbf16>
    %34 = vector.shape_cast %33 : vector<1x1x128x128xbf16> to vector<128x128xbf16>
    %cst_41 = arith.constant dense<0.000000e+00> : vector<384x128xf32>
    %35 = tpu.matmul %32, %34, %cst_41 {dimension_numbers = #tpu.dot_dimension_numbers<[1], [0], [0], [1], [0, 0, 1, 1], [], []>} : vector<384x128xbf16>, vector<128x128xbf16>, vector<384x128xf32> -> vector<384x128xf32>
    %36 = arith.addf %30, %35 : vector<384x128xf32>
    %c0_42 = arith.constant 0 : index
    %c48 = arith.constant 48 : index
    %c0_43 = arith.constant 0 : index
    %37 = vector.load %arg2[%c0_42, %c48, %c0_43] : memref<1x456x128xbf16, #tpu.memory_space<vmem>>, vector<1x384x128xbf16>
    %38 = vector.shape_cast %37 : vector<1x384x128xbf16> to vector<384x128xbf16>
    %c2_44 = arith.constant 2 : index
    %c0_45 = arith.constant 0 : index
    %c0_46 = arith.constant 0 : index
    %c0_47 = arith.constant 0 : index
    %39 = vector.load %arg3[%c2_44, %c0_45, %c0_46, %c0_47] : memref<3x3x128x128xbf16, #tpu.memory_space<vmem>>, vector<1x1x128x128xbf16>
    %40 = vector.shape_cast %39 : vector<1x1x128x128xbf16> to vector<128x128xbf16>
    %cst_48 = arith.constant dense<0.000000e+00> : vector<384x128xf32>
    %41 = tpu.matmul %38, %40, %cst_48 {dimension_numbers = #tpu.dot_dimension_numbers<[1], [0], [0], [1], [0, 0, 1, 1], [], []>} : vector<384x128xbf16>, vector<128x128xbf16>, vector<384x128xf32> -> vector<384x128xf32>
    %42 = arith.addf %36, %41 : vector<384x128xf32>
    %c0_49 = arith.constant 0 : index
    %c49 = arith.constant 49 : index
    %c0_50 = arith.constant 0 : index
    %43 = vector.load %arg2[%c0_49, %c49, %c0_50] : memref<1x456x128xbf16, #tpu.memory_space<vmem>>, vector<1x384x128xbf16>
    %44 = vector.shape_cast %43 : vector<1x384x128xbf16> to vector<384x128xbf16>
    %c2_51 = arith.constant 2 : index
    %c1_52 = arith.constant 1 : index
    %c0_53 = arith.constant 0 : index
    %c0_54 = arith.constant 0 : index
    %45 = vector.load %arg3[%c2_51, %c1_52, %c0_53, %c0_54] : memref<3x3x128x128xbf16, #tpu.memory_space<vmem>>, vector<1x1x128x128xbf16>
    %46 = vector.shape_cast %45 : vector<1x1x128x128xbf16> to vector<128x128xbf16>
    %cst_55 = arith.constant dense<0.000000e+00> : vector<384x128xf32>
    %47 = tpu.matmul %44, %46, %cst_55 {dimension_numbers = #tpu.dot_dimension_numbers<[1], [0], [0], [1], [0, 0, 1, 1], [], []>} : vector<384x128xbf16>, vector<128x128xbf16>, vector<384x128xf32> -> vector<384x128xf32>
    %48 = arith.addf %42, %47 : vector<384x128xf32>
    %c0_56 = arith.constant 0 : index
    %c50 = arith.constant 50 : index
    %c0_57 = arith.constant 0 : index
    %49 = vector.load %arg2[%c0_56, %c50, %c0_57] : memref<1x456x128xbf16, #tpu.memory_space<vmem>>, vector<1x384x128xbf16>
    %50 = vector.shape_cast %49 : vector<1x384x128xbf16> to vector<384x128xbf16>
    %c2_58 = arith.constant 2 : index
    %c2_59 = arith.constant 2 : index
    %c0_60 = arith.constant 0 : index
    %c0_61 = arith.constant 0 : index
    %51 = vector.load %arg3[%c2_58, %c2_59, %c0_60, %c0_61] : memref<3x3x128x128xbf16, #tpu.memory_space<vmem>>, vector<1x1x128x128xbf16>
    %52 = vector.shape_cast %51 : vector<1x1x128x128xbf16> to vector<128x128xbf16>
    %cst_62 = arith.constant dense<0.000000e+00> : vector<384x128xf32>
    %53 = tpu.matmul %50, %52, %cst_62 {dimension_numbers = #tpu.dot_dimension_numbers<[1], [0], [0], [1], [0, 0, 1, 1], [], []>} : vector<384x128xbf16>, vector<128x128xbf16>, vector<384x128xf32> -> vector<384x128xf32>
    %54 = arith.addf %48, %53 : vector<384x128xf32>
    %c0_63 = arith.constant 0 : index
    %c0_64 = arith.constant 0 : index
    %55 = vector.load %arg4[%c0_63, %c0_64] : memref<1x128xf32, #tpu.memory_space<vmem>>, vector<1x128xf32>
    %56 = vector.broadcast %55 : vector<1x128xf32> to vector<384x128xf32>
    %57 = arith.addf %54, %56 : vector<384x128xf32>
    %cst_65 = arith.constant 0.000000e+00 : f32
    %58 = vector.broadcast %cst_65 : f32 to vector<384x128xf32>
    %59 = arith.maximumf %57, %58 : vector<384x128xf32>
    %60 = arith.truncf %59 : vector<384x128xf32> to vector<384x128xbf16>
    %c0_66 = arith.constant 0 : index
    %c0_67 = arith.constant 0 : index
    %c0_68 = arith.constant 0 : index
    %61 = vector.load %arg5[%c0_66, %c0_67, %c0_68] : memref<1x384x128xbf16, #tpu.memory_space<vmem>>, vector<1x384x128xbf16>
    %62 = vector.shape_cast %61 : vector<1x384x128xbf16> to vector<384x128xbf16>
    %63 = vector.shape_cast %60 : vector<384x128xbf16> to vector<1x384x128xbf16>
    tpu.vector_store %arg5[%c0_66, %c0_67, %c0_68], %63 {strides = array<i32>} : memref<1x384x128xbf16, #tpu.memory_space<vmem>>, vector<1x384x128xbf16>,
    return
  }
  func.func @transform_0(%arg0: i32, %arg1: i32) -> (i32, i32, i32) {
    %c0_i32 = arith.constant 0 : i32
    %c0_i32_0 = arith.constant 0 : i32
    %c0_i32_1 = arith.constant 0 : i32
    return %arg0, %c0_i32, %c0_i32_0 : i32, i32, i32
  }
  func.func @transform_1(%arg0: i32, %arg1: i32) -> (i32, i32, i32, i32) {
    %c0_i32 = arith.constant 0 : i32
    %c0_i32_0 = arith.constant 0 : i32
    %c0_i32_1 = arith.constant 0 : i32
    %c0_i32_2 = arith.constant 0 : i32
    return %c0_i32, %c0_i32_0, %c0_i32_1, %arg1 : i32, i32, i32, i32
  }
  func.func @transform_2(%arg0: i32, %arg1: i32) -> (i32, i32) {
    %c0_i32 = arith.constant 0 : i32
    %c0_i32_0 = arith.constant 0 : i32
    return %c0_i32, %arg1 : i32, i32
  }
  func.func @transform_3(%arg0: i32, %arg1: i32) -> (i32, i32, i32) {
    %c0_i32 = arith.constant 0 : i32
    %c0_i32_0 = arith.constant 0 : i32
    return %arg0, %c0_i32, %arg1 : i32, i32, i32
  }
}

</mosaic_0001>

<llo_original>
// kernel: tpu_custom_call.1
$region0: #{tpu_custom_call.1}
  #allocation0 [shape = 'u32[]', space=smem, size = 0x4, offset = 0x4, fixed_abs, tag = 'smem constant byte address 0x4 - core index']
  #allocation1 [shape = 'u32[144,128]{1,0:T(1,128)}', space=vmem, size = 0x12000, scoped, tag = 'internal scratch']
  %s0 = inlined_call_operand.hbm [shape: bf16[2,456,128], index: 0, kind: input, shape index: {}]
  %s1 = inlined_call_operand.hbm [shape: bf16[3,3,128,128], index: 1, kind: input, shape index: {}]
  %s2 = inlined_call_operand.vmem [shape: f32[1,128], index: 2, kind: input, shape index: {}]
  %s3 = inlined_call_operand.hbm [shape: bf16[2,384,128], index: 3, kind: output, shape index: {}]
  %s4 = sld [smem:[#allocation0]]
  $region53: #{tpu_custom_call.1} parent=0
    _
  %s6 = ssub.s32 1, %s4
  %s7 = scalar_select 0, %s6, %s4
  $region1: #{tpu_custom_call.1} parent=0
    #allocation2 [shape = 'u8[233472]{0}', space=vmem, size = 0x39000, scoped, tag = 'input window, operand 0']
    #allocation3 [shape = 's32[2]{0}', space=sflag, size = 0x8, scoped, tag = 'scoped memory for tpu_custom_call.1']
    #allocation4 [shape = 's32[2]{0}', space=sflag, size = 0x8, scoped, tag = 'scoped memory for tpu_custom_call.1']
    #allocation5 [shape = 'u8[294912]{0}', space=vmem, size = 0x48000, scoped, tag = 'input window, operand 1, single buffered']
    #allocation6 [shape = 's32[1]{0}', space=sflag, size = 0x4, scoped, tag = 'scoped memory for tpu_custom_call.1']
    #allocation7 [shape = 'u8[196608]{0}', space=vmem, size = 0x30000, scoped, tag = 'output window, operand 0']
    %8 = vsyncpa [#allocation3], 0
    %s9 = scalar_lea.sflag [#allocation3], 1
    %10 = vsyncpa %s9, 0
    %11 = vsyncpa [#allocation6], 0
    %12 = vsyncpa [#allocation4], 0
    %s13 = scalar_lea.sflag [#allocation4], 1
    %14 = vsyncpa %s13, 0
    loop: start=0, step=1, limit=4
    $region2: #{tpu_custom_call.1} parent=1 // loop_pre_header
      _
    $region3: #{tpu_custom_call.1} parent=1 // loop_header
      %s16 = sphi 0, %s20
      %p17 = scmp.ge.s32.totalorder %s16, 4
      %s23 = sphi 0, %s35
      %s24 = sphi 0, %s31
      %s25 = sphi 0, %s23
      %s26 = sphi 0, %s24
      %s27 = sphi 0, %s25
      %s28 = sphi 0, %s26
      %s38 = sphi 0, %s40
      %s41 = sphi 0, %s38
      %s42 = sphi 0, %s41
      %s58 = sphi 0, %s42
      %s64 = sphi 0, %s66
      %s67 = sphi 0, %s64
      %s68 = sphi 0, %s67
      %s84 = sphi 0, %s68
      %s90 = sphi 0, %s92
      %s93 = sphi 0, %s90
      %s94 = sphi 0, %s93
      %s110 = sphi 0, %s94
      %s118 = sphi 0, %s120
      %s121 = sphi 0, %s118
      %s122 = sphi 0, %s121
      %s138 = sphi 0, %s122
    $region4: #{tpu_custom_call.1} parent=1 // loop_header_branch
      %19 = sbr.rel (%p17) target = $region8
    $region5: #{tpu_custom_call.1} parent=1 // loop_body
      %s21 = ssub.s32 %s16, 1
      %s22 = ssub.s32 %s16, 2
      %s29 = sadd.s32 1, %s24
      %p30 = scmp.ge.s32.totalorder %s29, 1
      %s31 = scalar_select %p30, 0, %s29
      %s32 = sadd.s32 1, %s23
      %s33 = scalar_select %p30, %s32, %s23
      %p34 = scmp.ge.s32.totalorder %s33, 2
      %s35 = scalar_select %p34, 0, %s33
      %s36 = ssub.s32 %s23, %s35
      %p37 = scmp.eq.s32.totalorder %s36, 0
      %s39 = sadd.s32 %s38, 1
      %s40 = scalar_select %p37, %s38, %s39
      %p43 = pneg %p37
      %p44 = scmp.eq.s32.totalorder %s16, 1
      %p45 = por %p43, %p44
      %p46 = scmp.ne.s32.totalorder %s38, %s41
      %p47 = scmp.eq.s32.totalorder %s16, 0
      %p48 = por %p46, %p47
      %p49 = scmp.ne.s32.totalorder %s38, %s41
      %p50 = scmp.eq.s32.totalorder %s21, 1
      %p51 = por %p49, %p50
      %p52 = scmp.ne.s32.totalorder %s41, %s42
      %p53 = scmp.eq.s32.totalorder %s21, 0
      %p54 = por %p52, %p53
      %p55 = scmp.ne.s32.totalorder %s41, %s42
      %p56 = scmp.eq.s32.totalorder %s22, 1
      %p57 = por %p55, %p56
      %p59 = scmp.ne.s32.totalorder %s42, %s58
      %p60 = scmp.eq.s32.totalorder %s22, 0
      %p61 = por %p59, %p60
      %s62 = ssub.s32 %s24, %s31
      %p63 = scmp.eq.s32.totalorder %s62, 0
      %s65 = sadd.s32 %s64, 1
      %s66 = scalar_select %p63, %s64, %s65
      %p69 = pneg %p63
      %p70 = scmp.eq.s32.totalorder %s16, 1
      %p71 = por %p69, %p70
      %p72 = scmp.ne.s32.totalorder %s64, %s67
      %p73 = scmp.eq.s32.totalorder %s16, 0
      %p74 = por %p72, %p73
      %p75 = scmp.ne.s32.totalorder %s64, %s67
      %p76 = scmp.eq.s32.totalorder %s21, 1
      %p77 = por %p75, %p76
      %p78 = scmp.ne.s32.totalorder %s67, %s68
      %p79 = scmp.eq.s32.totalorder %s21, 0
      %p80 = por %p78, %p79
      %p81 = scmp.ne.s32.totalorder %s67, %s68
      %p82 = scmp.eq.s32.totalorder %s22, 1
      %p83 = por %p81, %p82
      %p85 = scmp.ne.s32.totalorder %s68, %s84
      %p86 = scmp.eq.s32.totalorder %s22, 0
      %p87 = por %p85, %p86
      %s88 = ssub.s32 %s24, %s31
      %p89 = scmp.eq.s32.totalorder %s88, 0
      %s91 = sadd.s32 %s90, 1
      %s92 = scalar_select %p89, %s90, %s91
      %p95 = pneg %p89
      %p96 = scmp.eq.s32.totalorder %s16, 1
      %p97 = por %p95, %p96
      %p98 = scmp.ne.s32.totalorder %s90, %s93
      %p99 = scmp.eq.s32.totalorder %s16, 0
      %p100 = por %p98, %p99
      %p101 = scmp.ne.s32.totalorder %s90, %s93
      %p102 = scmp.eq.s32.totalorder %s21, 1
      %p103 = por %p101, %p102
      %p104 = scmp.ne.s32.totalorder %s93, %s94
      %p105 = scmp.eq.s32.totalorder %s21, 0
      %p106 = por %p104, %p105
      %p107 = scmp.ne.s32.totalorder %s93, %s94
      %p108 = scmp.eq.s32.totalorder %s22, 1
      %p109 = por %p107, %p108
      %p111 = scmp.ne.s32.totalorder %s94, %s110
      %p112 = scmp.eq.s32.totalorder %s22, 0
      %p113 = por %p111, %p112
      %s114 = ssub.s32 %s23, %s35
      %s115 = ssub.s32 %s24, %s31
      %s116 = sor.u32 %s114, %s115
      %p117 = scmp.eq.s32.totalorder %s116, 0
      %s119 = sadd.s32 %s118, 1
      %s120 = scalar_select %p117, %s118, %s119
      %p123 = pneg %p117
      %p124 = scmp.eq.s32.totalorder %s16, 1
      %p125 = por %p123, %p124
      %p126 = scmp.ne.s32.totalorder %s118, %s121
      %p127 = scmp.eq.s32.totalorder %s16, 0
      %p128 = por %p126, %p127
      %p129 = scmp.ne.s32.totalorder %s118, %s121
      %p130 = scmp.eq.s32.totalorder %s21, 1
      %p131 = por %p129, %p130
      %p132 = scmp.ne.s32.totalorder %s121, %s122
      %p133 = scmp.eq.s32.totalorder %s21, 0
      %p134 = por %p132, %p133
      %p135 = scmp.ne.s32.totalorder %s121, %s122
      %p136 = scmp.eq.s32.totalorder %s22, 1
      %p137 = por %p135, %p136
      %p139 = scmp.ne.s32.totalorder %s122, %s138
      %p140 = scmp.eq.s32.totalorder %s22, 0
      %p141 = por %p139, %p140
      %p142 = scmp.le.s32.totalorder 1, %s16
      %p143 = scmp.lt.s32.totalorder %s16, 3
      %p144 = pnand %p142, %p143
      %p145 = pneg %p144
      // Predicated region
      $region9: #{tpu_custom_call.1} parent=5 // pred_check
        _
      $region10: #{tpu_custom_call.1} parent=5 // pred_check_branch
        %147 = sbr.rel (%p144) target = $region12
      $region11: #{tpu_custom_call.1} parent=5 // pred_region
        %s148 = ssub.s32 %s16, 1
        // Predicated region
        $region13: #{tpu_custom_call.1} parent=11 // pred_check
          %p149 = pneg %p80
        $region14: #{tpu_custom_call.1} parent=11 // pred_check_branch
          %151 = sbr.rel (%p149) target = $region16
        $region15: #{tpu_custom_call.1} parent=11 // pred_region
          %s153 = ssub.s32 9216, 9216
          %154 = vsyncadd [#allocation6], %s153
          %s155 = smul.addr %s26, 64
          %s156 = scalar_lea.hbm %s1, %s155
          %s157 = sshll.u32 [#allocation5], 4
          %s158 = int_to_ptr.vmem [resolvable:$true] %s157
          %163 = dma.hbm_to_vmem [thread:$0]  %s156, 9216, %s158, [#allocation6], 64, 64, 4
        $region16: #{tpu_custom_call.1} parent=11 // pred_fallthru
          _
        // Predicated region
        $region17: #{tpu_custom_call.1} parent=11 // pred_check
          %p164 = pneg %p106
        $region18: #{tpu_custom_call.1} parent=11 // pred_check_branch
          %166 = sbr.rel (%p164) target = $region20
        $region19: #{tpu_custom_call.1} parent=11 // pred_region
          %p167 = scmp.lt.s32.totalorder %s26, 0
          %s168 = scalar_select %p167, %s26, 0
          %s169 = scalar_lea.vmem %s2, %s168
        $region20: #{tpu_custom_call.1} parent=11 // pred_fallthru
          _
      $region12: #{tpu_custom_call.1} parent=5 // pred_fallthru
        _
      %p170 = scmp.lt.s32.totalorder %s16, 2
      // Predicated region
      $region21: #{tpu_custom_call.1} parent=5 // pred_check
        %p171 = pneg %p170
      $region22: #{tpu_custom_call.1} parent=5 // pred_check_branch
        %173 = sbr.rel (%p171) target = $region24
      $region23: #{tpu_custom_call.1} parent=5 // pred_region
        // Predicated region
        $region25: #{tpu_custom_call.1} parent=23 // pred_check
          %p174 = pneg %p48
        $region26: #{tpu_custom_call.1} parent=23 // pred_check_branch
          %176 = sbr.rel (%p174) target = $region28
        $region27: #{tpu_custom_call.1} parent=23 // pred_region
          %s177 = sand.u32 %s38, 1
          %s178 = scalar_lea.sflag [#allocation3], %s177
          %s179 = sand.u32 %s38, 1
          %s180 = smul.addr %s179, 228
          %s181 = scalar_lea.vmem [#allocation2], %s180
          %s183 = ssub.s32 3648, 3648
          %184 = vsyncadd %s178, %s183
          %s185 = smul.addr %s23, 57
          %s186 = smul.addr %s185, 64
          %s187 = scalar_lea.hbm %s0, %s186
          %s188 = sshll.u32 %s181, 4
          %s189 = int_to_ptr.vmem [resolvable:$true] %s188
          %194 = dma.hbm_to_vmem [thread:$0]  %s187, 3648, %s189, %s178, 64, 64, 4
        $region28: #{tpu_custom_call.1} parent=23 // pred_fallthru
          _
      $region24: #{tpu_custom_call.1} parent=5 // pred_fallthru
        _
      %p195 = scmp.le.s32.totalorder 1, %s16
      %p196 = scmp.lt.s32.totalorder %s16, 3
      %p197 = pnand %p195, %p196
      %p198 = pneg %p197
      // Predicated region
      $region29: #{tpu_custom_call.1} parent=5 // pred_check
        _
      $region30: #{tpu_custom_call.1} parent=5 // pred_check_branch
        %200 = sbr.rel (%p197) target = $region32
      $region31: #{tpu_custom_call.1} parent=5 // pred_region
        %s201 = ssub.s32 %s16, 1
        %s202 = sand.u32 %s41, 1
        %s203 = scalar_lea.sflag [#allocation3], %s202
        %s204 = sand.u32 %s41, 1
        %s205 = smul.addr %s204, 228
        %s206 = scalar_lea.vmem [#allocation2], %s205
        // Predicated region
        $region33: #{tpu_custom_call.1} parent=31 // pred_check
          %p207 = pneg %p54
        $region34: #{tpu_custom_call.1} parent=31 // pred_check_branch
          %209 = sbr.rel (%p207) target = $region36
        $region35: #{tpu_custom_call.1} parent=31 // pred_region
          %210 = dma.done %s203, 3648
        $region36: #{tpu_custom_call.1} parent=31 // pred_fallthru
          _
        // Predicated region
        $region37: #{tpu_custom_call.1} parent=31 // pred_check
          %p211 = pneg %p80
        $region38: #{tpu_custom_call.1} parent=31 // pred_check_branch
          %213 = sbr.rel (%p211) target = $region40
        $region39: #{tpu_custom_call.1} parent=31 // pred_region
          %214 = dma.done [#allocation6], 9216
        $region40: #{tpu_custom_call.1} parent=31 // pred_fallthru
          _
        %s215 = sand.u32 %s41, 1
        %s216 = scalar_lea.sflag [#allocation3], %s215
        %s217 = sand.u32 %s41, 1
        %s218 = smul.addr %s217, 228
        %s219 = scalar_lea.vmem [#allocation2], %s218
        %p220 = pneg %p54
        %p221 = pneg %p51
        %p222 = pneg %p80
        %p223 = pneg %p77
        %p224 = scmp.lt.s32.totalorder %s26, 0
        %s225 = scalar_select %p224, %s26, 0
        %s226 = scalar_lea.vmem %s2, %s225
        %p227 = pneg %p106
        %p228 = pneg %p103
        %p229 = pneg %p134
        %p230 = pneg %p131
        %s231 = sand.u32 %s121, 1
        %s232 = scalar_lea.sflag [#allocation4], %s231
        %s233 = sand.u32 %s121, 1
        %s234 = smul.addr %s233, 192
        %s235 = scalar_lea.vmem [#allocation7], %s234
        %p236 = scmp.lt.s32.totalorder %s26, 0
        %s237 = scalar_select %p236, %s26, 0
        %s238 = scalar_lea.vmem %s2, %s237
        %v240 = vld [vmem:[%s206] sm:$0xf]
        %v241 = vld [vmem:[%s206 + $0x4] sm:$0xf]
        %v242 = vld [vmem:[%s206 + $0x8] sm:$0xf]
        %v243 = vld [vmem:[%s206 + $0xc] sm:$0xf]
        %v244 = vld [vmem:[%s206 + $0x10] sm:$0xf]
        %v245 = vld [vmem:[%s206 + $0x14] sm:$0xf]
        %v246 = vld [vmem:[%s206 + $0x18] sm:$0xf]
        %v247 = vld [vmem:[%s206 + $0x1c] sm:$0xf]
        %v248 = vld [vmem:[%s206 + $0x20] sm:$0xf]
        %v249 = vld [vmem:[%s206 + $0x24] sm:$0xf]
        %v250 = vld [vmem:[%s206 + $0x28] sm:$0xf]
        %v251 = vld [vmem:[%s206 + $0x2c] sm:$0xf]
        %v252 = vld [vmem:[%s206 + $0x30] sm:$0xf]
        %v253 = vld [vmem:[%s206 + $0x34] sm:$0xf]
        %v254 = vld [vmem:[%s206 + $0x38] sm:$0xf]
        %v255 = vld [vmem:[%s206 + $0x3c] sm:$0xf]
        %v256 = vld [vmem:[%s206 + $0x40] sm:$0xf]
        %v257 = vld [vmem:[%s206 + $0x44] sm:$0xf]
        %v258 = vld [vmem:[%s206 + $0x48] sm:$0xf]
        %v259 = vld [vmem:[%s206 + $0x4c] sm:$0xf]
        %v260 = vld [vmem:[%s206 + $0x50] sm:$0xf]
        %v261 = vld [vmem:[%s206 + $0x54] sm:$0xf]
        %v262 = vld [vmem:[%s206 + $0x58] sm:$0xf]
        %v263 = vld [vmem:[%s206 + $0x5c] sm:$0xf]
        %v264 = vld [vmem:[%s206 + $0x60] sm:$0xf]
        %v265 = vld [vmem:[%s206 + $0x64] sm:$0xf]
        %v266 = vld [vmem:[%s206 + $0x68] sm:$0xf]
        %v267 = vld [vmem:[%s206 + $0x6c] sm:$0xf]
        %v268 = vld [vmem:[%s206 + $0x70] sm:$0xf]
        %v269 = vld [vmem:[%s206 + $0x74] sm:$0xf]
        %v270 = vld [vmem:[%s206 + $0x78] sm:$0xf]
        %v271 = vld [vmem:[%s206 + $0x7c] sm:$0xf]
        %v272 = vld [vmem:[%s206 + $0x80] sm:$0xf]
        %v273 = vld [vmem:[%s206 + $0x84] sm:$0xf]
        %v274 = vld [vmem:[%s206 + $0x88] sm:$0xf]
        %v275 = vld [vmem:[%s206 + $0x8c] sm:$0xf]
        %v276 = vld [vmem:[%s206 + $0x90] sm:$0xf]
        %v277 = vld [vmem:[%s206 + $0x94] sm:$0xf]
        %v278 = vld [vmem:[%s206 + $0x98] sm:$0xf]
        %v279 = vld [vmem:[%s206 + $0x9c] sm:$0xf]
        %v280 = vld [vmem:[%s206 + $0xa0] sm:$0xf]
        %v281 = vld [vmem:[%s206 + $0xa4] sm:$0xf]
        %v282 = vld [vmem:[%s206 + $0xa8] sm:$0xf]
        %v283 = vld [vmem:[%s206 + $0xac] sm:$0xf]
        %v284 = vld [vmem:[%s206 + $0xb0] sm:$0xf]
        %v285 = vld [vmem:[%s206 + $0xb4] sm:$0xf]
        %v286 = vld [vmem:[%s206 + $0xb8] sm:$0xf]
        %v287 = vld [vmem:[%s206 + $0xbc] sm:$0xf]
        %v288 = vld [vmem:[#allocation5] sm:$0xf]
        %v289 = vld [vmem:[#allocation5 + $0x4] sm:$0xf]
        %v290 = vld [vmem:[#allocation5 + $0x8] sm:$0xf]
        %v291 = vld [vmem:[#allocation5 + $0xc] sm:$0xf]
        %v292 = vld [vmem:[#allocation5 + $0x10] sm:$0xf]
        %v293 = vld [vmem:[#allocation5 + $0x14] sm:$0xf]
        %v294 = vld [vmem:[#allocation5 + $0x18] sm:$0xf]
        %v295 = vld [vmem:[#allocation5 + $0x1c] sm:$0xf]
        %v296 = vld [vmem:[#allocation5 + $0x20] sm:$0xf]
        %v297 = vld [vmem:[#allocation5 + $0x24] sm:$0xf]
        %v298 = vld [vmem:[#allocation5 + $0x28] sm:$0xf]
        %v299 = vld [vmem:[#allocation5 + $0x2c] sm:$0xf]
        %v300 = vld [vmem:[#allocation5 + $0x30] sm:$0xf]
        %v301 = vld [vmem:[#allocation5 + $0x34] sm:$0xf]
        %v302 = vld [vmem:[#allocation5 + $0x38] sm:$0xf]
        %v303 = vld [vmem:[#allocation5 + $0x3c] sm:$0xf]
        %v304 = vld [vmem:[%s206 + $0xc0] sm:$0x1]
        %s305 = scalar_lea.vmem [#allocation5], 64
        %v306 = vld [vmem:[%s305] sm:$0xf]
        %v307 = vld [vmem:[%s305 + $0x4] sm:$0xf]
        %v308 = vld [vmem:[%s305 + $0x8] sm:$0xf]
        %v309 = vld [vmem:[%s305 + $0xc] sm:$0xf]
        %v310 = vld [vmem:[%s305 + $0x10] sm:$0xf]
        %v311 = vld [vmem:[%s305 + $0x14] sm:$0xf]
        %v312 = vld [vmem:[%s305 + $0x18] sm:$0xf]
        %v313 = vld [vmem:[%s305 + $0x1c] sm:$0xf]
        %v314 = vld [vmem:[%s305 + $0x20] sm:$0xf]
        %v315 = vld [vmem:[%s305 + $0x24] sm:$0xf]
        %v316 = vld [vmem:[%s305 + $0x28] sm:$0xf]
        %v317 = vld [vmem:[%s305 + $0x2c] sm:$0xf]
        %v318 = vld [vmem:[%s305 + $0x30] sm:$0xf]
        %v319 = vld [vmem:[%s305 + $0x34] sm:$0xf]
        %v320 = vld [vmem:[%s305 + $0x38] sm:$0xf]
        %v321 = vld [vmem:[%s305 + $0x3c] sm:$0xf]
        %v371 = vunpack.c.l.b16 %v240
        %v372 = vunpack.c.l.b16 %v241
        %v373 = vunpack.c.l.b16 %v242
        %v374 = vunpack.c.l.b16 %v243
        %v375 = vunpack.c.l.b16 %v244
        %v376 = vunpack.c.l.b16 %v245
        %v377 = vunpack.c.l.b16 %v246
        %v378 = vunpack.c.l.b16 %v247
        %v379 = vunpack.c.l.b16 %v248
        %v380 = vunpack.c.l.b16 %v249
        %v381 = vunpack.c.l.b16 %v250
        %v382 = vunpack.c.l.b16 %v251
        %v383 = vunpack.c.l.b16 %v252
        %v384 = vunpack.c.l.b16 %v253
        %v385 = vunpack.c.l.b16 %v254
        %v386 = vunpack.c.l.b16 %v255
        %v387 = vunpack.c.l.b16 %v256
        %v388 = vunpack.c.l.b16 %v257
        %v389 = vunpack.c.l.b16 %v258
        %v390 = vunpack.c.l.b16 %v259
        %v391 = vunpack.c.l.b16 %v260
        %v392 = vunpack.c.l.b16 %v261
        %v393 = vunpack.c.l.b16 %v262
        %v394 = vunpack.c.l.b16 %v263
        %v395 = vunpack.c.l.b16 %v264
        %v396 = vunpack.c.l.b16 %v265
        %v397 = vunpack.c.l.b16 %v266
        %v398 = vunpack.c.l.b16 %v267
        %v399 = vunpack.c.l.b16 %v268
        %v400 = vunpack.c.l.b16 %v269
        %v401 = vunpack.c.l.b16 %v270
        %v402 = vunpack.c.l.b16 %v271
        %v403 = vunpack.c.l.b16 %v272
        %v404 = vunpack.c.l.b16 %v273
        %v405 = vunpack.c.l.b16 %v274
        %v406 = vunpack.c.l.b16 %v275
        %v407 = vunpack.c.l.b16 %v276
        %v408 = vunpack.c.l.b16 %v277
        %v409 = vunpack.c.l.b16 %v278
        %v410 = vunpack.c.l.b16 %v279
        %v411 = vunpack.c.l.b16 %v280
        %v412 = vunpack.c.l.b16 %v281
        %v413 = vunpack.c.l.b16 %v282
        %v414 = vunpack.c.l.b16 %v283
        %v415 = vunpack.c.l.b16 %v284
        %v416 = vunpack.c.l.b16 %v285
        %v417 = vunpack.c.l.b16 %v286
        %v418 = vunpack.c.l.b16 %v287
        %v419 = vunpack.c.l.b16 %v304
        %v420 = vpack.c.b16 %v372, %v371
        %v421 = vpack.c.b16 %v374, %v373
        %v422 = vpack.c.b16 %v376, %v375
        %v423 = vpack.c.b16 %v378, %v377
        %v424 = vpack.c.b16 %v380, %v379
        %v425 = vpack.c.b16 %v382, %v381
        %v426 = vpack.c.b16 %v384, %v383
        %v427 = vpack.c.b16 %v386, %v385
        %v428 = vpack.c.b16 %v388, %v387
        %v429 = vpack.c.b16 %v390, %v389
        %v430 = vpack.c.b16 %v392, %v391
        %v431 = vpack.c.b16 %v394, %v393
        %v432 = vpack.c.b16 %v396, %v395
        %v433 = vpack.c.b16 %v398, %v397
        %v434 = vpack.c.b16 %v400, %v399
        %v435 = vpack.c.b16 %v402, %v401
        %v436 = vpack.c.b16 %v404, %v403
        %v437 = vpack.c.b16 %v406, %v405
        %v438 = vpack.c.b16 %v408, %v407
        %v439 = vpack.c.b16 %v410, %v409
        %v440 = vpack.c.b16 %v412, %v411
        %v441 = vpack.c.b16 %v414, %v413
        %v442 = vpack.c.b16 %v416, %v415
        %v443 = vpack.c.b16 %v418, %v417
        %v444 = vpack.c.b16 %v419, %v419
        %vm445 = vsmask.f32 7424
        %v447 = vshrl.u32 %v420, 16
        %v449 = vshll.u32 %v420, 16
        %v451 = vrot.slane %v449, 1
        %v452 = vor.u32 %v447, %v451
        %v454 = vshll.u32 %v421, 16
        %v456 = vrot.slane %v454, 1
        %v457 = vsel %vm445, %v452, %v456
        %v458 = vshrl.u32 %v421, 16
        %v460 = vor.u32 %v458, %v456
        %v462 = vshll.u32 %v422, 16
        %v464 = vrot.slane %v462, 1
        %v465 = vsel %vm445, %v460, %v464
        %v466 = vshrl.u32 %v422, 16
        %v468 = vor.u32 %v466, %v464
        %v470 = vshll.u32 %v423, 16
        %v472 = vrot.slane %v470, 1
        %v473 = vsel %vm445, %v468, %v472
        %v474 = vshrl.u32 %v423, 16
        %v476 = vor.u32 %v474, %v472
        %v478 = vshll.u32 %v424, 16
        %v480 = vrot.slane %v478, 1
        %v481 = vsel %vm445, %v476, %v480
        %v482 = vshrl.u32 %v424, 16
        %v484 = vor.u32 %v482, %v480
        %v486 = vshll.u32 %v425, 16
        %v488 = vrot.slane %v486, 1
        %v489 = vsel %vm445, %v484, %v488
        %v490 = vshrl.u32 %v425, 16
        %v492 = vor.u32 %v490, %v488
        %v494 = vshll.u32 %v426, 16
        %v496 = vrot.slane %v494, 1
        %v497 = vsel %vm445, %v492, %v496
        %v498 = vshrl.u32 %v426, 16
        %v500 = vor.u32 %v498, %v496
        %v502 = vshll.u32 %v427, 16
        %v504 = vrot.slane %v502, 1
        %v505 = vsel %vm445, %v500, %v504
        %v506 = vshrl.u32 %v427, 16
        %v508 = vor.u32 %v506, %v504
        %v510 = vshll.u32 %v428, 16
        %v512 = vrot.slane %v510, 1
        %v513 = vsel %vm445, %v508, %v512
        %v514 = vshrl.u32 %v428, 16
        %v516 = vor.u32 %v514, %v512
        %v518 = vshll.u32 %v429, 16
        %v520 = vrot.slane %v518, 1
        %v521 = vsel %vm445, %v516, %v520
        %v522 = vshrl.u32 %v429, 16
        %v524 = vor.u32 %v522, %v520
        %v526 = vshll.u32 %v430, 16
        %v528 = vrot.slane %v526, 1
        %v529 = vsel %vm445, %v524, %v528
        %v530 = vshrl.u32 %v430, 16
        %v532 = vor.u32 %v530, %v528
        %v534 = vshll.u32 %v431, 16
        %v536 = vrot.slane %v534, 1
        %v537 = vsel %vm445, %v532, %v536
        %v538 = vshrl.u32 %v431, 16
        %v540 = vor.u32 %v538, %v536
        %v542 = vshll.u32 %v432, 16
        %v544 = vrot.slane %v542, 1
        %v545 = vsel %vm445, %v540, %v544
        %v546 = vshrl.u32 %v432, 16
        %v548 = vor.u32 %v546, %v544
        %v550 = vshll.u32 %v433, 16
        %v552 = vrot.slane %v550, 1
        %v553 = vsel %vm445, %v548, %v552
        %v554 = vshrl.u32 %v433, 16
        %v556 = vor.u32 %v554, %v552
        %v558 = vshll.u32 %v434, 16
        %v560 = vrot.slane %v558, 1
        %v561 = vsel %vm445, %v556, %v560
        %v562 = vshrl.u32 %v434, 16
        %v564 = vor.u32 %v562, %v560
        %v566 = vshll.u32 %v435, 16
        %v568 = vrot.slane %v566, 1
        %v569 = vsel %vm445, %v564, %v568
        %v570 = vshrl.u32 %v435, 16
        %v572 = vor.u32 %v570, %v568
        %v574 = vshll.u32 %v436, 16
        %v576 = vrot.slane %v574, 1
        %v577 = vsel %vm445, %v572, %v576
        %v578 = vshrl.u32 %v436, 16
        %v580 = vor.u32 %v578, %v576
        %v582 = vshll.u32 %v437, 16
        %v584 = vrot.slane %v582, 1
        %v585 = vsel %vm445, %v580, %v584
        %v586 = vshrl.u32 %v437, 16
        %v588 = vor.u32 %v586, %v584
        %v590 = vshll.u32 %v438, 16
        %v592 = vrot.slane %v590, 1
        %v593 = vsel %vm445, %v588, %v592
        %v594 = vshrl.u32 %v438, 16
        %v596 = vor.u32 %v594, %v592
        %v598 = vshll.u32 %v439, 16
        %v600 = vrot.slane %v598, 1
        %v601 = vsel %vm445, %v596, %v600
        %v602 = vshrl.u32 %v439, 16
        %v604 = vor.u32 %v602, %v600
        %v606 = vshll.u32 %v440, 16
        %v608 = vrot.slane %v606, 1
        %v609 = vsel %vm445, %v604, %v608
        %v610 = vshrl.u32 %v440, 16
        %v612 = vor.u32 %v610, %v608
        %v614 = vshll.u32 %v441, 16
        %v616 = vrot.slane %v614, 1
        %v617 = vsel %vm445, %v612, %v616
        %v618 = vshrl.u32 %v441, 16
        %v620 = vor.u32 %v618, %v616
        %v622 = vshll.u32 %v442, 16
        %v624 = vrot.slane %v622, 1
        %v625 = vsel %vm445, %v620, %v624
        %v626 = vshrl.u32 %v442, 16
        %v628 = vor.u32 %v626, %v624
        %v630 = vshll.u32 %v443, 16
        %v632 = vrot.slane %v630, 1
        %v633 = vsel %vm445, %v628, %v632
        %v634 = vshrl.u32 %v443, 16
        %v636 = vor.u32 %v634, %v632
        %v638 = vshll.u32 %v444, 16
        %v640 = vrot.slane %v638, 1
        %v641 = vsel %vm445, %v636, %v640
        %v682 = vunpack.c.l.b16 %v306
        %v683 = vunpack.c.l.b16 %v307
        %v684 = vunpack.c.l.b16 %v308
        %v685 = vunpack.c.l.b16 %v309
        %v686 = vunpack.c.l.b16 %v310
        %v687 = vunpack.c.l.b16 %v311
        %v688 = vunpack.c.l.b16 %v312
        %v689 = vunpack.c.l.b16 %v313
        %v690 = vunpack.c.l.b16 %v314
        %v691 = vunpack.c.l.b16 %v315
        %v692 = vunpack.c.l.b16 %v316
        %v693 = vunpack.c.l.b16 %v317
        %v694 = vunpack.c.l.b16 %v318
        %v695 = vunpack.c.l.b16 %v319
        %v696 = vunpack.c.l.b16 %v320
        %v697 = vunpack.c.l.b16 %v321
        %v698 = vpack.c.b16 %v683, %v682
        %v699 = vpack.c.b16 %v685, %v684
        %v700 = vpack.c.b16 %v687, %v686
        %v701 = vpack.c.b16 %v689, %v688
        %v702 = vpack.c.b16 %v691, %v690
        %v703 = vpack.c.b16 %v693, %v692
        %v704 = vpack.c.b16 %v695, %v694
        %v705 = vpack.c.b16 %v697, %v696
        %714 = vmatprep.subr.bf16.mxu0 0
        %715 = vmatpush1.bf16.msra.mxu0 %v698
        %716 = vmatprep.subr.bf16.mxu0 0
        %717 = vmatpush1.bf16.msra.mxu0 %v699
        %718 = vmatprep.subr.bf16.mxu0 0
        %719 = vmatpush1.bf16.msra.mxu0 %v700
        %720 = vmatprep.subr.bf16.mxu0 0
        %721 = vmatpush1.bf16.msra.mxu0 %v701
        %722 = vmatprep.subr.bf16.mxu0 0
        %723 = vmatpush1.bf16.msra.mxu0 %v702
        %724 = vmatprep.subr.bf16.mxu0 0
        %725 = vmatpush1.bf16.msra.mxu0 %v703
        %726 = vmatprep.subr.bf16.mxu0 0
        %727 = vmatpush1.bf16.msra.mxu0 %v704
        %728 = vmatprep.subr.bf16.mxu0 0
        %729 = vmatpush1.bf16.msra.mxu0 %v705
        %730 = vmatprep.subr.bf16.mxu0 0
        %731 = vmatpush1.bf16.msra.mxu0 0
        %732 = vmatprep.subr.bf16.mxu0 0
        %733 = vmatpush1.bf16.msra.mxu0 0
        %734 = vmatprep.subr.bf16.mxu0 0
        %735 = vmatpush1.bf16.msra.mxu0 0
        %736 = vmatprep.subr.bf16.mxu0 0
        %737 = vmatpush1.bf16.msra.mxu0 0
        %738 = vmatprep.subr.bf16.mxu0 0
        %739 = vmatpush1.bf16.msra.mxu0 0
        %740 = vmatprep.subr.bf16.mxu0 0
        %741 = vmatpush1.bf16.msra.mxu0 0
        %742 = vmatprep.subr.bf16.mxu0 0
        %743 = vmatpush1.bf16.msra.mxu0 0
        %744 = vmatprep.subr.bf16.mxu0 0
        %745 = vmatpush1.bf16.msra.mxu0 0
        %746 = vmatprep.mubr.bf16.mxu0 0
        %747 = vmatmul.mubr.bf16.gmra.mrb[0].mxu0 %v457
        %v748 = vpop.f32.mrb[0].mxu0
        %v749 = vadd.f32 0.0, %v748
        %v750 = vpop.f32.mrb[0].mxu0
        %v751 = vpop.f32.mrb[0].mxu0
        %v752 = vadd.f32 0.0, %v751
        %v753 = vpop.f32.mrb[0].mxu0
        %754 = vmatprep.mubr.bf16.mxu0 0
        %755 = vmatmul.mubr.bf16.gmra.mrb[0].mxu0 %v465
        %v756 = vpop.f32.mrb[0].mxu0
        %v757 = vadd.f32 0.0, %v756
        %v758 = vpop.f32.mrb[0].mxu0
        %v759 = vpop.f32.mrb[0].mxu0
        %v760 = vadd.f32 0.0, %v759
        %v761 = vpop.f32.mrb[0].mxu0
        %762 = vmatprep.mubr.bf16.mxu0 0
        %763 = vmatmul.mubr.bf16.gmra.mrb[0].mxu0 %v473
        %v764 = vpop.f32.mrb[0].mxu0
        %v765 = vadd.f32 0.0, %v764
        %v766 = vpop.f32.mrb[0].mxu0
        %v767 = vpop.f32.mrb[0].mxu0
        %v768 = vadd.f32 0.0, %v767
        %v769 = vpop.f32.mrb[0].mxu0
        %770 = vmatprep.mubr.bf16.mxu0 0
        %771 = vmatmul.mubr.bf16.gmra.mrb[0].mxu0 %v481
        %v772 = vpop.f32.mrb[0].mxu0
        %v773 = vadd.f32 0.0, %v772
        %v774 = vpop.f32.mrb[0].mxu0
        %v775 = vpop.f32.mrb[0].mxu0
        %v776 = vadd.f32 0.0, %v775
        %v777 = vpop.f32.mrb[0].mxu0
        %778 = vmatprep.mubr.bf16.mxu0 0
        %779 = vmatmul.mubr.bf16.gmra.mrb[0].mxu0 %v489
        %v780 = vpop.f32.mrb[0].mxu0
        %v781 = vadd.f32 0.0, %v780
        %v782 = vpop.f32.mrb[0].mxu0
        %v783 = vpop.f32.mrb[0].mxu0
        %v784 = vadd.f32 0.0, %v783
        %v785 = vpop.f32.mrb[0].mxu0
        %786 = vmatprep.mubr.bf16.mxu0 0
        %787 = vmatmul.mubr.bf16.gmra.mrb[0].mxu0 %v497
        %v788 = vpop.f32.mrb[0].mxu0
        %v789 = vadd.f32 0.0, %v788
        %v790 = vpop.f32.mrb[0].mxu0
        %v791 = vpop.f32.mrb[0].mxu0
        %v792 = vadd.f32 0.0, %v791
        %v793 = vpop.f32.mrb[0].mxu0
        %794 = vmatprep.mubr.bf16.mxu0 0
        %795 = vmatmul.mubr.bf16.gmra.mrb[0].mxu0 %v505
        %v796 = vpop.f32.mrb[0].mxu0
        %v797 = vadd.f32 0.0, %v796
        %v798 = vpop.f32.mrb[0].mxu0
        %v799 = vpop.f32.mrb[0].mxu0
        %v800 = vadd.f32 0.0, %v799
        %v801 = vpop.f32.mrb[0].mxu0
        %802 = vmatprep.mubr.bf16.mxu0 0
        %803 = vmatmul.mubr.bf16.gmra.mrb[0].mxu0 %v513
        %v804 = vpop.f32.mrb[0].mxu0
        %v805 = vadd.f32 0.0, %v804
        %v806 = vpop.f32.mrb[0].mxu0
        %v807 = vpop.f32.mrb[0].mxu0
        %v808 = vadd.f32 0.0, %v807
        %v809 = vpop.f32.mrb[0].mxu0
        %810 = vmatprep.mubr.bf16.mxu0 0
        %811 = vmatmul.mubr.bf16.gmra.mrb[0].mxu0 %v521
        %v812 = vpop.f32.mrb[0].mxu0
        %v813 = vadd.f32 0.0, %v812
        %v814 = vpop.f32.mrb[0].mxu0
        %v815 = vpop.f32.mrb[0].mxu0
        %v816 = vadd.f32 0.0, %v815
        %v817 = vpop.f32.mrb[0].mxu0
        %818 = vmatprep.mubr.bf16.mxu0 0
        %819 = vmatmul.mubr.bf16.gmra.mrb[0].mxu0 %v529
        %v820 = vpop.f32.mrb[0].mxu0
        %v821 = vadd.f32 0.0, %v820
        %v822 = vpop.f32.mrb[0].mxu0
        %v823 = vpop.f32.mrb[0].mxu0
        %v824 = vadd.f32 0.0, %v823
        %v825 = vpop.f32.mrb[0].mxu0
        %826 = vmatprep.mubr.bf16.mxu0 0
        %827 = vmatmul.mubr.bf16.gmra.mrb[0].mxu0 %v537
        %v828 = vpop.f32.mrb[0].mxu0
        %v829 = vadd.f32 0.0, %v828
        %v830 = vpop.f32.mrb[0].mxu0
        %v831 = vpop.f32.mrb[0].mxu0
        %v832 = vadd.f32 0.0, %v831
        %v833 = vpop.f32.mrb[0].mxu0
        %834 = vmatprep.mubr.bf16.mxu0 0
        %835 = vmatmul.mubr.bf16.gmra.mrb[0].mxu0 %v545
        %v836 = vpop.f32.mrb[0].mxu0
        %v837 = vadd.f32 0.0, %v836
        %v838 = vpop.f32.mrb[0].mxu0
        %v839 = vpop.f32.mrb[0].mxu0
        %v840 = vadd.f32 0.0, %v839
        %v841 = vpop.f32.mrb[0].mxu0
        %842 = vmatprep.mubr.bf16.mxu0 0
        %843 = vmatmul.mubr.bf16.gmra.mrb[0].mxu0 %v553
        %v844 = vpop.f32.mrb[0].mxu0
        %v845 = vadd.f32 0.0, %v844
        %v846 = vpop.f32.mrb[0].mxu0
        %v847 = vpop.f32.mrb[0].mxu0
        %v848 = vadd.f32 0.0, %v847
        %v849 = vpop.f32.mrb[0].mxu0
        %850 = vmatprep.mubr.bf16.mxu0 0
        %851 = vmatmul.mubr.bf16.gmra.mrb[0].mxu0 %v561
        %v852 = vpop.f32.mrb[0].mxu0
        %v853 = vadd.f32 0.0, %v852
        %v854 = vpop.f32.mrb[0].mxu0
        %v855 = vpop.f32.mrb[0].mxu0
        %v856 = vadd.f32 0.0, %v855
        %v857 = vpop.f32.mrb[0].mxu0
        %858 = vmatprep.mubr.bf16.mxu0 0
        %859 = vmatmul.mubr.bf16.gmra.mrb[0].mxu0 %v569
        %v860 = vpop.f32.mrb[0].mxu0
        %v861 = vadd.f32 0.0, %v860
        %v862 = vpop.f32.mrb[0].mxu0
        %v863 = vpop.f32.mrb[0].mxu0
        %v864 = vadd.f32 0.0, %v863
        %v865 = vpop.f32.mrb[0].mxu0
        %866 = vmatprep.mubr.bf16.mxu0 0
        %867 = vmatmul.mubr.bf16.gmra.mrb[0].mxu0 %v577
        %v868 = vpop.f32.mrb[0].mxu0
        %v869 = vadd.f32 0.0, %v868
        %v870 = vpop.f32.mrb[0].mxu0
        %v871 = vpop.f32.mrb[0].mxu0
        %v872 = vadd.f32 0.0, %v871
        %v873 = vpop.f32.mrb[0].mxu0
        %874 = vmatprep.mubr.bf16.mxu0 0
        %875 = vmatmul.mubr.bf16.gmra.mrb[0].mxu0 %v585
        %v876 = vpop.f32.mrb[0].mxu0
        %v877 = vadd.f32 0.0, %v876
        %v878 = vpop.f32.mrb[0].mxu0
        %v879 = vpop.f32.mrb[0].mxu0
        %v880 = vadd.f32 0.0, %v879
        %v881 = vpop.f32.mrb[0].mxu0
        %882 = vmatprep.mubr.bf16.mxu0 0
        %883 = vmatmul.mubr.bf16.gmra.mrb[0].mxu0 %v593
        %v884 = vpop.f32.mrb[0].mxu0
        %v885 = vadd.f32 0.0, %v884
        %v886 = vpop.f32.mrb[0].mxu0
        %v887 = vpop.f32.mrb[0].mxu0
        %v888 = vadd.f32 0.0, %v887
        %v889 = vpop.f32.mrb[0].mxu0
        %890 = vmatprep.mubr.bf16.mxu0 0
        %891 = vmatmul.mubr.bf16.gmra.mrb[0].mxu0 %v601
        %v892 = vpop.f32.mrb[0].mxu0
        %v893 = vadd.f32 0.0, %v892
        %v894 = vpop.f32.mrb[0].mxu0
        %v895 = vpop.f32.mrb[0].mxu0
        %v896 = vadd.f32 0.0, %v895
        %v897 = vpop.f32.mrb[0].mxu0
        %898 = vmatprep.mubr.bf16.mxu0 0
        %899 = vmatmul.mubr.bf16.gmra.mrb[0].mxu0 %v609
        %v900 = vpop.f32.mrb[0].mxu0
        %v901 = vadd.f32 0.0, %v900
        %v902 = vpop.f32.mrb[0].mxu0
        %v903 = vpop.f32.mrb[0].mxu0
        %v904 = vadd.f32 0.0, %v903
        %v905 = vpop.f32.mrb[0].mxu0
        %906 = vmatprep.mubr.bf16.mxu0 0
        %907 = vmatmul.mubr.bf16.gmra.mrb[0].mxu0 %v617
        %v908 = vpop.f32.mrb[0].mxu0
        %v909 = vadd.f32 0.0, %v908
        %v910 = vpop.f32.mrb[0].mxu0
        %v911 = vpop.f32.mrb[0].mxu0
        %v912 = vadd.f32 0.0, %v911
        %v913 = vpop.f32.mrb[0].mxu0
        %914 = vmatprep.mubr.bf16.mxu0 0
        %915 = vmatmul.mubr.bf16.gmra.mrb[0].mxu0 %v625
        %v916 = vpop.f32.mrb[0].mxu0
        %v917 = vadd.f32 0.0, %v916
        %v918 = vpop.f32.mrb[0].mxu0
        %v919 = vpop.f32.mrb[0].mxu0
        %v920 = vadd.f32 0.0, %v919
        %v921 = vpop.f32.mrb[0].mxu0
        %922 = vmatprep.mubr.bf16.mxu0 0
        %923 = vmatmul.mubr.bf16.gmra.mrb[0].mxu0 %v633
        %v924 = vpop.f32.mrb[0].mxu0
        %v925 = vadd.f32 0.0, %v924
        %v926 = vpop.f32.mrb[0].mxu0
        %v927 = vpop.f32.mrb[0].mxu0
        %v928 = vadd.f32 0.0, %v927
        %v929 = vpop.f32.mrb[0].mxu0
        %930 = vmatprep.mubr.bf16.mxu0 0
        %931 = vmatmul.mubr.bf16.gmra.mrb[0].mxu0 %v641
        %v932 = vpop.f32.mrb[0].mxu0
        %v933 = vadd.f32 0.0, %v932
        %v934 = vpop.f32.mrb[0].mxu0
        %v935 = vpop.f32.mrb[0].mxu0
        %v936 = vadd.f32 0.0, %v935
        %v937 = vpop.f32.mrb[0].mxu0
        %938 = vdwg.mxu0
        %v979 = vunpack.c.l.b16 %v288
        %v980 = vunpack.c.l.b16 %v289
        %v981 = vunpack.c.l.b16 %v290
        %v982 = vunpack.c.l.b16 %v291
        %v983 = vunpack.c.l.b16 %v292
        %v984 = vunpack.c.l.b16 %v293
        %v985 = vunpack.c.l.b16 %v294
        %v986 = vunpack.c.l.b16 %v295
        %v987 = vunpack.c.l.b16 %v296
        %v988 = vunpack.c.l.b16 %v297
        %v989 = vunpack.c.l.b16 %v298
        %v990 = vunpack.c.l.b16 %v299
        %v991 = vunpack.c.l.b16 %v300
        %v992 = vunpack.c.l.b16 %v301
        %v993 = vunpack.c.l.b16 %v302
        %v994 = vunpack.c.l.b16 %v303
        %v995 = vpack.c.b16 %v980, %v979
        %v996 = vpack.c.b16 %v982, %v981
        %v997 = vpack.c.b16 %v984, %v983
        %v998 = vpack.c.b16 %v986, %v985
        %v999 = vpack.c.b16 %v988, %v987
        %v1000 = vpack.c.b16 %v990, %v989
        %v1001 = vpack.c.b16 %v992, %v991
        %v1002 = vpack.c.b16 %v994, %v993
        %1011 = vmatprep.subr.bf16.mxu0 0
        %1012 = vmatpush1.bf16.msra.mxu0 %v995
        %1013 = vmatprep.subr.bf16.mxu0 0
        %1014 = vmatpush1.bf16.msra.mxu0 %v996
        %1015 = vmatprep.subr.bf16.mxu0 0
        %1016 = vmatpush1.bf16.msra.mxu0 %v997
        %1017 = vmatprep.subr.bf16.mxu0 0
        %1018 = vmatpush1.bf16.msra.mxu0 %v998
        %1019 = vmatprep.subr.bf16.mxu0 0
        %1020 = vmatpush1.bf16.msra.mxu0 %v999
        %1021 = vmatprep.subr.bf16.mxu0 0
        %1022 = vmatpush1.bf16.msra.mxu0 %v1000
        %1023 = vmatprep.subr.bf16.mxu0 0
        %1024 = vmatpush1.bf16.msra.mxu0 %v1001
        %1025 = vmatprep.subr.bf16.mxu0 0
        %1026 = vmatpush1.bf16.msra.mxu0 %v1002
        %1027 = vmatprep.subr.bf16.mxu0 0
        %1028 = vmatpush1.bf16.msra.mxu0 0
        %1029 = vmatprep.subr.bf16.mxu0 0
        %1030 = vmatpush1.bf16.msra.mxu0 0
        %1031 = vmatprep.subr.bf16.mxu0 0
        %1032 = vmatpush1.bf16.msra.mxu0 0
        %1033 = vmatprep.subr.bf16.mxu0 0
        %1034 = vmatpush1.bf16.msra.mxu0 0
        %1035 = vmatprep.subr.bf16.mxu0 0
        %1036 = vmatpush1.bf16.msra.mxu0 0
        %1037 = vmatprep.subr.bf16.mxu0 0
        %1038 = vmatpush1.bf16.msra.mxu0 0
        %1039 = vmatprep.subr.bf16.mxu0 0
        %1040 = vmatpush1.bf16.msra.mxu0 0
        %1041 = vmatprep.subr.bf16.mxu0 0
        %1042 = vmatpush1.bf16.msra.mxu0 0
        %1043 = vmatprep.mubr.bf16.mxu0 0
        %1044 = vmatmul.mubr.bf16.gmra.mrb[0].mxu0 %v420
        %v1045 = vpop.f32.mrb[0].mxu0
        %v1046 = vadd.f32 %v749, %v1045
        %v1047 = vpop.f32.mrb[0].mxu0
        %v1048 = vpop.f32.mrb[0].mxu0
        %v1049 = vadd.f32 %v752, %v1048
        %v1050 = vpop.f32.mrb[0].mxu0
        %1051 = vmatprep.mubr.bf16.mxu0 0
        %1052 = vmatmul.mubr.bf16.gmra.mrb[0].mxu0 %v421
        %v1053 = vpop.f32.mrb[0].mxu0
        %v1054 = vadd.f32 %v757, %v1053
        %v1055 = vpop.f32.mrb[0].mxu0
        %v1056 = vpop.f32.mrb[0].mxu0
        %v1057 = vadd.f32 %v760, %v1056
        %v1058 = vpop.f32.mrb[0].mxu0
        %1059 = vmatprep.mubr.bf16.mxu0 0
        %1060 = vmatmul.mubr.bf16.gmra.mrb[0].mxu0 %v422
        %v1061 = vpop.f32.mrb[0].mxu0
        %v1062 = vadd.f32 %v765, %v1061
        %v1063 = vpop.f32.mrb[0].mxu0
        %v1064 = vpop.f32.mrb[0].mxu0
        %v1065 = vadd.f32 %v768, %v1064
        %v1066 = vpop.f32.mrb[0].mxu0
        %1067 = vmatprep.mubr.bf16.mxu0 0
        %1068 = vmatmul.mubr.bf16.gmra.mrb[0].mxu0 %v423
        %v1069 = vpop.f32.mrb[0].mxu0
        %v1070 = vadd.f32 %v773, %v1069
        %v1071 = vpop.f32.mrb[0].mxu0
        %v1072 = vpop.f32.mrb[0].mxu0
        %v1073 = vadd.f32 %v776, %v1072
        %v1074 = vpop.f32.mrb[0].mxu0
        %1075 = vmatprep.mubr.bf16.mxu0 0
        %1076 = vmatmul.mubr.bf16.gmra.mrb[0].mxu0 %v424
        %v1077 = vpop.f32.mrb[0].mxu0
        %v1078 = vadd.f32 %v781, %v1077
        %v1079 = vpop.f32.mrb[0].mxu0
        %v1080 = vpop.f32.mrb[0].mxu0
        %v1081 = vadd.f32 %v784, %v1080
        %v1082 = vpop.f32.mrb[0].mxu0
        %1083 = vmatprep.mubr.bf16.mxu0 0
        %1084 = vmatmul.mubr.bf16.gmra.mrb[0].mxu0 %v425
        %v1085 = vpop.f32.mrb[0].mxu0
        %v1086 = vadd.f32 %v789, %v1085
        %v1087 = vpop.f32.mrb[0].mxu0
        %v1088 = vpop.f32.mrb[0].mxu0
        %v1089 = vadd.f32 %v792, %v1088
        %v1090 = vpop.f32.mrb[0].mxu0
        %1091 = vmatprep.mubr.bf16.mxu0 0
        %1092 = vmatmul.mubr.bf16.gmra.mrb[0].mxu0 %v426
        %v1093 = vpop.f32.mrb[0].mxu0
        %v1094 = vadd.f32 %v797, %v1093
        %v1095 = vpop.f32.mrb[0].mxu0
        %v1096 = vpop.f32.mrb[0].mxu0
        %v1097 = vadd.f32 %v800, %v1096
        %v1098 = vpop.f32.mrb[0].mxu0
        %1099 = vmatprep.mubr.bf16.mxu0 0
        %1100 = vmatmul.mubr.bf16.gmra.mrb[0].mxu0 %v427
        %v1101 = vpop.f32.mrb[0].mxu0
        %v1102 = vadd.f32 %v805, %v1101
        %v1103 = vpop.f32.mrb[0].mxu0
        %v1104 = vpop.f32.mrb[0].mxu0
        %v1105 = vadd.f32 %v808, %v1104
        %v1106 = vpop.f32.mrb[0].mxu0
        %1107 = vmatprep.mubr.bf16.mxu0 0
        %1108 = vmatmul.mubr.bf16.gmra.mrb[0].mxu0 %v428
        %v1109 = vpop.f32.mrb[0].mxu0
        %v1110 = vadd.f32 %v813, %v1109
        %v1111 = vpop.f32.mrb[0].mxu0
        %v1112 = vpop.f32.mrb[0].mxu0
        %v1113 = vadd.f32 %v816, %v1112
        %v1114 = vpop.f32.mrb[0].mxu0
        %1115 = vmatprep.mubr.bf16.mxu0 0
        %1116 = vmatmul.mubr.bf16.gmra.mrb[0].mxu0 %v429
        %v1117 = vpop.f32.mrb[0].mxu0
        %v1118 = vadd.f32 %v821, %v1117
        %v1119 = vpop.f32.mrb[0].mxu0
        %v1120 = vpop.f32.mrb[0].mxu0
        %v1121 = vadd.f32 %v824, %v1120
        %v1122 = vpop.f32.mrb[0].mxu0
        %1123 = vmatprep.mubr.bf16.mxu0 0
        %1124 = vmatmul.mubr.bf16.gmra.mrb[0].mxu0 %v430
        %v1125 = vpop.f32.mrb[0].mxu0
        %v1126 = vadd.f32 %v829, %v1125
        %v1127 = vpop.f32.mrb[0].mxu0
        %v1128 = vpop.f32.mrb[0].mxu0
        %v1129 = vadd.f32 %v832, %v1128
        %v1130 = vpop.f32.mrb[0].mxu0
        %1131 = vmatprep.mubr.bf16.mxu0 0
        %1132 = vmatmul.mubr.bf16.gmra.mrb[0].mxu0 %v431
        %v1133 = vpop.f32.mrb[0].mxu0
        %v1134 = vadd.f32 %v837, %v1133
        %v1135 = vpop.f32.mrb[0].mxu0
        %v1136 = vpop.f32.mrb[0].mxu0
        %v1137 = vadd.f32 %v840, %v1136
        %v1138 = vpop.f32.mrb[0].mxu0
        %1139 = vmatprep.mubr.bf16.mxu0 0
        %1140 = vmatmul.mubr.bf16.gmra.mrb[0].mxu0 %v432
        %v1141 = vpop.f32.mrb[0].mxu0
        %v1142 = vadd.f32 %v845, %v1141
        %v1143 = vpop.f32.mrb[0].mxu0
        %v1144 = vpop.f32.mrb[0].mxu0
        %v1145 = vadd.f32 %v848, %v1144
        %v1146 = vpop.f32.mrb[0].mxu0
        %1147 = vmatprep.mubr.bf16.mxu0 0
        %1148 = vmatmul.mubr.bf16.gmra.mrb[0].mxu0 %v433
        %v1149 = vpop.f32.mrb[0].mxu0
        %v1150 = vadd.f32 %v853, %v1149
        %v1151 = vpop.f32.mrb[0].mxu0
        %v1152 = vpop.f32.mrb[0].mxu0
        %v1153 = vadd.f32 %v856, %v1152
        %v1154 = vpop.f32.mrb[0].mxu0
        %1155 = vmatprep.mubr.bf16.mxu0 0
        %1156 = vmatmul.mubr.bf16.gmra.mrb[0].mxu0 %v434
        %v1157 = vpop.f32.mrb[0].mxu0
        %v1158 = vadd.f32 %v861, %v1157
        %v1159 = vpop.f32.mrb[0].mxu0
        %v1160 = vpop.f32.mrb[0].mxu0
        %v1161 = vadd.f32 %v864, %v1160
        %v1162 = vpop.f32.mrb[0].mxu0
        %1163 = vmatprep.mubr.bf16.mxu0 0
        %1164 = vmatmul.mubr.bf16.gmra.mrb[0].mxu0 %v435
        %v1165 = vpop.f32.mrb[0].mxu0
        %v1166 = vadd.f32 %v869, %v1165
        %v1167 = vpop.f32.mrb[0].mxu0
        %v1168 = vpop.f32.mrb[0].mxu0
        %v1169 = vadd.f32 %v872, %v1168
        %v1170 = vpop.f32.mrb[0].mxu0
        %1171 = vmatprep.mubr.bf16.mxu0 0
        %1172 = vmatmul.mubr.bf16.gmra.mrb[0].mxu0 %v436
        %v1173 = vpop.f32.mrb[0].mxu0
        %v1174 = vadd.f32 %v877, %v1173
        %v1175 = vpop.f32.mrb[0].mxu0
        %v1176 = vpop.f32.mrb[0].mxu0
        %v1177 = vadd.f32 %v880, %v1176
        %v1178 = vpop.f32.mrb[0].mxu0
        %1179 = vmatprep.mubr.bf16.mxu0 0
        %1180 = vmatmul.mubr.bf16.gmra.mrb[0].mxu0 %v437
        %v1181 = vpop.f32.mrb[0].mxu0
        %v1182 = vadd.f32 %v885, %v1181
        %v1183 = vpop.f32.mrb[0].mxu0
        %v1184 = vpop.f32.mrb[0].mxu0
        %v1185 = vadd.f32 %v888, %v1184
        %v1186 = vpop.f32.mrb[0].mxu0
        %1187 = vmatprep.mubr.bf16.mxu0 0
        %1188 = vmatmul.mubr.bf16.gmra.mrb[0].mxu0 %v438
        %v1189 = vpop.f32.mrb[0].mxu0
        %v1190 = vadd.f32 %v893, %v1189
        %v1191 = vpop.f32.mrb[0].mxu0
        %v1192 = vpop.f32.mrb[0].mxu0
        %v1193 = vadd.f32 %v896, %v1192
        %v1194 = vpop.f32.mrb[0].mxu0
        %1195 = vmatprep.mubr.bf16.mxu0 0
        %1196 = vmatmul.mubr.bf16.gmra.mrb[0].mxu0 %v439
        %v1197 = vpop.f32.mrb[0].mxu0
        %v1198 = vadd.f32 %v901, %v1197
        %v1199 = vpop.f32.mrb[0].mxu0
        %v1200 = vpop.f32.mrb[0].mxu0
        %v1201 = vadd.f32 %v904, %v1200
        %v1202 = vpop.f32.mrb[0].mxu0
        %1203 = vmatprep.mubr.bf16.mxu0 0
        %1204 = vmatmul.mubr.bf16.gmra.mrb[0].mxu0 %v440
        %v1205 = vpop.f32.mrb[0].mxu0
        %v1206 = vadd.f32 %v909, %v1205
        %v1207 = vpop.f32.mrb[0].mxu0
        %v1208 = vpop.f32.mrb[0].mxu0
        %v1209 = vadd.f32 %v912, %v1208
        %v1210 = vpop.f32.mrb[0].mxu0
        %1211 = vmatprep.mubr.bf16.mxu0 0
        %1212 = vmatmul.mubr.bf16.gmra.mrb[0].mxu0 %v441
        %v1213 = vpop.f32.mrb[0].mxu0
        %v1214 = vadd.f32 %v917, %v1213
        %v1215 = vpop.f32.mrb[0].mxu0
        %v1216 = vpop.f32.mrb[0].mxu0
        %v1217 = vadd.f32 %v920, %v1216
        %v1218 = vpop.f32.mrb[0].mxu0
        %1219 = vmatprep.mubr.bf16.mxu0 0
        %1220 = vmatmul.mubr.bf16.gmra.mrb[0].mxu0 %v442
        %v1221 = vpop.f32.mrb[0].mxu0
        %v1222 = vadd.f32 %v925, %v1221
        %v1223 = vpop.f32.mrb[0].mxu0
        %v1224 = vpop.f32.mrb[0].mxu0
        %v1225 = vadd.f32 %v928, %v1224
        %v1226 = vpop.f32.mrb[0].mxu0
        %1227 = vmatprep.mubr.bf16.mxu0 0
        %1228 = vmatmul.mubr.bf16.gmra.mrb[0].mxu0 %v443
        %v1229 = vpop.f32.mrb[0].mxu0
        %v1230 = vadd.f32 %v933, %v1229
        %v1231 = vpop.f32.mrb[0].mxu0
        %v1232 = vpop.f32.mrb[0].mxu0
        %v1233 = vadd.f32 %v936, %v1232
        %v1234 = vpop.f32.mrb[0].mxu0
        %1235 = vdwg.mxu0
        %v1236 = vld [vmem:[%s206] sm:$0xe]
        %s1237 = scalar_lea.vmem [#allocation5], 128
        %v1238 = vld [vmem:[%s1237] sm:$0xf]
        %v1239 = vld [vmem:[%s1237 + $0x4] sm:$0xf]
        %v1240 = vld [vmem:[%s1237 + $0x8] sm:$0xf]
        %v1241 = vld [vmem:[%s1237 + $0xc] sm:$0xf]
        %v1242 = vld [vmem:[%s1237 + $0x10] sm:$0xf]
        %v1243 = vld [vmem:[%s1237 + $0x14] sm:$0xf]
        %v1244 = vld [vmem:[%s1237 + $0x18] sm:$0xf]
        %v1245 = vld [vmem:[%s1237 + $0x1c] sm:$0xf]
        %v1246 = vld [vmem:[%s1237 + $0x20] sm:$0xf]
        %v1247 = vld [vmem:[%s1237 + $0x24] sm:$0xf]
        %v1248 = vld [vmem:[%s1237 + $0x28] sm:$0xf]
        %v1249 = vld [vmem:[%s1237 + $0x2c] sm:$0xf]
        %v1250 = vld [vmem:[%s1237 + $0x30] sm:$0xf]
        %v1251 = vld [vmem:[%s1237 + $0x34] sm:$0xf]
        %v1252 = vld [vmem:[%s1237 + $0x38] sm:$0xf]
        %v1253 = vld [vmem:[%s1237 + $0x3c] sm:$0xf]
        %v1255 = vunpack.c.l.b16 %v1236
        %v1256 = vpack.c.b16 %v372, %v1255
        %vm1257 = vcmask 1046528
        %v1258 = vrot.slane %v1256, 1
        %v1259 = vrot.slane %v421, 1
        %v1260 = vsel %vm1257, %v1258, %v1259
        %v1261 = vrot.slane %v422, 1
        %v1262 = vsel %vm1257, %v1259, %v1261
        %v1263 = vrot.slane %v423, 1
        %v1264 = vsel %vm1257, %v1261, %v1263
        %v1265 = vrot.slane %v424, 1
        %v1266 = vsel %vm1257, %v1263, %v1265
        %v1267 = vrot.slane %v425, 1
        %v1268 = vsel %vm1257, %v1265, %v1267
        %v1269 = vrot.slane %v426, 1
        %v1270 = vsel %vm1257, %v1267, %v1269
        %v1271 = vrot.slane %v427, 1
        %v1272 = vsel %vm1257, %v1269, %v1271
        %v1273 = vrot.slane %v428, 1
        %v1274 = vsel %vm1257, %v1271, %v1273
        %v1275 = vrot.slane %v429, 1
        %v1276 = vsel %vm1257, %v1273, %v1275
        %v1277 = vrot.slane %v430, 1
        %v1278 = vsel %vm1257, %v1275, %v1277
        %v1279 = vrot.slane %v431, 1
        %v1280 = vsel %vm1257, %v1277, %v1279
        %v1281 = vrot.slane %v432, 1
        %v1282 = vsel %vm1257, %v1279, %v1281
        %v1283 = vrot.slane %v433, 1
        %v1284 = vsel %vm1257, %v1281, %v1283
        %v1285 = vrot.slane %v434, 1
        %v1286 = vsel %vm1257, %v1283, %v1285
        %v1287 = vrot.slane %v435, 1
        %v1288 = vsel %vm1257, %v1285, %v1287
        %v1289 = vrot.slane %v436, 1
        %v1290 = vsel %vm1257, %v1287, %v1289
        %v1291 = vrot.slane %v437, 1
        %v1292 = vsel %vm1257, %v1289, %v1291
        %v1293 = vrot.slane %v438, 1
        %v1294 = vsel %vm1257, %v1291, %v1293
        %v1295 = vrot.slane %v439, 1
        %v1296 = vsel %vm1257, %v1293, %v1295
        %v1297 = vrot.slane %v440, 1
        %v1298 = vsel %vm1257, %v1295, %v1297
        %v1299 = vrot.slane %v441, 1
        %v1300 = vsel %vm1257, %v1297, %v1299
        %v1301 = vrot.slane %v442, 1
        %v1302 = vsel %vm1257, %v1299, %v1301
        %v1303 = vrot.slane %v443, 1
        %v1304 = vsel %vm1257, %v1301, %v1303
        %v1305 = vrot.slane %v444, 1
        %v1306 = vsel %vm1257, %v1303, %v1305
        %v1347 = vunpack.c.l.b16 %v1238
        %v1348 = vunpack.c.l.b16 %v1239
        %v1349 = vunpack.c.l.b16 %v1240
        %v1350 = vunpack.c.l.b16 %v1241
        %v1351 = vunpack.c.l.b16 %v1242
        %v1352 = vunpack.c.l.b16 %v1243
        %v1353 = vunpack.c.l.b16 %v1244
        %v1354 = vunpack.c.l.b16 %v1245
        %v1355 = vunpack.c.l.b16 %v1246
        %v1356 = vunpack.c.l.b16 %v1247
        %v1357 = vunpack.c.l.b16 %v1248
        %v1358 = vunpack.c.l.b16 %v1249
        %v1359 = vunpack.c.l.b16 %v1250
        %v1360 = vunpack.c.l.b16 %v1251
        %v1361 = vunpack.c.l.b16 %v1252
        %v1362 = vunpack.c.l.b16 %v1253
        %v1363 = vpack.c.b16 %v1348, %v1347
        %v1364 = vpack.c.b16 %v1350, %v1349
        %v1365 = vpack.c.b16 %v1352, %v1351
        %v1366 = vpack.c.b16 %v1354, %v1353
        %v1367 = vpack.c.b16 %v1356, %v1355
        %v1368 = vpack.c.b16 %v1358, %v1357
        %v1369 = vpack.c.b16 %v1360, %v1359
        %v1370 = vpack.c.b16 %v1362, %v1361
        %1379 = vmatprep.subr.bf16.mxu0 0
        %1380 = vmatpush1.bf16.msra.mxu0 %v1363
        %1381 = vmatprep.subr.bf16.mxu0 0
        %1382 = vmatpush1.bf16.msra.mxu0 %v1364
        %1383 = vmatprep.subr.bf16.mxu0 0
        %1384 = vmatpush1.bf16.msra.mxu0 %v1365
        %1385 = vmatprep.subr.bf16.mxu0 0
        %1386 = vmatpush1.bf16.msra.mxu0 %v1366
        %1387 = vmatprep.subr.bf16.mxu0 0
        %1388 = vmatpush1.bf16.msra.mxu0 %v1367
        %1389 = vmatprep.subr.bf16.mxu0 0
        %1390 = vmatpush1.bf16.msra.mxu0 %v1368
        %1391 = vmatprep.subr.bf16.mxu0 0
        %1392 = vmatpush1.bf16.msra.mxu0 %v1369
        %1393 = vmatprep.subr.bf16.mxu0 0
        %1394 = vmatpush1.bf16.msra.mxu0 %v1370
        %1395 = vmatprep.subr.bf16.mxu0 0
        %1396 = vmatpush1.bf16.msra.mxu0 0
        %1397 = vmatprep.subr.bf16.mxu0 0
        %1398 = vmatpush1.bf16.msra.mxu0 0
        %1399 = vmatprep.subr.bf16.mxu0 0
        %1400 = vmatpush1.bf16.msra.mxu0 0
        %1401 = vmatprep.subr.bf16.mxu0 0
        %1402 = vmatpush1.bf16.msra.mxu0 0
        %1403 = vmatprep.subr.bf16.mxu0 0
        %1404 = vmatpush1.bf16.msra.mxu0 0
        %1405 = vmatprep.subr.bf16.mxu0 0
        %1406 = vmatpush1.bf16.msra.mxu0 0
        %1407 = vmatprep.subr.bf16.mxu0 0
        %1408 = vmatpush1.bf16.msra.mxu0 0
        %1409 = vmatprep.subr.bf16.mxu0 0
        %1410 = vmatpush1.bf16.msra.mxu0 0
        %1411 = vmatprep.mubr.bf16.mxu0 0
        %1412 = vmatmul.mubr.bf16.gmra.mrb[0].mxu0 %v1260
        %v1413 = vpop.f32.mrb[0].mxu0
        %v1414 = vadd.f32 0.0, %v1413
        %v1415 = vpop.f32.mrb[0].mxu0
        %v1416 = vpop.f32.mrb[0].mxu0
        %v1417 = vadd.f32 0.0, %v1416
        %v1418 = vpop.f32.mrb[0].mxu0
        %1419 = vmatprep.mubr.bf16.mxu0 0
        %1420 = vmatmul.mubr.bf16.gmra.mrb[0].mxu0 %v1262
        %v1421 = vpop.f32.mrb[0].mxu0
        %v1422 = vadd.f32 0.0, %v1421
        %v1423 = vpop.f32.mrb[0].mxu0
        %v1424 = vpop.f32.mrb[0].mxu0
        %v1425 = vadd.f32 0.0, %v1424
        %v1426 = vpop.f32.mrb[0].mxu0
        %1427 = vmatprep.mubr.bf16.mxu0 0
        %1428 = vmatmul.mubr.bf16.gmra.mrb[0].mxu0 %v1264
        %v1429 = vpop.f32.mrb[0].mxu0
        %v1430 = vadd.f32 0.0, %v1429
        %v1431 = vpop.f32.mrb[0].mxu0
        %v1432 = vpop.f32.mrb[0].mxu0
        %v1433 = vadd.f32 0.0, %v1432
        %v1434 = vpop.f32.mrb[0].mxu0
        %1435 = vmatprep.mubr.bf16.mxu0 0
        %1436 = vmatmul.mubr.bf16.gmra.mrb[0].mxu0 %v1266
        %v1437 = vpop.f32.mrb[0].mxu0
        %v1438 = vadd.f32 0.0, %v1437
        %v1439 = vpop.f32.mrb[0].mxu0
        %v1440 = vpop.f32.mrb[0].mxu0
        %v1441 = vadd.f32 0.0, %v1440
        %v1442 = vpop.f32.mrb[0].mxu0
        %1443 = vmatprep.mubr.bf16.mxu0 0
        %1444 = vmatmul.mubr.bf16.gmra.mrb[0].mxu0 %v1268
        %v1445 = vpop.f32.mrb[0].mxu0
        %v1446 = vadd.f32 0.0, %v1445
        %v1447 = vpop.f32.mrb[0].mxu0
        %v1448 = vpop.f32.mrb[0].mxu0
        %v1449 = vadd.f32 0.0, %v1448
        %v1450 = vpop.f32.mrb[0].mxu0
        %1451 = vmatprep.mubr.bf16.mxu0 0
        %1452 = vmatmul.mubr.bf16.gmra.mrb[0].mxu0 %v1270
        %v1453 = vpop.f32.mrb[0].mxu0
        %v1454 = vadd.f32 0.0, %v1453
        %v1455 = vpop.f32.mrb[0].mxu0
        %v1456 = vpop.f32.mrb[0].mxu0
        %v1457 = vadd.f32 0.0, %v1456
        %v1458 = vpop.f32.mrb[0].mxu0
        %1459 = vmatprep.mubr.bf16.mxu0 0
        %1460 = vmatmul.mubr.bf16.gmra.mrb[0].mxu0 %v1272
        %v1461 = vpop.f32.mrb[0].mxu0
        %v1462 = vadd.f32 0.0, %v1461
        %v1463 = vpop.f32.mrb[0].mxu0
        %v1464 = vpop.f32.mrb[0].mxu0
        %v1465 = vadd.f32 0.0, %v1464
        %v1466 = vpop.f32.mrb[0].mxu0
        %1467 = vmatprep.mubr.bf16.mxu0 0
        %1468 = vmatmul.mubr.bf16.gmra.mrb[0].mxu0 %v1274
        %v1469 = vpop.f32.mrb[0].mxu0
        %v1470 = vadd.f32 0.0, %v1469
        %v1471 = vpop.f32.mrb[0].mxu0
        %v1472 = vpop.f32.mrb[0].mxu0
        %v1473 = vadd.f32 0.0, %v1472
        %v1474 = vpop.f32.mrb[0].mxu0
        %1475 = vmatprep.mubr.bf16.mxu0 0
        %1476 = vmatmul.mubr.bf16.gmra.mrb[0].mxu0 %v1276
        %v1477 = vpop.f32.mrb[0].mxu0
        %v1478 = vadd.f32 0.0, %v1477
        %v1479 = vpop.f32.mrb[0].mxu0
        %v1480 = vpop.f32.mrb[0].mxu0
        %v1481 = vadd.f32 0.0, %v1480
        %v1482 = vpop.f32.mrb[0].mxu0
        %1483 = vmatprep.mubr.bf16.mxu0 0
        %1484 = vmatmul.mubr.bf16.gmra.mrb[0].mxu0 %v1278
        %v1485 = vpop.f32.mrb[0].mxu0
        %v1486 = vadd.f32 0.0, %v1485
        %v1487 = vpop.f32.mrb[0].mxu0
        %v1488 = vpop.f32.mrb[0].mxu0
        %v1489 = vadd.f32 0.0, %v1488
        %v1490 = vpop.f32.mrb[0].mxu0
        %1491 = vmatprep.mubr.bf16.mxu0 0
        %1492 = vmatmul.mubr.bf16.gmra.mrb[0].mxu0 %v1280
        %v1493 = vpop.f32.mrb[0].mxu0
        %v1494 = vadd.f32 0.0, %v1493
        %v1495 = vpop.f32.mrb[0].mxu0
        %v1496 = vpop.f32.mrb[0].mxu0
        %v1497 = vadd.f32 0.0, %v1496
        %v1498 = vpop.f32.mrb[0].mxu0
        %1499 = vmatprep.mubr.bf16.mxu0 0
        %1500 = vmatmul.mubr.bf16.gmra.mrb[0].mxu0 %v1282
        %v1501 = vpop.f32.mrb[0].mxu0
        %v1502 = vadd.f32 0.0, %v1501
        %v1503 = vpop.f32.mrb[0].mxu0
        %v1504 = vpop.f32.mrb[0].mxu0
        %v1505 = vadd.f32 0.0, %v1504
        %v1506 = vpop.f32.mrb[0].mxu0
        %1507 = vmatprep.mubr.bf16.mxu0 0
        %1508 = vmatmul.mubr.bf16.gmra.mrb[0].mxu0 %v1284
        %v1509 = vpop.f32.mrb[0].mxu0
        %v1510 = vadd.f32 0.0, %v1509
        %v1511 = vpop.f32.mrb[0].mxu0
        %v1512 = vpop.f32.mrb[0].mxu0
        %v1513 = vadd.f32 0.0, %v1512
        %v1514 = vpop.f32.mrb[0].mxu0
        %1515 = vmatprep.mubr.bf16.mxu0 0
        %1516 = vmatmul.mubr.bf16.gmra.mrb[0].mxu0 %v1286
        %v1517 = vpop.f32.mrb[0].mxu0
        %v1518 = vadd.f32 0.0, %v1517
        %v1519 = vpop.f32.mrb[0].mxu0
        %v1520 = vpop.f32.mrb[0].mxu0
        %v1521 = vadd.f32 0.0, %v1520
        %v1522 = vpop.f32.mrb[0].mxu0
        %1523 = vmatprep.mubr.bf16.mxu0 0
        %1524 = vmatmul.mubr.bf16.gmra.mrb[0].mxu0 %v1288
        %v1525 = vpop.f32.mrb[0].mxu0
        %v1526 = vadd.f32 0.0, %v1525
        %v1527 = vpop.f32.mrb[0].mxu0
        %v1528 = vpop.f32.mrb[0].mxu0
        %v1529 = vadd.f32 0.0, %v1528
        %v1530 = vpop.f32.mrb[0].mxu0
        %1531 = vmatprep.mubr.bf16.mxu0 0
        %1532 = vmatmul.mubr.bf16.gmra.mrb[0].mxu0 %v1290
        %v1533 = vpop.f32.mrb[0].mxu0
        %v1534 = vadd.f32 0.0, %v1533
        %v1535 = vpop.f32.mrb[0].mxu0
        %v1536 = vpop.f32.mrb[0].mxu0
        %v1537 = vadd.f32 0.0, %v1536
        %v1538 = vpop.f32.mrb[0].mxu0
        %1539 = vmatprep.mubr.bf16.mxu0 0
        %1540 = vmatmul.mubr.bf16.gmra.mrb[0].mxu0 %v1292
        %v1541 = vpop.f32.mrb[0].mxu0
        %v1542 = vadd.f32 0.0, %v1541
        %v1543 = vpop.f32.mrb[0].mxu0
        %v1544 = vpop.f32.mrb[0].mxu0
        %v1545 = vadd.f32 0.0, %v1544
        %v1546 = vpop.f32.mrb[0].mxu0
        %1547 = vmatprep.mubr.bf16.mxu0 0
        %1548 = vmatmul.mubr.bf16.gmra.mrb[0].mxu0 %v1294
        %v1549 = vpop.f32.mrb[0].mxu0
        %v1550 = vadd.f32 0.0, %v1549
        %v1551 = vpop.f32.mrb[0].mxu0
        %v1552 = vpop.f32.mrb[0].mxu0
        %v1553 = vadd.f32 0.0, %v1552
        %v1554 = vpop.f32.mrb[0].mxu0
        %1555 = vmatprep.mubr.bf16.mxu0 0
        %1556 = vmatmul.mubr.bf16.gmra.mrb[0].mxu0 %v1296
        %v1557 = vpop.f32.mrb[0].mxu0
        %v1558 = vadd.f32 0.0, %v1557
        %v1559 = vpop.f32.mrb[0].mxu0
        %v1560 = vpop.f32.mrb[0].mxu0
        %v1561 = vadd.f32 0.0, %v1560
        %v1562 = vpop.f32.mrb[0].mxu0
        %1563 = vmatprep.mubr.bf16.mxu0 0
        %1564 = vmatmul.mubr.bf16.gmra.mrb[0].mxu0 %v1298
        %v1565 = vpop.f32.mrb[0].mxu0
        %v1566 = vadd.f32 0.0, %v1565
        %v1567 = vpop.f32.mrb[0].mxu0
        %v1568 = vpop.f32.mrb[0].mxu0
        %v1569 = vadd.f32 0.0, %v1568
        %v1570 = vpop.f32.mrb[0].mxu0
        %1571 = vmatprep.mubr.bf16.mxu0 0
        %1572 = vmatmul.mubr.bf16.gmra.mrb[0].mxu0 %v1300
        %v1573 = vpop.f32.mrb[0].mxu0
        %v1574 = vadd.f32 0.0, %v1573
        %v1575 = vpop.f32.mrb[0].mxu0
        %v1576 = vpop.f32.mrb[0].mxu0
        %v1577 = vadd.f32 0.0, %v1576
        %v1578 = vpop.f32.mrb[0].mxu0
        %1579 = vmatprep.mubr.bf16.mxu0 0
        %1580 = vmatmul.mubr.bf16.gmra.mrb[0].mxu0 %v1302
        %v1581 = vpop.f32.mrb[0].mxu0
        %v1582 = vadd.f32 0.0, %v1581
        %v1583 = vpop.f32.mrb[0].mxu0
        %v1584 = vpop.f32.mrb[0].mxu0
        %v1585 = vadd.f32 0.0, %v1584
        %v1586 = vpop.f32.mrb[0].mxu0
        %1587 = vmatprep.mubr.bf16.mxu0 0
        %1588 = vmatmul.mubr.bf16.gmra.mrb[0].mxu0 %v1304
        %v1589 = vpop.f32.mrb[0].mxu0
        %v1590 = vadd.f32 0.0, %v1589
        %v1591 = vpop.f32.mrb[0].mxu0
        %v1592 = vpop.f32.mrb[0].mxu0
        %v1593 = vadd.f32 0.0, %v1592
        %v1594 = vpop.f32.mrb[0].mxu0
        %1595 = vmatprep.mubr.bf16.mxu0 0
        %1596 = vmatmul.mubr.bf16.gmra.mrb[0].mxu0 %v1306
        %v1597 = vpop.f32.mrb[0].mxu0
        %v1598 = vadd.f32 0.0, %v1597
        %v1599 = vpop.f32.mrb[0].mxu0
        %v1600 = vpop.f32.mrb[0].mxu0
        %v1601 = vadd.f32 0.0, %v1600
        %v1602 = vpop.f32.mrb[0].mxu0
        %1603 = vdwg.mxu0
        %v1604 = vadd.f32 %v1046, %v1414
        %v1605 = vadd.f32 %v1049, %v1417
        %v1606 = vadd.f32 %v1054, %v1422
        %v1607 = vadd.f32 %v1057, %v1425
        %v1608 = vadd.f32 %v1062, %v1430
        %v1609 = vadd.f32 %v1065, %v1433
        %v1610 = vadd.f32 %v1070, %v1438
        %v1611 = vadd.f32 %v1073, %v1441
        %v1612 = vadd.f32 %v1078, %v1446
        %v1613 = vadd.f32 %v1081, %v1449
        %v1614 = vadd.f32 %v1086, %v1454
        %v1615 = vadd.f32 %v1089, %v1457
        %v1616 = vadd.f32 %v1094, %v1462
        %v1617 = vadd.f32 %v1097, %v1465
        %v1618 = vadd.f32 %v1102, %v1470
        %v1619 = vadd.f32 %v1105, %v1473
        %v1620 = vadd.f32 %v1110, %v1478
        %v1621 = vadd.f32 %v1113, %v1481
        %v1622 = vadd.f32 %v1118, %v1486
        %v1623 = vadd.f32 %v1121, %v1489
        %v1624 = vadd.f32 %v1126, %v1494
        %v1625 = vadd.f32 %v1129, %v1497
        %v1626 = vadd.f32 %v1134, %v1502
        %v1627 = vadd.f32 %v1137, %v1505
        %v1628 = vadd.f32 %v1142, %v1510
        %v1629 = vadd.f32 %v1145, %v1513
        %v1630 = vadd.f32 %v1150, %v1518
        %v1631 = vadd.f32 %v1153, %v1521
        %v1632 = vadd.f32 %v1158, %v1526
        %v1633 = vadd.f32 %v1161, %v1529
        %v1634 = vadd.f32 %v1166, %v1534
        %v1635 = vadd.f32 %v1169, %v1537
        %v1636 = vadd.f32 %v1174, %v1542
        %v1637 = vadd.f32 %v1177, %v1545
        %v1638 = vadd.f32 %v1182, %v1550
        %v1639 = vadd.f32 %v1185, %v1553
        %v1640 = vadd.f32 %v1190, %v1558
        %v1641 = vadd.f32 %v1193, %v1561
        %v1642 = vadd.f32 %v1198, %v1566
        %v1643 = vadd.f32 %v1201, %v1569
        %v1644 = vadd.f32 %v1206, %v1574
        %v1645 = vadd.f32 %v1209, %v1577
        %v1646 = vadd.f32 %v1214, %v1582
        %v1647 = vadd.f32 %v1217, %v1585
        %v1648 = vadd.f32 %v1222, %v1590
        %v1649 = vadd.f32 %v1225, %v1593
        %v1650 = vadd.f32 %v1230, %v1598
        %v1651 = vadd.f32 %v1233, %v1601
        %v1652 = vld [vmem:[%s206 + $0xc] sm:$0xf]
        %v1653 = vld [vmem:[%s206 + $0x10] sm:$0xf]
        %v1654 = vld [vmem:[%s206 + $0x14] sm:$0xf]
        %v1655 = vld [vmem:[%s206 + $0x18] sm:$0xf]
        %v1656 = vld [vmem:[%s206 + $0x1c] sm:$0xf]
        %v1657 = vld [vmem:[%s206 + $0x20] sm:$0xf]
        %v1658 = vld [vmem:[%s206 + $0x24] sm:$0xf]
        %v1659 = vld [vmem:[%s206 + $0x28] sm:$0xf]
        %v1660 = vld [vmem:[%s206 + $0x2c] sm:$0xf]
        %v1661 = vld [vmem:[%s206 + $0x30] sm:$0xf]
        %v1662 = vld [vmem:[%s206 + $0x34] sm:$0xf]
        %v1663 = vld [vmem:[%s206 + $0x38] sm:$0xf]
        %v1664 = vld [vmem:[%s206 + $0x3c] sm:$0xf]
        %v1665 = vld [vmem:[%s206 + $0x40] sm:$0xf]
        %v1666 = vld [vmem:[%s206 + $0x44] sm:$0xf]
        %v1667 = vld [vmem:[%s206 + $0x48] sm:$0xf]
        %v1668 = vld [vmem:[%s206 + $0x4c] sm:$0xf]
        %v1669 = vld [vmem:[%s206 + $0x50] sm:$0xf]
        %v1670 = vld [vmem:[%s206 + $0x54] sm:$0xf]
        %v1671 = vld [vmem:[%s206 + $0x58] sm:$0xf]
        %v1672 = vld [vmem:[%s206 + $0x5c] sm:$0xf]
        %v1673 = vld [vmem:[%s206 + $0x60] sm:$0xf]
        %v1674 = vld [vmem:[%s206 + $0x64] sm:$0xf]
        %v1675 = vld [vmem:[%s206 + $0x68] sm:$0xf]
        %v1676 = vld [vmem:[%s206 + $0x6c] sm:$0xf]
        %v1677 = vld [vmem:[%s206 + $0x70] sm:$0xf]
        %v1678 = vld [vmem:[%s206 + $0x74] sm:$0xf]
        %v1679 = vld [vmem:[%s206 + $0x78] sm:$0xf]
        %v1680 = vld [vmem:[%s206 + $0x7c] sm:$0xf]
        %v1681 = vld [vmem:[%s206 + $0x80] sm:$0xf]
        %v1682 = vld [vmem:[%s206 + $0x84] sm:$0xf]
        %v1683 = vld [vmem:[%s206 + $0x88] sm:$0xf]
        %v1684 = vld [vmem:[%s206 + $0x8c] sm:$0xf]
        %v1685 = vld [vmem:[%s206 + $0x90] sm:$0xf]
        %v1686 = vld [vmem:[%s206 + $0x94] sm:$0xf]
        %v1687 = vld [vmem:[%s206 + $0x98] sm:$0xf]
        %v1688 = vld [vmem:[%s206 + $0x9c] sm:$0xf]
        %v1689 = vld [vmem:[%s206 + $0xa0] sm:$0xf]
        %v1690 = vld [vmem:[%s206 + $0xa4] sm:$0xf]
        %v1691 = vld [vmem:[%s206 + $0xa8] sm:$0xf]
        %v1692 = vld [vmem:[%s206 + $0xac] sm:$0xf]
        %v1693 = vld [vmem:[%s206 + $0xb0] sm:$0xf]
        %v1694 = vld [vmem:[%s206 + $0xb4] sm:$0xf]
        %v1695 = vld [vmem:[%s206 + $0xb8] sm:$0xf]
        %v1696 = vld [vmem:[%s206 + $0xbc] sm:$0xf]
        %v1697 = vld [vmem:[%s206 + $0xc0] sm:$0xf]
        %v1698 = vld [vmem:[%s206 + $0xc4] sm:$0xf]
        %v1699 = vld [vmem:[%s206 + $0xc8] sm:$0xf]
        %s1700 = scalar_lea.vmem [#allocation5], 192
        %v1701 = vld [vmem:[%s1700] sm:$0xf]
        %v1702 = vld [vmem:[%s1700 + $0x4] sm:$0xf]
        %v1703 = vld [vmem:[%s1700 + $0x8] sm:$0xf]
        %v1704 = vld [vmem:[%s1700 + $0xc] sm:$0xf]
        %v1705 = vld [vmem:[%s1700 + $0x10] sm:$0xf]
        %v1706 = vld [vmem:[%s1700 + $0x14] sm:$0xf]
        %v1707 = vld [vmem:[%s1700 + $0x18] sm:$0xf]
        %v1708 = vld [vmem:[%s1700 + $0x1c] sm:$0xf]
        %v1709 = vld [vmem:[%s1700 + $0x20] sm:$0xf]
        %v1710 = vld [vmem:[%s1700 + $0x24] sm:$0xf]
        %v1711 = vld [vmem:[%s1700 + $0x28] sm:$0xf]
        %v1712 = vld [vmem:[%s1700 + $0x2c] sm:$0xf]
        %v1713 = vld [vmem:[%s1700 + $0x30] sm:$0xf]
        %v1714 = vld [vmem:[%s1700 + $0x34] sm:$0xf]
        %v1715 = vld [vmem:[%s1700 + $0x38] sm:$0xf]
        %v1716 = vld [vmem:[%s1700 + $0x3c] sm:$0xf]
        %v1765 = vunpack.c.l.b16 %v1652
        %v1766 = vunpack.c.l.b16 %v1653
        %v1767 = vunpack.c.l.b16 %v1654
        %v1768 = vunpack.c.l.b16 %v1655
        %v1769 = vunpack.c.l.b16 %v1656
        %v1770 = vunpack.c.l.b16 %v1657
        %v1771 = vunpack.c.l.b16 %v1658
        %v1772 = vunpack.c.l.b16 %v1659
        %v1773 = vunpack.c.l.b16 %v1660
        %v1774 = vunpack.c.l.b16 %v1661
        %v1775 = vunpack.c.l.b16 %v1662
        %v1776 = vunpack.c.l.b16 %v1663
        %v1777 = vunpack.c.l.b16 %v1664
        %v1778 = vunpack.c.l.b16 %v1665
        %v1779 = vunpack.c.l.b16 %v1666
        %v1780 = vunpack.c.l.b16 %v1667
        %v1781 = vunpack.c.l.b16 %v1668
        %v1782 = vunpack.c.l.b16 %v1669
        %v1783 = vunpack.c.l.b16 %v1670
        %v1784 = vunpack.c.l.b16 %v1671
        %v1785 = vunpack.c.l.b16 %v1672
        %v1786 = vunpack.c.l.b16 %v1673
        %v1787 = vunpack.c.l.b16 %v1674
        %v1788 = vunpack.c.l.b16 %v1675
        %v1789 = vunpack.c.l.b16 %v1676
        %v1790 = vunpack.c.l.b16 %v1677
        %v1791 = vunpack.c.l.b16 %v1678
        %v1792 = vunpack.c.l.b16 %v1679
        %v1793 = vunpack.c.l.b16 %v1680
        %v1794 = vunpack.c.l.b16 %v1681
        %v1795 = vunpack.c.l.b16 %v1682
        %v1796 = vunpack.c.l.b16 %v1683
        %v1797 = vunpack.c.l.b16 %v1684
        %v1798 = vunpack.c.l.b16 %v1685
        %v1799 = vunpack.c.l.b16 %v1686
        %v1800 = vunpack.c.l.b16 %v1687
        %v1801 = vunpack.c.l.b16 %v1688
        %v1802 = vunpack.c.l.b16 %v1689
        %v1803 = vunpack.c.l.b16 %v1690
        %v1804 = vunpack.c.l.b16 %v1691
        %v1805 = vunpack.c.l.b16 %v1692
        %v1806 = vunpack.c.l.b16 %v1693
        %v1807 = vunpack.c.l.b16 %v1694
        %v1808 = vunpack.c.l.b16 %v1695
        %v1809 = vunpack.c.l.b16 %v1696
        %v1810 = vunpack.c.l.b16 %v1697
        %v1811 = vunpack.c.l.b16 %v1698
        %v1812 = vunpack.c.l.b16 %v1699
        %v1813 = vpack.c.b16 %v1766, %v1765
        %v1814 = vpack.c.b16 %v1768, %v1767
        %v1815 = vpack.c.b16 %v1770, %v1769
        %v1816 = vpack.c.b16 %v1772, %v1771
        %v1817 = vpack.c.b16 %v1774, %v1773
        %v1818 = vpack.c.b16 %v1776, %v1775
        %v1819 = vpack.c.b16 %v1778, %v1777
        %v1820 = vpack.c.b16 %v1780, %v1779
        %v1821 = vpack.c.b16 %v1782, %v1781
        %v1822 = vpack.c.b16 %v1784, %v1783
        %v1823 = vpack.c.b16 %v1786, %v1785
        %v1824 = vpack.c.b16 %v1788, %v1787
        %v1825 = vpack.c.b16 %v1790, %v1789
        %v1826 = vpack.c.b16 %v1792, %v1791
        %v1827 = vpack.c.b16 %v1794, %v1793
        %v1828 = vpack.c.b16 %v1796, %v1795
        %v1829 = vpack.c.b16 %v1798, %v1797
        %v1830 = vpack.c.b16 %v1800, %v1799
        %v1831 = vpack.c.b16 %v1802, %v1801
        %v1832 = vpack.c.b16 %v1804, %v1803
        %v1833 = vpack.c.b16 %v1806, %v1805
        %v1834 = vpack.c.b16 %v1808, %v1807
        %v1835 = vpack.c.b16 %v1810, %v1809
        %v1836 = vpack.c.b16 %v1812, %v1811
        %v1877 = vunpack.c.l.b16 %v1701
        %v1878 = vunpack.c.l.b16 %v1702
        %v1879 = vunpack.c.l.b16 %v1703
        %v1880 = vunpack.c.l.b16 %v1704
        %v1881 = vunpack.c.l.b16 %v1705
        %v1882 = vunpack.c.l.b16 %v1706
        %v1883 = vunpack.c.l.b16 %v1707
        %v1884 = vunpack.c.l.b16 %v1708
        %v1885 = vunpack.c.l.b16 %v1709
        %v1886 = vunpack.c.l.b16 %v1710
        %v1887 = vunpack.c.l.b16 %v1711
        %v1888 = vunpack.c.l.b16 %v1712
        %v1889 = vunpack.c.l.b16 %v1713
        %v1890 = vunpack.c.l.b16 %v1714
        %v1891 = vunpack.c.l.b16 %v1715
        %v1892 = vunpack.c.l.b16 %v1716
        %v1893 = vpack.c.b16 %v1878, %v1877
        %v1894 = vpack.c.b16 %v1880, %v1879
        %v1895 = vpack.c.b16 %v1882, %v1881
        %v1896 = vpack.c.b16 %v1884, %v1883
        %v1897 = vpack.c.b16 %v1886, %v1885
        %v1898 = vpack.c.b16 %v1888, %v1887
        %v1899 = vpack.c.b16 %v1890, %v1889
        %v1900 = vpack.c.b16 %v1892, %v1891
        %1909 = vmatprep.subr.bf16.mxu0 0
        %1910 = vmatpush1.bf16.msra.mxu0 %v1893
        %1911 = vmatprep.subr.bf16.mxu0 0
        %1912 = vmatpush1.bf16.msra.mxu0 %v1894
        %1913 = vmatprep.subr.bf16.mxu0 0
        %1914 = vmatpush1.bf16.msra.mxu0 %v1895
        %1915 = vmatprep.subr.bf16.mxu0 0
        %1916 = vmatpush1.bf16.msra.mxu0 %v1896
        %1917 = vmatprep.subr.bf16.mxu0 0
        %1918 = vmatpush1.bf16.msra.mxu0 %v1897
        %1919 = vmatprep.subr.bf16.mxu0 0
        %1920 = vmatpush1.bf16.msra.mxu0 %v1898
        %1921 = vmatprep.subr.bf16.mxu0 0
        %1922 = vmatpush1.bf16.msra.mxu0 %v1899
        %1923 = vmatprep.subr.bf16.mxu0 0
        %1924 = vmatpush1.bf16.msra.mxu0 %v1900
        %1925 = vmatprep.subr.bf16.mxu0 0
        %1926 = vmatpush1.bf16.msra.mxu0 0
        %1927 = vmatprep.subr.bf16.mxu0 0
        %1928 = vmatpush1.bf16.msra.mxu0 0
        %1929 = vmatprep.subr.bf16.mxu0 0
        %1930 = vmatpush1.bf16.msra.mxu0 0
        %1931 = vmatprep.subr.bf16.mxu0 0
        %1932 = vmatpush1.bf16.msra.mxu0 0
        %1933 = vmatprep.subr.bf16.mxu0 0
        %1934 = vmatpush1.bf16.msra.mxu0 0
        %1935 = vmatprep.subr.bf16.mxu0 0
        %1936 = vmatpush1.bf16.msra.mxu0 0
        %1937 = vmatprep.subr.bf16.mxu0 0
        %1938 = vmatpush1.bf16.msra.mxu0 0
        %1939 = vmatprep.subr.bf16.mxu0 0
        %1940 = vmatpush1.bf16.msra.mxu0 0
        %1941 = vmatprep.mubr.bf16.mxu0 0
        %1942 = vmatmul.mubr.bf16.gmra.mrb[0].mxu0 %v1813
        %v1943 = vpop.f32.mrb[0].mxu0
        %v1944 = vadd.f32 0.0, %v1943
        %v1945 = vpop.f32.mrb[0].mxu0
        %v1946 = vpop.f32.mrb[0].mxu0
        %v1947 = vadd.f32 0.0, %v1946
        %v1948 = vpop.f32.mrb[0].mxu0
        %1949 = vmatprep.mubr.bf16.mxu0 0
        %1950 = vmatmul.mubr.bf16.gmra.mrb[0].mxu0 %v1814
        %v1951 = vpop.f32.mrb[0].mxu0
        %v1952 = vadd.f32 0.0, %v1951
        %v1953 = vpop.f32.mrb[0].mxu0
        %v1954 = vpop.f32.mrb[0].mxu0
        %v1955 = vadd.f32 0.0, %v1954
        %v1956 = vpop.f32.mrb[0].mxu0
        %1957 = vmatprep.mubr.bf16.mxu0 0
        %1958 = vmatmul.mubr.bf16.gmra.mrb[0].mxu0 %v1815
        %v1959 = vpop.f32.mrb[0].mxu0
        %v1960 = vadd.f32 0.0, %v1959
        %v1961 = vpop.f32.mrb[0].mxu0
        %v1962 = vpop.f32.mrb[0].mxu0
        %v1963 = vadd.f32 0.0, %v1962
        %v1964 = vpop.f32.mrb[0].mxu0
        %1965 = vmatprep.mubr.bf16.mxu0 0
        %1966 = vmatmul.mubr.bf16.gmra.mrb[0].mxu0 %v1816
        %v1967 = vpop.f32.mrb[0].mxu0
        %v1968 = vadd.f32 0.0, %v1967
        %v1969 = vpop.f32.mrb[0].mxu0
        %v1970 = vpop.f32.mrb[0].mxu0
        %v1971 = vadd.f32 0.0, %v1970
        %v1972 = vpop.f32.mrb[0].mxu0
        %1973 = vmatprep.mubr.bf16.mxu0 0
        %1974 = vmatmul.mubr.bf16.gmra.mrb[0].mxu0 %v1817
        %v1975 = vpop.f32.mrb[0].mxu0
        %v1976 = vadd.f32 0.0, %v1975
        %v1977 = vpop.f32.mrb[0].mxu0
        %v1978 = vpop.f32.mrb[0].mxu0
        %v1979 = vadd.f32 0.0, %v1978
        %v1980 = vpop.f32.mrb[0].mxu0
        %1981 = vmatprep.mubr.bf16.mxu0 0
        %1982 = vmatmul.mubr.bf16.gmra.mrb[0].mxu0 %v1818
        %v1983 = vpop.f32.mrb[0].mxu0
        %v1984 = vadd.f32 0.0, %v1983
        %v1985 = vpop.f32.mrb[0].mxu0
        %v1986 = vpop.f32.mrb[0].mxu0
        %v1987 = vadd.f32 0.0, %v1986
        %v1988 = vpop.f32.mrb[0].mxu0
        %1989 = vmatprep.mubr.bf16.mxu0 0
        %1990 = vmatmul.mubr.bf16.gmra.mrb[0].mxu0 %v1819
        %v1991 = vpop.f32.mrb[0].mxu0
        %v1992 = vadd.f32 0.0, %v1991
        %v1993 = vpop.f32.mrb[0].mxu0
        %v1994 = vpop.f32.mrb[0].mxu0
        %v1995 = vadd.f32 0.0, %v1994
        %v1996 = vpop.f32.mrb[0].mxu0
        %1997 = vmatprep.mubr.bf16.mxu0 0
        %1998 = vmatmul.mubr.bf16.gmra.mrb[0].mxu0 %v1820
        %v1999 = vpop.f32.mrb[0].mxu0
        %v2000 = vadd.f32 0.0, %v1999
        %v2001 = vpop.f32.mrb[0].mxu0
        %v2002 = vpop.f32.mrb[0].mxu0
        %v2003 = vadd.f32 0.0, %v2002
        %v2004 = vpop.f32.mrb[0].mxu0
        %2005 = vmatprep.mubr.bf16.mxu0 0
        %2006 = vmatmul.mubr.bf16.gmra.mrb[0].mxu0 %v1821
        %v2007 = vpop.f32.mrb[0].mxu0
        %v2008 = vadd.f32 0.0, %v2007
        %v2009 = vpop.f32.mrb[0].mxu0
        %v2010 = vpop.f32.mrb[0].mxu0
        %v2011 = vadd.f32 0.0, %v2010
        %v2012 = vpop.f32.mrb[0].mxu0
        %2013 = vmatprep.mubr.bf16.mxu0 0
        %2014 = vmatmul.mubr.bf16.gmra.mrb[0].mxu0 %v1822
        %v2015 = vpop.f32.mrb[0].mxu0
        %v2016 = vadd.f32 0.0, %v2015
        %v2017 = vpop.f32.mrb[0].mxu0
        %v2018 = vpop.f32.mrb[0].mxu0
        %v2019 = vadd.f32 0.0, %v2018
        %v2020 = vpop.f32.mrb[0].mxu0
        %2021 = vmatprep.mubr.bf16.mxu0 0
        %2022 = vmatmul.mubr.bf16.gmra.mrb[0].mxu0 %v1823
        %v2023 = vpop.f32.mrb[0].mxu0
        %v2024 = vadd.f32 0.0, %v2023
        %v2025 = vpop.f32.mrb[0].mxu0
        %v2026 = vpop.f32.mrb[0].mxu0
        %v2027 = vadd.f32 0.0, %v2026
        %v2028 = vpop.f32.mrb[0].mxu0
        %2029 = vmatprep.mubr.bf16.mxu0 0
        %2030 = vmatmul.mubr.bf16.gmra.mrb[0].mxu0 %v1824
        %v2031 = vpop.f32.mrb[0].mxu0
        %v2032 = vadd.f32 0.0, %v2031
        %v2033 = vpop.f32.mrb[0].mxu0
        %v2034 = vpop.f32.mrb[0].mxu0
        %v2035 = vadd.f32 0.0, %v2034
        %v2036 = vpop.f32.mrb[0].mxu0
        %2037 = vmatprep.mubr.bf16.mxu0 0
        %2038 = vmatmul.mubr.bf16.gmra.mrb[0].mxu0 %v1825
        %v2039 = vpop.f32.mrb[0].mxu0
        %v2040 = vadd.f32 0.0, %v2039
        %v2041 = vpop.f32.mrb[0].mxu0
        %v2042 = vpop.f32.mrb[0].mxu0
        %v2043 = vadd.f32 0.0, %v2042
        %v2044 = vpop.f32.mrb[0].mxu0
        %2045 = vmatprep.mubr.bf16.mxu0 0
        %2046 = vmatmul.mubr.bf16.gmra.mrb[0].mxu0 %v1826
        %v2047 = vpop.f32.mrb[0].mxu0
        %v2048 = vadd.f32 0.0, %v2047
        %v2049 = vpop.f32.mrb[0].mxu0
        %v2050 = vpop.f32.mrb[0].mxu0
        %v2051 = vadd.f32 0.0, %v2050
        %v2052 = vpop.f32.mrb[0].mxu0
        %2053 = vmatprep.mubr.bf16.mxu0 0
        %2054 = vmatmul.mubr.bf16.gmra.mrb[0].mxu0 %v1827
        %v2055 = vpop.f32.mrb[0].mxu0
        %v2056 = vadd.f32 0.0, %v2055
        %v2057 = vpop.f32.mrb[0].mxu0
        %v2058 = vpop.f32.mrb[0].mxu0
        %v2059 = vadd.f32 0.0, %v2058
        %v2060 = vpop.f32.mrb[0].mxu0
        %2061 = vmatprep.mubr.bf16.mxu0 0
        %2062 = vmatmul.mubr.bf16.gmra.mrb[0].mxu0 %v1828
        %v2063 = vpop.f32.mrb[0].mxu0
        %v2064 = vadd.f32 0.0, %v2063
        %v2065 = vpop.f32.mrb[0].mxu0
        %v2066 = vpop.f32.mrb[0].mxu0
        %v2067 = vadd.f32 0.0, %v2066
        %v2068 = vpop.f32.mrb[0].mxu0
        %2069 = vmatprep.mubr.bf16.mxu0 0
        %2070 = vmatmul.mubr.bf16.gmra.mrb[0].mxu0 %v1829
        %v2071 = vpop.f32.mrb[0].mxu0
        %v2072 = vadd.f32 0.0, %v2071
        %v2073 = vpop.f32.mrb[0].mxu0
        %v2074 = vpop.f32.mrb[0].mxu0
        %v2075 = vadd.f32 0.0, %v2074
        %v2076 = vpop.f32.mrb[0].mxu0
        %2077 = vmatprep.mubr.bf16.mxu0 0
        %2078 = vmatmul.mubr.bf16.gmra.mrb[0].mxu0 %v1830
        %v2079 = vpop.f32.mrb[0].mxu0
        %v2080 = vadd.f32 0.0, %v2079
        %v2081 = vpop.f32.mrb[0].mxu0
        %v2082 = vpop.f32.mrb[0].mxu0
        %v2083 = vadd.f32 0.0, %v2082
        %v2084 = vpop.f32.mrb[0].mxu0
        %2085 = vmatprep.mubr.bf16.mxu0 0
        %2086 = vmatmul.mubr.bf16.gmra.mrb[0].mxu0 %v1831
        %v2087 = vpop.f32.mrb[0].mxu0
        %v2088 = vadd.f32 0.0, %v2087
        %v2089 = vpop.f32.mrb[0].mxu0
        %v2090 = vpop.f32.mrb[0].mxu0
        %v2091 = vadd.f32 0.0, %v2090
        %v2092 = vpop.f32.mrb[0].mxu0
        %2093 = vmatprep.mubr.bf16.mxu0 0
        %2094 = vmatmul.mubr.bf16.gmra.mrb[0].mxu0 %v1832
        %v2095 = vpop.f32.mrb[0].mxu0
        %v2096 = vadd.f32 0.0, %v2095
        %v2097 = vpop.f32.mrb[0].mxu0
        %v2098 = vpop.f32.mrb[0].mxu0
        %v2099 = vadd.f32 0.0, %v2098
        %v2100 = vpop.f32.mrb[0].mxu0
        %2101 = vmatprep.mubr.bf16.mxu0 0
        %2102 = vmatmul.mubr.bf16.gmra.mrb[0].mxu0 %v1833
        %v2103 = vpop.f32.mrb[0].mxu0
        %v2104 = vadd.f32 0.0, %v2103
        %v2105 = vpop.f32.mrb[0].mxu0
        %v2106 = vpop.f32.mrb[0].mxu0
        %v2107 = vadd.f32 0.0, %v2106
        %v2108 = vpop.f32.mrb[0].mxu0
        %2109 = vmatprep.mubr.bf16.mxu0 0
        %2110 = vmatmul.mubr.bf16.gmra.mrb[0].mxu0 %v1834
        %v2111 = vpop.f32.mrb[0].mxu0
        %v2112 = vadd.f32 0.0, %v2111
        %v2113 = vpop.f32.mrb[0].mxu0
        %v2114 = vpop.f32.mrb[0].mxu0
        %v2115 = vadd.f32 0.0, %v2114
        %v2116 = vpop.f32.mrb[0].mxu0
        %2117 = vmatprep.mubr.bf16.mxu0 0
        %2118 = vmatmul.mubr.bf16.gmra.mrb[0].mxu0 %v1835
        %v2119 = vpop.f32.mrb[0].mxu0
        %v2120 = vadd.f32 0.0, %v2119
        %v2121 = vpop.f32.mrb[0].mxu0
        %v2122 = vpop.f32.mrb[0].mxu0
        %v2123 = vadd.f32 0.0, %v2122
        %v2124 = vpop.f32.mrb[0].mxu0
        %2125 = vmatprep.mubr.bf16.mxu0 0
        %2126 = vmatmul.mubr.bf16.gmra.mrb[0].mxu0 %v1836
        %v2127 = vpop.f32.mrb[0].mxu0
        %v2128 = vadd.f32 0.0, %v2127
        %v2129 = vpop.f32.mrb[0].mxu0
        %v2130 = vpop.f32.mrb[0].mxu0
        %v2131 = vadd.f32 0.0, %v2130
        %v2132 = vpop.f32.mrb[0].mxu0
        %2133 = vdwg.mxu0
        %v2134 = vadd.f32 %v1604, %v1944
        %v2135 = vadd.f32 %v1605, %v1947
        %v2136 = vadd.f32 %v1606, %v1952
        %v2137 = vadd.f32 %v1607, %v1955
        %v2138 = vadd.f32 %v1608, %v1960
        %v2139 = vadd.f32 %v1609, %v1963
        %v2140 = vadd.f32 %v1610, %v1968
        %v2141 = vadd.f32 %v1611, %v1971
        %v2142 = vadd.f32 %v1612, %v1976
        %v2143 = vadd.f32 %v1613, %v1979
        %v2144 = vadd.f32 %v1614, %v1984
        %v2145 = vadd.f32 %v1615, %v1987
        %v2146 = vadd.f32 %v1616, %v1992
        %v2147 = vadd.f32 %v1617, %v1995
        %v2148 = vadd.f32 %v1618, %v2000
        %v2149 = vadd.f32 %v1619, %v2003
        %v2150 = vadd.f32 %v1620, %v2008
        %v2151 = vadd.f32 %v1621, %v2011
        %v2152 = vadd.f32 %v1622, %v2016
        %v2153 = vadd.f32 %v1623, %v2019
        %v2154 = vadd.f32 %v1624, %v2024
        %v2155 = vadd.f32 %v1625, %v2027
        %v2156 = vadd.f32 %v1626, %v2032
        %v2157 = vadd.f32 %v1627, %v2035
        %v2158 = vadd.f32 %v1628, %v2040
        %v2159 = vadd.f32 %v1629, %v2043
        %v2160 = vadd.f32 %v1630, %v2048
        %v2161 = vadd.f32 %v1631, %v2051
        %v2162 = vadd.f32 %v1632, %v2056
        %v2163 = vadd.f32 %v1633, %v2059
        %v2164 = vadd.f32 %v1634, %v2064
        %v2165 = vadd.f32 %v1635, %v2067
        %v2166 = vadd.f32 %v1636, %v2072
        %v2167 = vadd.f32 %v1637, %v2075
        %v2168 = vadd.f32 %v1638, %v2080
        %v2169 = vadd.f32 %v1639, %v2083
        %v2170 = vadd.f32 %v1640, %v2088
        %v2171 = vadd.f32 %v1641, %v2091
        %v2172 = vadd.f32 %v1642, %v2096
        %v2173 = vadd.f32 %v1643, %v2099
        %v2174 = vadd.f32 %v1644, %v2104
        %v2175 = vadd.f32 %v1645, %v2107
        %v2176 = vadd.f32 %v1646, %v2112
        %v2177 = vadd.f32 %v1647, %v2115
        %v2178 = vadd.f32 %v1648, %v2120
        %v2179 = vadd.f32 %v1649, %v2123
        %v2180 = vadd.f32 %v1650, %v2128
        %v2181 = vadd.f32 %v1651, %v2131
        %v2182 = vld [vmem:[%s206 + $0xc] sm:$0xf]
        %v2183 = vld [vmem:[%s206 + $0x10] sm:$0xf]
        %v2184 = vld [vmem:[%s206 + $0x14] sm:$0xf]
        %v2185 = vld [vmem:[%s206 + $0x18] sm:$0xf]
        %v2186 = vld [vmem:[%s206 + $0x1c] sm:$0xf]
        %v2187 = vld [vmem:[%s206 + $0x20] sm:$0xf]
        %v2188 = vld [vmem:[%s206 + $0x24] sm:$0xf]
        %v2189 = vld [vmem:[%s206 + $0x28] sm:$0xf]
        %v2190 = vld [vmem:[%s206 + $0x2c] sm:$0xf]
        %v2191 = vld [vmem:[%s206 + $0x30] sm:$0xf]
        %v2192 = vld [vmem:[%s206 + $0x34] sm:$0xf]
        %v2193 = vld [vmem:[%s206 + $0x38] sm:$0xf]
        %v2194 = vld [vmem:[%s206 + $0x3c] sm:$0xf]
        %v2195 = vld [vmem:[%s206 + $0x40] sm:$0xf]
        %v2196 = vld [vmem:[%s206 + $0x44] sm:$0xf]
        %v2197 = vld [vmem:[%s206 + $0x48] sm:$0xf]
        %v2198 = vld [vmem:[%s206 + $0x4c] sm:$0xf]
        %v2199 = vld [vmem:[%s206 + $0x50] sm:$0xf]
        %v2200 = vld [vmem:[%s206 + $0x54] sm:$0xf]
        %v2201 = vld [vmem:[%s206 + $0x58] sm:$0xf]
        %v2202 = vld [vmem:[%s206 + $0x5c] sm:$0xf]
        %v2203 = vld [vmem:[%s206 + $0x60] sm:$0xf]
        %v2204 = vld [vmem:[%s206 + $0x64] sm:$0xf]
        %v2205 = vld [vmem:[%s206 + $0x68] sm:$0xf]
        %v2206 = vld [vmem:[%s206 + $0x6c] sm:$0xf]
        %v2207 = vld [vmem:[%s206 + $0x70] sm:$0xf]
        %v2208 = vld [vmem:[%s206 + $0x74] sm:$0xf]
        %v2209 = vld [vmem:[%s206 + $0x78] sm:$0xf]
        %v2210 = vld [vmem:[%s206 + $0x7c] sm:$0xf]
        %v2211 = vld [vmem:[%s206 + $0x80] sm:$0xf]
        %v2212 = vld [vmem:[%s206 + $0x84] sm:$0xf]
        %v2213 = vld [vmem:[%s206 + $0x88] sm:$0xf]
        %v2214 = vld [vmem:[%s206 + $0x8c] sm:$0xf]
        %v2215 = vld [vmem:[%s206 + $0x90] sm:$0xf]
        %v2216 = vld [vmem:[%s206 + $0x94] sm:$0xf]
        %v2217 = vld [vmem:[%s206 + $0x98] sm:$0xf]
        %v2218 = vld [vmem:[%s206 + $0x9c] sm:$0xf]
        %v2219 = vld [vmem:[%s206 + $0xa0] sm:$0xf]
        %v2220 = vld [vmem:[%s206 + $0xa4] sm:$0xf]
        %v2221 = vld [vmem:[%s206 + $0xa8] sm:$0xf]
        %v2222 = vld [vmem:[%s206 + $0xac] sm:$0xf]
        %v2223 = vld [vmem:[%s206 + $0xb0] sm:$0xf]
        %v2224 = vld [vmem:[%s206 + $0xb4] sm:$0xf]
        %v2225 = vld [vmem:[%s206 + $0xb8] sm:$0xf]
        %v2226 = vld [vmem:[%s206 + $0xbc] sm:$0xf]
        %v2227 = vld [vmem:[%s206 + $0xc0] sm:$0xf]
        %v2228 = vld [vmem:[%s206 + $0xc4] sm:$0xf]
        %v2229 = vld [vmem:[%s206 + $0xc8] sm:$0xf]
        %v2230 = vld [vmem:[%s206 + $0xcc] sm:$0x1]
        %s2231 = scalar_lea.vmem [#allocation5], 256
        %v2232 = vld [vmem:[%s2231] sm:$0xf]
        %v2233 = vld [vmem:[%s2231 + $0x4] sm:$0xf]
        %v2234 = vld [vmem:[%s2231 + $0x8] sm:$0xf]
        %v2235 = vld [vmem:[%s2231 + $0xc] sm:$0xf]
        %v2236 = vld [vmem:[%s2231 + $0x10] sm:$0xf]
        %v2237 = vld [vmem:[%s2231 + $0x14] sm:$0xf]
        %v2238 = vld [vmem:[%s2231 + $0x18] sm:$0xf]
        %v2239 = vld [vmem:[%s2231 + $0x1c] sm:$0xf]
        %v2240 = vld [vmem:[%s2231 + $0x20] sm:$0xf]
        %v2241 = vld [vmem:[%s2231 + $0x24] sm:$0xf]
        %v2242 = vld [vmem:[%s2231 + $0x28] sm:$0xf]
        %v2243 = vld [vmem:[%s2231 + $0x2c] sm:$0xf]
        %v2244 = vld [vmem:[%s2231 + $0x30] sm:$0xf]
        %v2245 = vld [vmem:[%s2231 + $0x34] sm:$0xf]
        %v2246 = vld [vmem:[%s2231 + $0x38] sm:$0xf]
        %v2247 = vld [vmem:[%s2231 + $0x3c] sm:$0xf]
        %v2297 = vunpack.c.l.b16 %v2182
        %v2298 = vunpack.c.l.b16 %v2183
        %v2299 = vunpack.c.l.b16 %v2184
        %v2300 = vunpack.c.l.b16 %v2185
        %v2301 = vunpack.c.l.b16 %v2186
        %v2302 = vunpack.c.l.b16 %v2187
        %v2303 = vunpack.c.l.b16 %v2188
        %v2304 = vunpack.c.l.b16 %v2189
        %v2305 = vunpack.c.l.b16 %v2190
        %v2306 = vunpack.c.l.b16 %v2191
        %v2307 = vunpack.c.l.b16 %v2192
        %v2308 = vunpack.c.l.b16 %v2193
        %v2309 = vunpack.c.l.b16 %v2194
        %v2310 = vunpack.c.l.b16 %v2195
        %v2311 = vunpack.c.l.b16 %v2196
        %v2312 = vunpack.c.l.b16 %v2197
        %v2313 = vunpack.c.l.b16 %v2198
        %v2314 = vunpack.c.l.b16 %v2199
        %v2315 = vunpack.c.l.b16 %v2200
        %v2316 = vunpack.c.l.b16 %v2201
        %v2317 = vunpack.c.l.b16 %v2202
        %v2318 = vunpack.c.l.b16 %v2203
        %v2319 = vunpack.c.l.b16 %v2204
        %v2320 = vunpack.c.l.b16 %v2205
        %v2321 = vunpack.c.l.b16 %v2206
        %v2322 = vunpack.c.l.b16 %v2207
        %v2323 = vunpack.c.l.b16 %v2208
        %v2324 = vunpack.c.l.b16 %v2209
        %v2325 = vunpack.c.l.b16 %v2210
        %v2326 = vunpack.c.l.b16 %v2211
        %v2327 = vunpack.c.l.b16 %v2212
        %v2328 = vunpack.c.l.b16 %v2213
        %v2329 = vunpack.c.l.b16 %v2214
        %v2330 = vunpack.c.l.b16 %v2215
        %v2331 = vunpack.c.l.b16 %v2216
        %v2332 = vunpack.c.l.b16 %v2217
        %v2333 = vunpack.c.l.b16 %v2218
        %v2334 = vunpack.c.l.b16 %v2219
        %v2335 = vunpack.c.l.b16 %v2220
        %v2336 = vunpack.c.l.b16 %v2221
        %v2337 = vunpack.c.l.b16 %v2222
        %v2338 = vunpack.c.l.b16 %v2223
        %v2339 = vunpack.c.l.b16 %v2224
        %v2340 = vunpack.c.l.b16 %v2225
        %v2341 = vunpack.c.l.b16 %v2226
        %v2342 = vunpack.c.l.b16 %v2227
        %v2343 = vunpack.c.l.b16 %v2228
        %v2344 = vunpack.c.l.b16 %v2229
        %v2345 = vunpack.c.l.b16 %v2230
        %v2346 = vpack.c.b16 %v2298, %v2297
        %v2347 = vpack.c.b16 %v2300, %v2299
        %v2348 = vpack.c.b16 %v2302, %v2301
        %v2349 = vpack.c.b16 %v2304, %v2303
        %v2350 = vpack.c.b16 %v2306, %v2305
        %v2351 = vpack.c.b16 %v2308, %v2307
        %v2352 = vpack.c.b16 %v2310, %v2309
        %v2353 = vpack.c.b16 %v2312, %v2311
        %v2354 = vpack.c.b16 %v2314, %v2313
        %v2355 = vpack.c.b16 %v2316, %v2315
        %v2356 = vpack.c.b16 %v2318, %v2317
        %v2357 = vpack.c.b16 %v2320, %v2319
        %v2358 = vpack.c.b16 %v2322, %v2321
        %v2359 = vpack.c.b16 %v2324, %v2323
        %v2360 = vpack.c.b16 %v2326, %v2325
        %v2361 = vpack.c.b16 %v2328, %v2327
        %v2362 = vpack.c.b16 %v2330, %v2329
        %v2363 = vpack.c.b16 %v2332, %v2331
        %v2364 = vpack.c.b16 %v2334, %v2333
        %v2365 = vpack.c.b16 %v2336, %v2335
        %v2366 = vpack.c.b16 %v2338, %v2337
        %v2367 = vpack.c.b16 %v2340, %v2339
        %v2368 = vpack.c.b16 %v2342, %v2341
        %v2369 = vpack.c.b16 %v2344, %v2343
        %v2370 = vpack.c.b16 %v2345, %v2345
        %v2372 = vshrl.u32 %v2346, 16
        %v2374 = vshll.u32 %v2346, 16
        %v2376 = vrot.slane %v2374, 1
        %v2377 = vor.u32 %v2372, %v2376
        %v2379 = vshll.u32 %v2347, 16
        %v2381 = vrot.slane %v2379, 1
        %v2382 = vsel %vm445, %v2377, %v2381
        %v2383 = vshrl.u32 %v2347, 16
        %v2385 = vor.u32 %v2383, %v2381
        %v2387 = vshll.u32 %v2348, 16
        %v2389 = vrot.slane %v2387, 1
        %v2390 = vsel %vm445, %v2385, %v2389
        %v2391 = vshrl.u32 %v2348, 16
        %v2393 = vor.u32 %v2391, %v2389
        %v2395 = vshll.u32 %v2349, 16
        %v2397 = vrot.slane %v2395, 1
        %v2398 = vsel %vm445, %v2393, %v2397
        %v2399 = vshrl.u32 %v2349, 16
        %v2401 = vor.u32 %v2399, %v2397
        %v2403 = vshll.u32 %v2350, 16
        %v2405 = vrot.slane %v2403, 1
        %v2406 = vsel %vm445, %v2401, %v2405
        %v2407 = vshrl.u32 %v2350, 16
        %v2409 = vor.u32 %v2407, %v2405
        %v2411 = vshll.u32 %v2351, 16
        %v2413 = vrot.slane %v2411, 1
        %v2414 = vsel %vm445, %v2409, %v2413
        %v2415 = vshrl.u32 %v2351, 16
        %v2417 = vor.u32 %v2415, %v2413
        %v2419 = vshll.u32 %v2352, 16
        %v2421 = vrot.slane %v2419, 1
        %v2422 = vsel %vm445, %v2417, %v2421
        %v2423 = vshrl.u32 %v2352, 16
        %v2425 = vor.u32 %v2423, %v2421
        %v2427 = vshll.u32 %v2353, 16
        %v2429 = vrot.slane %v2427, 1
        %v2430 = vsel %vm445, %v2425, %v2429
        %v2431 = vshrl.u32 %v2353, 16
        %v2433 = vor.u32 %v2431, %v2429
        %v2435 = vshll.u32 %v2354, 16
        %v2437 = vrot.slane %v2435, 1
        %v2438 = vsel %vm445, %v2433, %v2437
        %v2439 = vshrl.u32 %v2354, 16
        %v2441 = vor.u32 %v2439, %v2437
        %v2443 = vshll.u32 %v2355, 16
        %v2445 = vrot.slane %v2443, 1
        %v2446 = vsel %vm445, %v2441, %v2445
        %v2447 = vshrl.u32 %v2355, 16
        %v2449 = vor.u32 %v2447, %v2445
        %v2451 = vshll.u32 %v2356, 16
        %v2453 = vrot.slane %v2451, 1
        %v2454 = vsel %vm445, %v2449, %v2453
        %v2455 = vshrl.u32 %v2356, 16
        %v2457 = vor.u32 %v2455, %v2453
        %v2459 = vshll.u32 %v2357, 16
        %v2461 = vrot.slane %v2459, 1
        %v2462 = vsel %vm445, %v2457, %v2461
        %v2463 = vshrl.u32 %v2357, 16
        %v2465 = vor.u32 %v2463, %v2461
        %v2467 = vshll.u32 %v2358, 16
        %v2469 = vrot.slane %v2467, 1
        %v2470 = vsel %vm445, %v2465, %v2469
        %v2471 = vshrl.u32 %v2358, 16
        %v2473 = vor.u32 %v2471, %v2469
        %v2475 = vshll.u32 %v2359, 16
        %v2477 = vrot.slane %v2475, 1
        %v2478 = vsel %vm445, %v2473, %v2477
        %v2479 = vshrl.u32 %v2359, 16
        %v2481 = vor.u32 %v2479, %v2477
        %v2483 = vshll.u32 %v2360, 16
        %v2485 = vrot.slane %v2483, 1
        %v2486 = vsel %vm445, %v2481, %v2485
        %v2487 = vshrl.u32 %v2360, 16
        %v2489 = vor.u32 %v2487, %v2485
        %v2491 = vshll.u32 %v2361, 16
        %v2493 = vrot.slane %v2491, 1
        %v2494 = vsel %vm445, %v2489, %v2493
        %v2495 = vshrl.u32 %v2361, 16
        %v2497 = vor.u32 %v2495, %v2493
        %v2499 = vshll.u32 %v2362, 16
        %v2501 = vrot.slane %v2499, 1
        %v2502 = vsel %vm445, %v2497, %v2501
        %v2503 = vshrl.u32 %v2362, 16
        %v2505 = vor.u32 %v2503, %v2501
        %v2507 = vshll.u32 %v2363, 16
        %v2509 = vrot.slane %v2507, 1
        %v2510 = vsel %vm445, %v2505, %v2509
        %v2511 = vshrl.u32 %v2363, 16
        %v2513 = vor.u32 %v2511, %v2509
        %v2515 = vshll.u32 %v2364, 16
        %v2517 = vrot.slane %v2515, 1
        %v2518 = vsel %vm445, %v2513, %v2517
        %v2519 = vshrl.u32 %v2364, 16
        %v2521 = vor.u32 %v2519, %v2517
        %v2523 = vshll.u32 %v2365, 16
        %v2525 = vrot.slane %v2523, 1
        %v2526 = vsel %vm445, %v2521, %v2525
        %v2527 = vshrl.u32 %v2365, 16
        %v2529 = vor.u32 %v2527, %v2525
        %v2531 = vshll.u32 %v2366, 16
        %v2533 = vrot.slane %v2531, 1
        %v2534 = vsel %vm445, %v2529, %v2533
        %v2535 = vshrl.u32 %v2366, 16
        %v2537 = vor.u32 %v2535, %v2533
        %v2539 = vshll.u32 %v2367, 16
        %v2541 = vrot.slane %v2539, 1
        %v2542 = vsel %vm445, %v2537, %v2541
        %v2543 = vshrl.u32 %v2367, 16
        %v2545 = vor.u32 %v2543, %v2541
        %v2547 = vshll.u32 %v2368, 16
        %v2549 = vrot.slane %v2547, 1
        %v2550 = vsel %vm445, %v2545, %v2549
        %v2551 = vshrl.u32 %v2368, 16
        %v2553 = vor.u32 %v2551, %v2549
        %v2555 = vshll.u32 %v2369, 16
        %v2557 = vrot.slane %v2555, 1
        %v2558 = vsel %vm445, %v2553, %v2557
        %v2559 = vshrl.u32 %v2369, 16
        %v2561 = vor.u32 %v2559, %v2557
        %v2563 = vshll.u32 %v2370, 16
        %v2565 = vrot.slane %v2563, 1
        %v2566 = vsel %vm445, %v2561, %v2565
        %v2607 = vunpack.c.l.b16 %v2232
        %v2608 = vunpack.c.l.b16 %v2233
        %v2609 = vunpack.c.l.b16 %v2234
        %v2610 = vunpack.c.l.b16 %v2235
        %v2611 = vunpack.c.l.b16 %v2236
        %v2612 = vunpack.c.l.b16 %v2237
        %v2613 = vunpack.c.l.b16 %v2238
        %v2614 = vunpack.c.l.b16 %v2239
        %v2615 = vunpack.c.l.b16 %v2240
        %v2616 = vunpack.c.l.b16 %v2241
        %v2617 = vunpack.c.l.b16 %v2242
        %v2618 = vunpack.c.l.b16 %v2243
        %v2619 = vunpack.c.l.b16 %v2244
        %v2620 = vunpack.c.l.b16 %v2245
        %v2621 = vunpack.c.l.b16 %v2246
        %v2622 = vunpack.c.l.b16 %v2247
        %v2623 = vpack.c.b16 %v2608, %v2607
        %v2624 = vpack.c.b16 %v2610, %v2609
        %v2625 = vpack.c.b16 %v2612, %v2611
        %v2626 = vpack.c.b16 %v2614, %v2613
        %v2627 = vpack.c.b16 %v2616, %v2615
        %v2628 = vpack.c.b16 %v2618, %v2617
        %v2629 = vpack.c.b16 %v2620, %v2619
        %v2630 = vpack.c.b16 %v2622, %v2621
        %2639 = vmatprep.subr.bf16.mxu0 0
        %2640 = vmatpush1.bf16.msra.mxu0 %v2623
        %2641 = vmatprep.subr.bf16.mxu0 0
        %2642 = vmatpush1.bf16.msra.mxu0 %v2624
        %2643 = vmatprep.subr.bf16.mxu0 0
        %2644 = vmatpush1.bf16.msra.mxu0 %v2625
        %2645 = vmatprep.subr.bf16.mxu0 0
        %2646 = vmatpush1.bf16.msra.mxu0 %v2626
        %2647 = vmatprep.subr.bf16.mxu0 0
        %2648 = vmatpush1.bf16.msra.mxu0 %v2627
        %2649 = vmatprep.subr.bf16.mxu0 0
        %2650 = vmatpush1.bf16.msra.mxu0 %v2628
        %2651 = vmatprep.subr.bf16.mxu0 0
        %2652 = vmatpush1.bf16.msra.mxu0 %v2629
        %2653 = vmatprep.subr.bf16.mxu0 0
        %2654 = vmatpush1.bf16.msra.mxu0 %v2630
        %2655 = vmatprep.subr.bf16.mxu0 0
        %2656 = vmatpush1.bf16.msra.mxu0 0
        %2657 = vmatprep.subr.bf16.mxu0 0
        %2658 = vmatpush1.bf16.msra.mxu0 0
        %2659 = vmatprep.subr.bf16.mxu0 0
        %2660 = vmatpush1.bf16.msra.mxu0 0
        %2661 = vmatprep.subr.bf16.mxu0 0
        %2662 = vmatpush1.bf16.msra.mxu0 0
        %2663 = vmatprep.subr.bf16.mxu0 0
        %2664 = vmatpush1.bf16.msra.mxu0 0
        %2665 = vmatprep.subr.bf16.mxu0 0
        %2666 = vmatpush1.bf16.msra.mxu0 0
        %2667 = vmatprep.subr.bf16.mxu0 0
        %2668 = vmatpush1.bf16.msra.mxu0 0
        %2669 = vmatprep.subr.bf16.mxu0 0
        %2670 = vmatpush1.bf16.msra.mxu0 0
        %2671 = vmatprep.mubr.bf16.mxu0 0
        %2672 = vmatmul.mubr.bf16.gmra.mrb[0].mxu0 %v2382
        %v2673 = vpop.f32.mrb[0].mxu0
        %v2674 = vadd.f32 0.0, %v2673
        %v2675 = vpop.f32.mrb[0].mxu0
        %v2676 = vpop.f32.mrb[0].mxu0
        %v2677 = vadd.f32 0.0, %v2676
        %v2678 = vpop.f32.mrb[0].mxu0
        %2679 = vmatprep.mubr.bf16.mxu0 0
        %2680 = vmatmul.mubr.bf16.gmra.mrb[0].mxu0 %v2390
        %v2681 = vpop.f32.mrb[0].mxu0
        %v2682 = vadd.f32 0.0, %v2681
        %v2683 = vpop.f32.mrb[0].mxu0
        %v2684 = vpop.f32.mrb[0].mxu0
        %v2685 = vadd.f32 0.0, %v2684
        %v2686 = vpop.f32.mrb[0].mxu0
        %2687 = vmatprep.mubr.bf16.mxu0 0
        %2688 = vmatmul.mubr.bf16.gmra.mrb[0].mxu0 %v2398
        %v2689 = vpop.f32.mrb[0].mxu0
        %v2690 = vadd.f32 0.0, %v2689
        %v2691 = vpop.f32.mrb[0].mxu0
        %v2692 = vpop.f32.mrb[0].mxu0
        %v2693 = vadd.f32 0.0, %v2692
        %v2694 = vpop.f32.mrb[0].mxu0
        %2695 = vmatprep.mubr.bf16.mxu0 0
        %2696 = vmatmul.mubr.bf16.gmra.mrb[0].mxu0 %v2406
        %v2697 = vpop.f32.mrb[0].mxu0
        %v2698 = vadd.f32 0.0, %v2697
        %v2699 = vpop.f32.mrb[0].mxu0
        %v2700 = vpop.f32.mrb[0].mxu0
        %v2701 = vadd.f32 0.0, %v2700
        %v2702 = vpop.f32.mrb[0].mxu0
        %2703 = vmatprep.mubr.bf16.mxu0 0
        %2704 = vmatmul.mubr.bf16.gmra.mrb[0].mxu0 %v2414
        %v2705 = vpop.f32.mrb[0].mxu0
        %v2706 = vadd.f32 0.0, %v2705
        %v2707 = vpop.f32.mrb[0].mxu0
        %v2708 = vpop.f32.mrb[0].mxu0
        %v2709 = vadd.f32 0.0, %v2708
        %v2710 = vpop.f32.mrb[0].mxu0
        %2711 = vmatprep.mubr.bf16.mxu0 0
        %2712 = vmatmul.mubr.bf16.gmra.mrb[0].mxu0 %v2422
        %v2713 = vpop.f32.mrb[0].mxu0
        %v2714 = vadd.f32 0.0, %v2713
        %v2715 = vpop.f32.mrb[0].mxu0
        %v2716 = vpop.f32.mrb[0].mxu0
        %v2717 = vadd.f32 0.0, %v2716
        %v2718 = vpop.f32.mrb[0].mxu0
        %2719 = vmatprep.mubr.bf16.mxu0 0
        %2720 = vmatmul.mubr.bf16.gmra.mrb[0].mxu0 %v2430
        %v2721 = vpop.f32.mrb[0].mxu0
        %v2722 = vadd.f32 0.0, %v2721
        %v2723 = vpop.f32.mrb[0].mxu0
        %v2724 = vpop.f32.mrb[0].mxu0
        %v2725 = vadd.f32 0.0, %v2724
        %v2726 = vpop.f32.mrb[0].mxu0
        %2727 = vmatprep.mubr.bf16.mxu0 0
        %2728 = vmatmul.mubr.bf16.gmra.mrb[0].mxu0 %v2438
        %v2729 = vpop.f32.mrb[0].mxu0
        %v2730 = vadd.f32 0.0, %v2729
        %v2731 = vpop.f32.mrb[0].mxu0
        %v2732 = vpop.f32.mrb[0].mxu0
        %v2733 = vadd.f32 0.0, %v2732
        %v2734 = vpop.f32.mrb[0].mxu0
        %2735 = vmatprep.mubr.bf16.mxu0 0
        %2736 = vmatmul.mubr.bf16.gmra.mrb[0].mxu0 %v2446
        %v2737 = vpop.f32.mrb[0].mxu0
        %v2738 = vadd.f32 0.0, %v2737
        %v2739 = vpop.f32.mrb[0].mxu0
        %v2740 = vpop.f32.mrb[0].mxu0
        %v2741 = vadd.f32 0.0, %v2740
        %v2742 = vpop.f32.mrb[0].mxu0
        %2743 = vmatprep.mubr.bf16.mxu0 0
        %2744 = vmatmul.mubr.bf16.gmra.mrb[0].mxu0 %v2454
        %v2745 = vpop.f32.mrb[0].mxu0
        %v2746 = vadd.f32 0.0, %v2745
        %v2747 = vpop.f32.mrb[0].mxu0
        %v2748 = vpop.f32.mrb[0].mxu0
        %v2749 = vadd.f32 0.0, %v2748
        %v2750 = vpop.f32.mrb[0].mxu0
        %2751 = vmatprep.mubr.bf16.mxu0 0
        %2752 = vmatmul.mubr.bf16.gmra.mrb[0].mxu0 %v2462
        %v2753 = vpop.f32.mrb[0].mxu0
        %v2754 = vadd.f32 0.0, %v2753
        %v2755 = vpop.f32.mrb[0].mxu0
        %v2756 = vpop.f32.mrb[0].mxu0
        %v2757 = vadd.f32 0.0, %v2756
        %v2758 = vpop.f32.mrb[0].mxu0
        %2759 = vmatprep.mubr.bf16.mxu0 0
        %2760 = vmatmul.mubr.bf16.gmra.mrb[0].mxu0 %v2470
        %v2761 = vpop.f32.mrb[0].mxu0
        %v2762 = vadd.f32 0.0, %v2761
        %v2763 = vpop.f32.mrb[0].mxu0
        %v2764 = vpop.f32.mrb[0].mxu0
        %v2765 = vadd.f32 0.0, %v2764
        %v2766 = vpop.f32.mrb[0].mxu0
        %2767 = vmatprep.mubr.bf16.mxu0 0
        %2768 = vmatmul.mubr.bf16.gmra.mrb[0].mxu0 %v2478
        %v2769 = vpop.f32.mrb[0].mxu0
        %v2770 = vadd.f32 0.0, %v2769
        %v2771 = vpop.f32.mrb[0].mxu0
        %v2772 = vpop.f32.mrb[0].mxu0
        %v2773 = vadd.f32 0.0, %v2772
        %v2774 = vpop.f32.mrb[0].mxu0
        %2775 = vmatprep.mubr.bf16.mxu0 0
        %2776 = vmatmul.mubr.bf16.gmra.mrb[0].mxu0 %v2486
        %v2777 = vpop.f32.mrb[0].mxu0
        %v2778 = vadd.f32 0.0, %v2777
        %v2779 = vpop.f32.mrb[0].mxu0
        %v2780 = vpop.f32.mrb[0].mxu0
        %v2781 = vadd.f32 0.0, %v2780
        %v2782 = vpop.f32.mrb[0].mxu0
        %2783 = vmatprep.mubr.bf16.mxu0 0
        %2784 = vmatmul.mubr.bf16.gmra.mrb[0].mxu0 %v2494
        %v2785 = vpop.f32.mrb[0].mxu0
        %v2786 = vadd.f32 0.0, %v2785
        %v2787 = vpop.f32.mrb[0].mxu0
        %v2788 = vpop.f32.mrb[0].mxu0
        %v2789 = vadd.f32 0.0, %v2788
        %v2790 = vpop.f32.mrb[0].mxu0
        %2791 = vmatprep.mubr.bf16.mxu0 0
        %2792 = vmatmul.mubr.bf16.gmra.mrb[0].mxu0 %v2502
        %v2793 = vpop.f32.mrb[0].mxu0
        %v2794 = vadd.f32 0.0, %v2793
        %v2795 = vpop.f32.mrb[0].mxu0
        %v2796 = vpop.f32.mrb[0].mxu0
        %v2797 = vadd.f32 0.0, %v2796
        %v2798 = vpop.f32.mrb[0].mxu0
        %2799 = vmatprep.mubr.bf16.mxu0 0
        %2800 = vmatmul.mubr.bf16.gmra.mrb[0].mxu0 %v2510
        %v2801 = vpop.f32.mrb[0].mxu0
        %v2802 = vadd.f32 0.0, %v2801
        %v2803 = vpop.f32.mrb[0].mxu0
        %v2804 = vpop.f32.mrb[0].mxu0
        %v2805 = vadd.f32 0.0, %v2804
        %v2806 = vpop.f32.mrb[0].mxu0
        %2807 = vmatprep.mubr.bf16.mxu0 0
        %2808 = vmatmul.mubr.bf16.gmra.mrb[0].mxu0 %v2518
        %v2809 = vpop.f32.mrb[0].mxu0
        %v2810 = vadd.f32 0.0, %v2809
        %v2811 = vpop.f32.mrb[0].mxu0
        %v2812 = vpop.f32.mrb[0].mxu0
        %v2813 = vadd.f32 0.0, %v2812
        %v2814 = vpop.f32.mrb[0].mxu0
        %2815 = vmatprep.mubr.bf16.mxu0 0
        %2816 = vmatmul.mubr.bf16.gmra.mrb[0].mxu0 %v2526
        %v2817 = vpop.f32.mrb[0].mxu0
        %v2818 = vadd.f32 0.0, %v2817
        %v2819 = vpop.f32.mrb[0].mxu0
        %v2820 = vpop.f32.mrb[0].mxu0
        %v2821 = vadd.f32 0.0, %v2820
        %v2822 = vpop.f32.mrb[0].mxu0
        %2823 = vmatprep.mubr.bf16.mxu0 0
        %2824 = vmatmul.mubr.bf16.gmra.mrb[0].mxu0 %v2534
        %v2825 = vpop.f32.mrb[0].mxu0
        %v2826 = vadd.f32 0.0, %v2825
        %v2827 = vpop.f32.mrb[0].mxu0
        %v2828 = vpop.f32.mrb[0].mxu0
        %v2829 = vadd.f32 0.0, %v2828
        %v2830 = vpop.f32.mrb[0].mxu0
        %2831 = vmatprep.mubr.bf16.mxu0 0
        %2832 = vmatmul.mubr.bf16.gmra.mrb[0].mxu0 %v2542
        %v2833 = vpop.f32.mrb[0].mxu0
        %v2834 = vadd.f32 0.0, %v2833
        %v2835 = vpop.f32.mrb[0].mxu0
        %v2836 = vpop.f32.mrb[0].mxu0
        %v2837 = vadd.f32 0.0, %v2836
        %v2838 = vpop.f32.mrb[0].mxu0
        %2839 = vmatprep.mubr.bf16.mxu0 0
        %2840 = vmatmul.mubr.bf16.gmra.mrb[0].mxu0 %v2550
        %v2841 = vpop.f32.mrb[0].mxu0
        %v2842 = vadd.f32 0.0, %v2841
        %v2843 = vpop.f32.mrb[0].mxu0
        %v2844 = vpop.f32.mrb[0].mxu0
        %v2845 = vadd.f32 0.0, %v2844
        %v2846 = vpop.f32.mrb[0].mxu0
        %2847 = vmatprep.mubr.bf16.mxu0 0
        %2848 = vmatmul.mubr.bf16.gmra.mrb[0].mxu0 %v2558
        %v2849 = vpop.f32.mrb[0].mxu0
        %v2850 = vadd.f32 0.0, %v2849
        %v2851 = vpop.f32.mrb[0].mxu0
        %v2852 = vpop.f32.mrb[0].mxu0
        %v2853 = vadd.f32 0.0, %v2852
        %v2854 = vpop.f32.mrb[0].mxu0
        %2855 = vmatprep.mubr.bf16.mxu0 0
        %2856 = vmatmul.mubr.bf16.gmra.mrb[0].mxu0 %v2566
        %v2857 = vpop.f32.mrb[0].mxu0
        %v2858 = vadd.f32 0.0, %v2857
        %v2859 = vpop.f32.mrb[0].mxu0
        %v2860 = vpop.f32.mrb[0].mxu0
        %v2861 = vadd.f32 0.0, %v2860
        %v2862 = vpop.f32.mrb[0].mxu0
        %2863 = vdwg.mxu0
        %v2864 = vadd.f32 %v2134, %v2674
        %v2865 = vadd.f32 %v2135, %v2677
        %v2866 = vadd.f32 %v2136, %v2682
        %v2867 = vadd.f32 %v2137, %v2685
        %v2868 = vadd.f32 %v2138, %v2690
        %v2869 = vadd.f32 %v2139, %v2693
        %v2870 = vadd.f32 %v2140, %v2698
        %v2871 = vadd.f32 %v2141, %v2701
        %v2872 = vadd.f32 %v2142, %v2706
        %v2873 = vadd.f32 %v2143, %v2709
        %v2874 = vadd.f32 %v2144, %v2714
        %v2875 = vadd.f32 %v2145, %v2717
        %v2876 = vadd.f32 %v2146, %v2722
        %v2877 = vadd.f32 %v2147, %v2725
        %v2878 = vadd.f32 %v2148, %v2730
        %v2879 = vadd.f32 %v2149, %v2733
        %v2880 = vadd.f32 %v2150, %v2738
        %v2881 = vadd.f32 %v2151, %v2741
        %v2882 = vadd.f32 %v2152, %v2746
        %v2883 = vadd.f32 %v2153, %v2749
        %v2884 = vadd.f32 %v2154, %v2754
        %v2885 = vadd.f32 %v2155, %v2757
        %v2886 = vadd.f32 %v2156, %v2762
        %v2887 = vadd.f32 %v2157, %v2765
        %v2888 = vadd.f32 %v2158, %v2770
        %v2889 = vadd.f32 %v2159, %v2773
        %v2890 = vadd.f32 %v2160, %v2778
        %v2891 = vadd.f32 %v2161, %v2781
        %v2892 = vadd.f32 %v2162, %v2786
        %v2893 = vadd.f32 %v2163, %v2789
        %v2894 = vadd.f32 %v2164, %v2794
        %v2895 = vadd.f32 %v2165, %v2797
        %v2896 = vadd.f32 %v2166, %v2802
        %v2897 = vadd.f32 %v2167, %v2805
        %v2898 = vadd.f32 %v2168, %v2810
        %v2899 = vadd.f32 %v2169, %v2813
        %v2900 = vadd.f32 %v2170, %v2818
        %v2901 = vadd.f32 %v2171, %v2821
        %v2902 = vadd.f32 %v2172, %v2826
        %v2903 = vadd.f32 %v2173, %v2829
        %v2904 = vadd.f32 %v2174, %v2834
        %v2905 = vadd.f32 %v2175, %v2837
        %v2906 = vadd.f32 %v2176, %v2842
        %v2907 = vadd.f32 %v2177, %v2845
        %v2908 = vadd.f32 %v2178, %v2850
        %v2909 = vadd.f32 %v2179, %v2853
        %v2910 = vadd.f32 %v2180, %v2858
        %v2911 = vadd.f32 %v2181, %v2861
        %v2912 = vld [vmem:[%s206 + $0xc] sm:$0xe]
        %s2913 = scalar_lea.vmem [#allocation5], 320
        %v2914 = vld [vmem:[%s2913] sm:$0xf]
        %v2915 = vld [vmem:[%s2913 + $0x4] sm:$0xf]
        %v2916 = vld [vmem:[%s2913 + $0x8] sm:$0xf]
        %v2917 = vld [vmem:[%s2913 + $0xc] sm:$0xf]
        %v2918 = vld [vmem:[%s2913 + $0x10] sm:$0xf]
        %v2919 = vld [vmem:[%s2913 + $0x14] sm:$0xf]
        %v2920 = vld [vmem:[%s2913 + $0x18] sm:$0xf]
        %v2921 = vld [vmem:[%s2913 + $0x1c] sm:$0xf]
        %v2922 = vld [vmem:[%s2913 + $0x20] sm:$0xf]
        %v2923 = vld [vmem:[%s2913 + $0x24] sm:$0xf]
        %v2924 = vld [vmem:[%s2913 + $0x28] sm:$0xf]
        %v2925 = vld [vmem:[%s2913 + $0x2c] sm:$0xf]
        %v2926 = vld [vmem:[%s2913 + $0x30] sm:$0xf]
        %v2927 = vld [vmem:[%s2913 + $0x34] sm:$0xf]
        %v2928 = vld [vmem:[%s2913 + $0x38] sm:$0xf]
        %v2929 = vld [vmem:[%s2913 + $0x3c] sm:$0xf]
        %v2931 = vunpack.c.l.b16 %v2912
        %v2932 = vpack.c.b16 %v2298, %v2931
        %v2933 = vrot.slane %v2932, 1
        %v2934 = vrot.slane %v2347, 1
        %v2935 = vsel %vm1257, %v2933, %v2934
        %v2936 = vrot.slane %v2348, 1
        %v2937 = vsel %vm1257, %v2934, %v2936
        %v2938 = vrot.slane %v2349, 1
        %v2939 = vsel %vm1257, %v2936, %v2938
        %v2940 = vrot.slane %v2350, 1
        %v2941 = vsel %vm1257, %v2938, %v2940
        %v2942 = vrot.slane %v2351, 1
        %v2943 = vsel %vm1257, %v2940, %v2942
        %v2944 = vrot.slane %v2352, 1
        %v2945 = vsel %vm1257, %v2942, %v2944
        %v2946 = vrot.slane %v2353, 1
        %v2947 = vsel %vm1257, %v2944, %v2946
        %v2948 = vrot.slane %v2354, 1
        %v2949 = vsel %vm1257, %v2946, %v2948
        %v2950 = vrot.slane %v2355, 1
        %v2951 = vsel %vm1257, %v2948, %v2950
        %v2952 = vrot.slane %v2356, 1
        %v2953 = vsel %vm1257, %v2950, %v2952
        %v2954 = vrot.slane %v2357, 1
        %v2955 = vsel %vm1257, %v2952, %v2954
        %v2956 = vrot.slane %v2358, 1
        %v2957 = vsel %vm1257, %v2954, %v2956
        %v2958 = vrot.slane %v2359, 1
        %v2959 = vsel %vm1257, %v2956, %v2958
        %v2960 = vrot.slane %v2360, 1
        %v2961 = vsel %vm1257, %v2958, %v2960
        %v2962 = vrot.slane %v2361, 1
        %v2963 = vsel %vm1257, %v2960, %v2962
        %v2964 = vrot.slane %v2362, 1
        %v2965 = vsel %vm1257, %v2962, %v2964
        %v2966 = vrot.slane %v2363, 1
        %v2967 = vsel %vm1257, %v2964, %v2966
        %v2968 = vrot.slane %v2364, 1
        %v2969 = vsel %vm1257, %v2966, %v2968
        %v2970 = vrot.slane %v2365, 1
        %v2971 = vsel %vm1257, %v2968, %v2970
        %v2972 = vrot.slane %v2366, 1
        %v2973 = vsel %vm1257, %v2970, %v2972
        %v2974 = vrot.slane %v2367, 1
        %v2975 = vsel %vm1257, %v2972, %v2974
        %v2976 = vrot.slane %v2368, 1
        %v2977 = vsel %vm1257, %v2974, %v2976
        %v2978 = vrot.slane %v2369, 1
        %v2979 = vsel %vm1257, %v2976, %v2978
        %v2980 = vrot.slane %v2370, 1
        %v2981 = vsel %vm1257, %v2978, %v2980
        %v3022 = vunpack.c.l.b16 %v2914
        %v3023 = vunpack.c.l.b16 %v2915
        %v3024 = vunpack.c.l.b16 %v2916
        %v3025 = vunpack.c.l.b16 %v2917
        %v3026 = vunpack.c.l.b16 %v2918
        %v3027 = vunpack.c.l.b16 %v2919
        %v3028 = vunpack.c.l.b16 %v2920
        %v3029 = vunpack.c.l.b16 %v2921
        %v3030 = vunpack.c.l.b16 %v2922
        %v3031 = vunpack.c.l.b16 %v2923
        %v3032 = vunpack.c.l.b16 %v2924
        %v3033 = vunpack.c.l.b16 %v2925
        %v3034 = vunpack.c.l.b16 %v2926
        %v3035 = vunpack.c.l.b16 %v2927
        %v3036 = vunpack.c.l.b16 %v2928
        %v3037 = vunpack.c.l.b16 %v2929
        %v3038 = vpack.c.b16 %v3023, %v3022
        %v3039 = vpack.c.b16 %v3025, %v3024
        %v3040 = vpack.c.b16 %v3027, %v3026
        %v3041 = vpack.c.b16 %v3029, %v3028
        %v3042 = vpack.c.b16 %v3031, %v3030
        %v3043 = vpack.c.b16 %v3033, %v3032
        %v3044 = vpack.c.b16 %v3035, %v3034
        %v3045 = vpack.c.b16 %v3037, %v3036
        %3054 = vmatprep.subr.bf16.mxu0 0
        %3055 = vmatpush1.bf16.msra.mxu0 %v3038
        %3056 = vmatprep.subr.bf16.mxu0 0
        %3057 = vmatpush1.bf16.msra.mxu0 %v3039
        %3058 = vmatprep.subr.bf16.mxu0 0
        %3059 = vmatpush1.bf16.msra.mxu0 %v3040
        %3060 = vmatprep.subr.bf16.mxu0 0
        %3061 = vmatpush1.bf16.msra.mxu0 %v3041
        %3062 = vmatprep.subr.bf16.mxu0 0
        %3063 = vmatpush1.bf16.msra.mxu0 %v3042
        %3064 = vmatprep.subr.bf16.mxu0 0
        %3065 = vmatpush1.bf16.msra.mxu0 %v3043
        %3066 = vmatprep.subr.bf16.mxu0 0
        %3067 = vmatpush1.bf16.msra.mxu0 %v3044
        %3068 = vmatprep.subr.bf16.mxu0 0
        %3069 = vmatpush1.bf16.msra.mxu0 %v3045
        %3070 = vmatprep.subr.bf16.mxu0 0
        %3071 = vmatpush1.bf16.msra.mxu0 0
        %3072 = vmatprep.subr.bf16.mxu0 0
        %3073 = vmatpush1.bf16.msra.mxu0 0
        %3074 = vmatprep.subr.bf16.mxu0 0
        %3075 = vmatpush1.bf16.msra.mxu0 0
        %3076 = vmatprep.subr.bf16.mxu0 0
        %3077 = vmatpush1.bf16.msra.mxu0 0
        %3078 = vmatprep.subr.bf16.mxu0 0
        %3079 = vmatpush1.bf16.msra.mxu0 0
        %3080 = vmatprep.subr.bf16.mxu0 0
        %3081 = vmatpush1.bf16.msra.mxu0 0
        %3082 = vmatprep.subr.bf16.mxu0 0
        %3083 = vmatpush1.bf16.msra.mxu0 0
        %3084 = vmatprep.subr.bf16.mxu0 0
        %3085 = vmatpush1.bf16.msra.mxu0 0
        %3086 = vmatprep.mubr.bf16.mxu0 0
        %3087 = vmatmul.mubr.bf16.gmra.mrb[0].mxu0 %v2935
        %v3088 = vpop.f32.mrb[0].mxu0
        %v3089 = vadd.f32 0.0, %v3088
        %v3090 = vpop.f32.mrb[0].mxu0
        %v3091 = vpop.f32.mrb[0].mxu0
        %v3092 = vadd.f32 0.0, %v3091
        %v3093 = vpop.f32.mrb[0].mxu0
        %3094 = vmatprep.mubr.bf16.mxu0 0
        %3095 = vmatmul.mubr.bf16.gmra.mrb[0].mxu0 %v2937
        %v3096 = vpop.f32.mrb[0].mxu0
        %v3097 = vadd.f32 0.0, %v3096
        %v3098 = vpop.f32.mrb[0].mxu0
        %v3099 = vpop.f32.mrb[0].mxu0
        %v3100 = vadd.f32 0.0, %v3099
        %v3101 = vpop.f32.mrb[0].mxu0
        %3102 = vmatprep.mubr.bf16.mxu0 0
        %3103 = vmatmul.mubr.bf16.gmra.mrb[0].mxu0 %v2939
        %v3104 = vpop.f32.mrb[0].mxu0
        %v3105 = vadd.f32 0.0, %v3104
        %v3106 = vpop.f32.mrb[0].mxu0
        %v3107 = vpop.f32.mrb[0].mxu0
        %v3108 = vadd.f32 0.0, %v3107
        %v3109 = vpop.f32.mrb[0].mxu0
        %3110 = vmatprep.mubr.bf16.mxu0 0
        %3111 = vmatmul.mubr.bf16.gmra.mrb[0].mxu0 %v2941
        %v3112 = vpop.f32.mrb[0].mxu0
        %v3113 = vadd.f32 0.0, %v3112
        %v3114 = vpop.f32.mrb[0].mxu0
        %v3115 = vpop.f32.mrb[0].mxu0
        %v3116 = vadd.f32 0.0, %v3115
        %v3117 = vpop.f32.mrb[0].mxu0
        %3118 = vmatprep.mubr.bf16.mxu0 0
        %3119 = vmatmul.mubr.bf16.gmra.mrb[0].mxu0 %v2943
        %v3120 = vpop.f32.mrb[0].mxu0
        %v3121 = vadd.f32 0.0, %v3120
        %v3122 = vpop.f32.mrb[0].mxu0
        %v3123 = vpop.f32.mrb[0].mxu0
        %v3124 = vadd.f32 0.0, %v3123
        %v3125 = vpop.f32.mrb[0].mxu0
        %3126 = vmatprep.mubr.bf16.mxu0 0
        %3127 = vmatmul.mubr.bf16.gmra.mrb[0].mxu0 %v2945
        %v3128 = vpop.f32.mrb[0].mxu0
        %v3129 = vadd.f32 0.0, %v3128
        %v3130 = vpop.f32.mrb[0].mxu0
        %v3131 = vpop.f32.mrb[0].mxu0
        %v3132 = vadd.f32 0.0, %v3131
        %v3133 = vpop.f32.mrb[0].mxu0
        %3134 = vmatprep.mubr.bf16.mxu0 0
        %3135 = vmatmul.mubr.bf16.gmra.mrb[0].mxu0 %v2947
        %v3136 = vpop.f32.mrb[0].mxu0
        %v3137 = vadd.f32 0.0, %v3136
        %v3138 = vpop.f32.mrb[0].mxu0
        %v3139 = vpop.f32.mrb[0].mxu0
        %v3140 = vadd.f32 0.0, %v3139
        %v3141 = vpop.f32.mrb[0].mxu0
        %3142 = vmatprep.mubr.bf16.mxu0 0
        %3143 = vmatmul.mubr.bf16.gmra.mrb[0].mxu0 %v2949
        %v3144 = vpop.f32.mrb[0].mxu0
        %v3145 = vadd.f32 0.0, %v3144
        %v3146 = vpop.f32.mrb[0].mxu0
        %v3147 = vpop.f32.mrb[0].mxu0
        %v3148 = vadd.f32 0.0, %v3147
        %v3149 = vpop.f32.mrb[0].mxu0
        %3150 = vmatprep.mubr.bf16.mxu0 0
        %3151 = vmatmul.mubr.bf16.gmra.mrb[0].mxu0 %v2951
        %v3152 = vpop.f32.mrb[0].mxu0
        %v3153 = vadd.f32 0.0, %v3152
        %v3154 = vpop.f32.mrb[0].mxu0
        %v3155 = vpop.f32.mrb[0].mxu0
        %v3156 = vadd.f32 0.0, %v3155
        %v3157 = vpop.f32.mrb[0].mxu0
        %3158 = vmatprep.mubr.bf16.mxu0 0
        %3159 = vmatmul.mubr.bf16.gmra.mrb[0].mxu0 %v2953
        %v3160 = vpop.f32.mrb[0].mxu0
        %v3161 = vadd.f32 0.0, %v3160
        %v3162 = vpop.f32.mrb[0].mxu0
        %v3163 = vpop.f32.mrb[0].mxu0
        %v3164 = vadd.f32 0.0, %v3163
        %v3165 = vpop.f32.mrb[0].mxu0
        %3166 = vmatprep.mubr.bf16.mxu0 0
        %3167 = vmatmul.mubr.bf16.gmra.mrb[0].mxu0 %v2955
        %v3168 = vpop.f32.mrb[0].mxu0
        %v3169 = vadd.f32 0.0, %v3168
        %v3170 = vpop.f32.mrb[0].mxu0
        %v3171 = vpop.f32.mrb[0].mxu0
        %v3172 = vadd.f32 0.0, %v3171
        %v3173 = vpop.f32.mrb[0].mxu0
        %3174 = vmatprep.mubr.bf16.mxu0 0
        %3175 = vmatmul.mubr.bf16.gmra.mrb[0].mxu0 %v2957
        %v3176 = vpop.f32.mrb[0].mxu0
        %v3177 = vadd.f32 0.0, %v3176
        %v3178 = vpop.f32.mrb[0].mxu0
        %v3179 = vpop.f32.mrb[0].mxu0
        %v3180 = vadd.f32 0.0, %v3179
        %v3181 = vpop.f32.mrb[0].mxu0
        %3182 = vmatprep.mubr.bf16.mxu0 0
        %3183 = vmatmul.mubr.bf16.gmra.mrb[0].mxu0 %v2959
        %v3184 = vpop.f32.mrb[0].mxu0
        %v3185 = vadd.f32 0.0, %v3184
        %v3186 = vpop.f32.mrb[0].mxu0
        %v3187 = vpop.f32.mrb[0].mxu0
        %v3188 = vadd.f32 0.0, %v3187
        %v3189 = vpop.f32.mrb[0].mxu0
        %3190 = vmatprep.mubr.bf16.mxu0 0
        %3191 = vmatmul.mubr.bf16.gmra.mrb[0].mxu0 %v2961
        %v3192 = vpop.f32.mrb[0].mxu0
        %v3193 = vadd.f32 0.0, %v3192
        %v3194 = vpop.f32.mrb[0].mxu0
        %v3195 = vpop.f32.mrb[0].mxu0
        %v3196 = vadd.f32 0.0, %v3195
        %v3197 = vpop.f32.mrb[0].mxu0
        %3198 = vmatprep.mubr.bf16.mxu0 0
        %3199 = vmatmul.mubr.bf16.gmra.mrb[0].mxu0 %v2963
        %v3200 = vpop.f32.mrb[0].mxu0
        %v3201 = vadd.f32 0.0, %v3200
        %v3202 = vpop.f32.mrb[0].mxu0
        %v3203 = vpop.f32.mrb[0].mxu0
        %v3204 = vadd.f32 0.0, %v3203
        %v3205 = vpop.f32.mrb[0].mxu0
        %3206 = vmatprep.mubr.bf16.mxu0 0
        %3207 = vmatmul.mubr.bf16.gmra.mrb[0].mxu0 %v2965
        %v3208 = vpop.f32.mrb[0].mxu0
        %v3209 = vadd.f32 0.0, %v3208
        %v3210 = vpop.f32.mrb[0].mxu0
        %v3211 = vpop.f32.mrb[0].mxu0
        %v3212 = vadd.f32 0.0, %v3211
        %v3213 = vpop.f32.mrb[0].mxu0
        %3214 = vmatprep.mubr.bf16.mxu0 0
        %3215 = vmatmul.mubr.bf16.gmra.mrb[0].mxu0 %v2967
        %v3216 = vpop.f32.mrb[0].mxu0
        %v3217 = vadd.f32 0.0, %v3216
        %v3218 = vpop.f32.mrb[0].mxu0
        %v3219 = vpop.f32.mrb[0].mxu0
        %v3220 = vadd.f32 0.0, %v3219
        %v3221 = vpop.f32.mrb[0].mxu0
        %3222 = vmatprep.mubr.bf16.mxu0 0
        %3223 = vmatmul.mubr.bf16.gmra.mrb[0].mxu0 %v2969
        %v3224 = vpop.f32.mrb[0].mxu0
        %v3225 = vadd.f32 0.0, %v3224
        %v3226 = vpop.f32.mrb[0].mxu0
        %v3227 = vpop.f32.mrb[0].mxu0
        %v3228 = vadd.f32 0.0, %v3227
        %v3229 = vpop.f32.mrb[0].mxu0
        %3230 = vmatprep.mubr.bf16.mxu0 0
        %3231 = vmatmul.mubr.bf16.gmra.mrb[0].mxu0 %v2971
        %v3232 = vpop.f32.mrb[0].mxu0
        %v3233 = vadd.f32 0.0, %v3232
        %v3234 = vpop.f32.mrb[0].mxu0
        %v3235 = vpop.f32.mrb[0].mxu0
        %v3236 = vadd.f32 0.0, %v3235
        %v3237 = vpop.f32.mrb[0].mxu0
        %3238 = vmatprep.mubr.bf16.mxu0 0
        %3239 = vmatmul.mubr.bf16.gmra.mrb[0].mxu0 %v2973
        %v3240 = vpop.f32.mrb[0].mxu0
        %v3241 = vadd.f32 0.0, %v3240
        %v3242 = vpop.f32.mrb[0].mxu0
        %v3243 = vpop.f32.mrb[0].mxu0
        %v3244 = vadd.f32 0.0, %v3243
        %v3245 = vpop.f32.mrb[0].mxu0
        %3246 = vmatprep.mubr.bf16.mxu0 0
        %3247 = vmatmul.mubr.bf16.gmra.mrb[0].mxu0 %v2975
        %v3248 = vpop.f32.mrb[0].mxu0
        %v3249 = vadd.f32 0.0, %v3248
        %v3250 = vpop.f32.mrb[0].mxu0
        %v3251 = vpop.f32.mrb[0].mxu0
        %v3252 = vadd.f32 0.0, %v3251
        %v3253 = vpop.f32.mrb[0].mxu0
        %3254 = vmatprep.mubr.bf16.mxu0 0
        %3255 = vmatmul.mubr.bf16.gmra.mrb[0].mxu0 %v2977
        %v3256 = vpop.f32.mrb[0].mxu0
        %v3257 = vadd.f32 0.0, %v3256
        %v3258 = vpop.f32.mrb[0].mxu0
        %v3259 = vpop.f32.mrb[0].mxu0
        %v3260 = vadd.f32 0.0, %v3259
        %v3261 = vpop.f32.mrb[0].mxu0
        %3262 = vmatprep.mubr.bf16.mxu0 0
        %3263 = vmatmul.mubr.bf16.gmra.mrb[0].mxu0 %v2979
        %v3264 = vpop.f32.mrb[0].mxu0
        %v3265 = vadd.f32 0.0, %v3264
        %v3266 = vpop.f32.mrb[0].mxu0
        %v3267 = vpop.f32.mrb[0].mxu0
        %v3268 = vadd.f32 0.0, %v3267
        %v3269 = vpop.f32.mrb[0].mxu0
        %3270 = vmatprep.mubr.bf16.mxu0 0
        %3271 = vmatmul.mubr.bf16.gmra.mrb[0].mxu0 %v2981
        %v3272 = vpop.f32.mrb[0].mxu0
        %v3273 = vadd.f32 0.0, %v3272
        %v3274 = vpop.f32.mrb[0].mxu0
        %v3275 = vpop.f32.mrb[0].mxu0
        %v3276 = vadd.f32 0.0, %v3275
        %v3277 = vpop.f32.mrb[0].mxu0
        %3278 = vdwg.mxu0
        %v3279 = vadd.f32 %v2864, %v3089
        %v3280 = vadd.f32 %v2865, %v3092
        %v3281 = vadd.f32 %v2866, %v3097
        %v3282 = vadd.f32 %v2867, %v3100
        %v3283 = vadd.f32 %v2868, %v3105
        %v3284 = vadd.f32 %v2869, %v3108
        %v3285 = vadd.f32 %v2870, %v3113
        %v3286 = vadd.f32 %v2871, %v3116
        %v3287 = vadd.f32 %v2872, %v3121
        %v3288 = vadd.f32 %v2873, %v3124
        %v3289 = vadd.f32 %v2874, %v3129
        %v3290 = vadd.f32 %v2875, %v3132
        %v3291 = vadd.f32 %v2876, %v3137
        %v3292 = vadd.f32 %v2877, %v3140
        %v3293 = vadd.f32 %v2878, %v3145
        %v3294 = vadd.f32 %v2879, %v3148
        %v3295 = vadd.f32 %v2880, %v3153
        %v3296 = vadd.f32 %v2881, %v3156
        %v3297 = vadd.f32 %v2882, %v3161
        %v3298 = vadd.f32 %v2883, %v3164
        %v3299 = vadd.f32 %v2884, %v3169
        %v3300 = vadd.f32 %v2885, %v3172
        %v3301 = vadd.f32 %v2886, %v3177
        %v3302 = vadd.f32 %v2887, %v3180
        %v3303 = vadd.f32 %v2888, %v3185
        %v3304 = vadd.f32 %v2889, %v3188
        %v3305 = vadd.f32 %v2890, %v3193
        %v3306 = vadd.f32 %v2891, %v3196
        %v3307 = vadd.f32 %v2892, %v3201
        %v3308 = vadd.f32 %v2893, %v3204
        %v3309 = vadd.f32 %v2894, %v3209
        %v3310 = vadd.f32 %v2895, %v3212
        %v3311 = vadd.f32 %v2896, %v3217
        %v3312 = vadd.f32 %v2897, %v3220
        %v3313 = vadd.f32 %v2898, %v3225
        %v3314 = vadd.f32 %v2899, %v3228
        %v3315 = vadd.f32 %v2900, %v3233
        %v3316 = vadd.f32 %v2901, %v3236
        %v3317 = vadd.f32 %v2902, %v3241
        %v3318 = vadd.f32 %v2903, %v3244
        %v3319 = vadd.f32 %v2904, %v3249
        %v3320 = vadd.f32 %v2905, %v3252
        %v3321 = vadd.f32 %v2906, %v3257
        %v3322 = vadd.f32 %v2907, %v3260
        %v3323 = vadd.f32 %v2908, %v3265
        %v3324 = vadd.f32 %v2909, %v3268
        %v3325 = vadd.f32 %v2910, %v3273
        %v3326 = vadd.f32 %v2911, %v3276
        %v3327 = vld [vmem:[%s206 + $0x18] sm:$0xf]
        %v3328 = vld [vmem:[%s206 + $0x1c] sm:$0xf]
        %v3329 = vld [vmem:[%s206 + $0x20] sm:$0xf]
        %v3330 = vld [vmem:[%s206 + $0x24] sm:$0xf]
        %v3331 = vld [vmem:[%s206 + $0x28] sm:$0xf]
        %v3332 = vld [vmem:[%s206 + $0x2c] sm:$0xf]
        %v3333 = vld [vmem:[%s206 + $0x30] sm:$0xf]
        %v3334 = vld [vmem:[%s206 + $0x34] sm:$0xf]
        %v3335 = vld [vmem:[%s206 + $0x38] sm:$0xf]
        %v3336 = vld [vmem:[%s206 + $0x3c] sm:$0xf]
        %v3337 = vld [vmem:[%s206 + $0x40] sm:$0xf]
        %v3338 = vld [vmem:[%s206 + $0x44] sm:$0xf]
        %v3339 = vld [vmem:[%s206 + $0x48] sm:$0xf]
        %v3340 = vld [vmem:[%s206 + $0x4c] sm:$0xf]
        %v3341 = vld [vmem:[%s206 + $0x50] sm:$0xf]
        %v3342 = vld [vmem:[%s206 + $0x54] sm:$0xf]
        %v3343 = vld [vmem:[%s206 + $0x58] sm:$0xf]
        %v3344 = vld [vmem:[%s206 + $0x5c] sm:$0xf]
        %v3345 = vld [vmem:[%s206 + $0x60] sm:$0xf]
        %v3346 = vld [vmem:[%s206 + $0x64] sm:$0xf]
        %v3347 = vld [vmem:[%s206 + $0x68] sm:$0xf]
        %v3348 = vld [vmem:[%s206 + $0x6c] sm:$0xf]
        %v3349 = vld [vmem:[%s206 + $0x70] sm:$0xf]
        %v3350 = vld [vmem:[%s206 + $0x74] sm:$0xf]
        %v3351 = vld [vmem:[%s206 + $0x78] sm:$0xf]
        %v3352 = vld [vmem:[%s206 + $0x7c] sm:$0xf]
        %v3353 = vld [vmem:[%s206 + $0x80] sm:$0xf]
        %v3354 = vld [vmem:[%s206 + $0x84] sm:$0xf]
        %v3355 = vld [vmem:[%s206 + $0x88] sm:$0xf]
        %v3356 = vld [vmem:[%s206 + $0x8c] sm:$0xf]
        %v3357 = vld [vmem:[%s206 + $0x90] sm:$0xf]
        %v3358 = vld [vmem:[%s206 + $0x94] sm:$0xf]
        %v3359 = vld [vmem:[%s206 + $0x98] sm:$0xf]
        %v3360 = vld [vmem:[%s206 + $0x9c] sm:$0xf]
        %v3361 = vld [vmem:[%s206 + $0xa0] sm:$0xf]
        %v3362 = vld [vmem:[%s206 + $0xa4] sm:$0xf]
        %v3363 = vld [vmem:[%s206 + $0xa8] sm:$0xf]
        %v3364 = vld [vmem:[%s206 + $0xac] sm:$0xf]
        %v3365 = vld [vmem:[%s206 + $0xb0] sm:$0xf]
        %v3366 = vld [vmem:[%s206 + $0xb4] sm:$0xf]
        %v3367 = vld [vmem:[%s206 + $0xb8] sm:$0xf]
        %v3368 = vld [vmem:[%s206 + $0xbc] sm:$0xf]
        %v3369 = vld [vmem:[%s206 + $0xc0] sm:$0xf]
        %v3370 = vld [vmem:[%s206 + $0xc4] sm:$0xf]
        %v3371 = vld [vmem:[%s206 + $0xc8] sm:$0xf]
        %v3372 = vld [vmem:[%s206 + $0xcc] sm:$0xf]
        %v3373 = vld [vmem:[%s206 + $0xd0] sm:$0xf]
        %v3374 = vld [vmem:[%s206 + $0xd4] sm:$0xf]
        %s3375 = scalar_lea.vmem [#allocation5], 384
        %v3376 = vld [vmem:[%s3375] sm:$0xf]
        %v3377 = vld [vmem:[%s3375 + $0x4] sm:$0xf]
        %v3378 = vld [vmem:[%s3375 + $0x8] sm:$0xf]
        %v3379 = vld [vmem:[%s3375 + $0xc] sm:$0xf]
        %v3380 = vld [vmem:[%s3375 + $0x10] sm:$0xf]
        %v3381 = vld [vmem:[%s3375 + $0x14] sm:$0xf]
        %v3382 = vld [vmem:[%s3375 + $0x18] sm:$0xf]
        %v3383 = vld [vmem:[%s3375 + $0x1c] sm:$0xf]
        %v3384 = vld [vmem:[%s3375 + $0x20] sm:$0xf]
        %v3385 = vld [vmem:[%s3375 + $0x24] sm:$0xf]
        %v3386 = vld [vmem:[%s3375 + $0x28] sm:$0xf]
        %v3387 = vld [vmem:[%s3375 + $0x2c] sm:$0xf]
        %v3388 = vld [vmem:[%s3375 + $0x30] sm:$0xf]
        %v3389 = vld [vmem:[%s3375 + $0x34] sm:$0xf]
        %v3390 = vld [vmem:[%s3375 + $0x38] sm:$0xf]
        %v3391 = vld [vmem:[%s3375 + $0x3c] sm:$0xf]
        %v3440 = vunpack.c.l.b16 %v3327
        %v3441 = vunpack.c.l.b16 %v3328
        %v3442 = vunpack.c.l.b16 %v3329
        %v3443 = vunpack.c.l.b16 %v3330
        %v3444 = vunpack.c.l.b16 %v3331
        %v3445 = vunpack.c.l.b16 %v3332
        %v3446 = vunpack.c.l.b16 %v3333
        %v3447 = vunpack.c.l.b16 %v3334
        %v3448 = vunpack.c.l.b16 %v3335
        %v3449 = vunpack.c.l.b16 %v3336
        %v3450 = vunpack.c.l.b16 %v3337
        %v3451 = vunpack.c.l.b16 %v3338
        %v3452 = vunpack.c.l.b16 %v3339
        %v3453 = vunpack.c.l.b16 %v3340
        %v3454 = vunpack.c.l.b16 %v3341
        %v3455 = vunpack.c.l.b16 %v3342
        %v3456 = vunpack.c.l.b16 %v3343
        %v3457 = vunpack.c.l.b16 %v3344
        %v3458 = vunpack.c.l.b16 %v3345
        %v3459 = vunpack.c.l.b16 %v3346
        %v3460 = vunpack.c.l.b16 %v3347
        %v3461 = vunpack.c.l.b16 %v3348
        %v3462 = vunpack.c.l.b16 %v3349
        %v3463 = vunpack.c.l.b16 %v3350
        %v3464 = vunpack.c.l.b16 %v3351
        %v3465 = vunpack.c.l.b16 %v3352
        %v3466 = vunpack.c.l.b16 %v3353
        %v3467 = vunpack.c.l.b16 %v3354
        %v3468 = vunpack.c.l.b16 %v3355
        %v3469 = vunpack.c.l.b16 %v3356
        %v3470 = vunpack.c.l.b16 %v3357
        %v3471 = vunpack.c.l.b16 %v3358
        %v3472 = vunpack.c.l.b16 %v3359
        %v3473 = vunpack.c.l.b16 %v3360
        %v3474 = vunpack.c.l.b16 %v3361
        %v3475 = vunpack.c.l.b16 %v3362
        %v3476 = vunpack.c.l.b16 %v3363
        %v3477 = vunpack.c.l.b16 %v3364
        %v3478 = vunpack.c.l.b16 %v3365
        %v3479 = vunpack.c.l.b16 %v3366
        %v3480 = vunpack.c.l.b16 %v3367
        %v3481 = vunpack.c.l.b16 %v3368
        %v3482 = vunpack.c.l.b16 %v3369
        %v3483 = vunpack.c.l.b16 %v3370
        %v3484 = vunpack.c.l.b16 %v3371
        %v3485 = vunpack.c.l.b16 %v3372
        %v3486 = vunpack.c.l.b16 %v3373
        %v3487 = vunpack.c.l.b16 %v3374
        %v3488 = vpack.c.b16 %v3441, %v3440
        %v3489 = vpack.c.b16 %v3443, %v3442
        %v3490 = vpack.c.b16 %v3445, %v3444
        %v3491 = vpack.c.b16 %v3447, %v3446
        %v3492 = vpack.c.b16 %v3449, %v3448
        %v3493 = vpack.c.b16 %v3451, %v3450
        %v3494 = vpack.c.b16 %v3453, %v3452
        %v3495 = vpack.c.b16 %v3455, %v3454
        %v3496 = vpack.c.b16 %v3457, %v3456
        %v3497 = vpack.c.b16 %v3459, %v3458
        %v3498 = vpack.c.b16 %v3461, %v3460
        %v3499 = vpack.c.b16 %v3463, %v3462
        %v3500 = vpack.c.b16 %v3465, %v3464
        %v3501 = vpack.c.b16 %v3467, %v3466
        %v3502 = vpack.c.b16 %v3469, %v3468
        %v3503 = vpack.c.b16 %v3471, %v3470
        %v3504 = vpack.c.b16 %v3473, %v3472
        %v3505 = vpack.c.b16 %v3475, %v3474
        %v3506 = vpack.c.b16 %v3477, %v3476
        %v3507 = vpack.c.b16 %v3479, %v3478
        %v3508 = vpack.c.b16 %v3481, %v3480
        %v3509 = vpack.c.b16 %v3483, %v3482
        %v3510 = vpack.c.b16 %v3485, %v3484
        %v3511 = vpack.c.b16 %v3487, %v3486
        %v3552 = vunpack.c.l.b16 %v3376
        %v3553 = vunpack.c.l.b16 %v3377
        %v3554 = vunpack.c.l.b16 %v3378
        %v3555 = vunpack.c.l.b16 %v3379
        %v3556 = vunpack.c.l.b16 %v3380
        %v3557 = vunpack.c.l.b16 %v3381
        %v3558 = vunpack.c.l.b16 %v3382
        %v3559 = vunpack.c.l.b16 %v3383
        %v3560 = vunpack.c.l.b16 %v3384
        %v3561 = vunpack.c.l.b16 %v3385
        %v3562 = vunpack.c.l.b16 %v3386
        %v3563 = vunpack.c.l.b16 %v3387
        %v3564 = vunpack.c.l.b16 %v3388
        %v3565 = vunpack.c.l.b16 %v3389
        %v3566 = vunpack.c.l.b16 %v3390
        %v3567 = vunpack.c.l.b16 %v3391
        %v3568 = vpack.c.b16 %v3553, %v3552
        %v3569 = vpack.c.b16 %v3555, %v3554
        %v3570 = vpack.c.b16 %v3557, %v3556
        %v3571 = vpack.c.b16 %v3559, %v3558
        %v3572 = vpack.c.b16 %v3561, %v3560
        %v3573 = vpack.c.b16 %v3563, %v3562
        %v3574 = vpack.c.b16 %v3565, %v3564
        %v3575 = vpack.c.b16 %v3567, %v3566
        %3584 = vmatprep.subr.bf16.mxu0 0
        %3585 = vmatpush1.bf16.msra.mxu0 %v3568
        %3586 = vmatprep.subr.bf16.mxu0 0
        %3587 = vmatpush1.bf16.msra.mxu0 %v3569
        %3588 = vmatprep.subr.bf16.mxu0 0
        %3589 = vmatpush1.bf16.msra.mxu0 %v3570
        %3590 = vmatprep.subr.bf16.mxu0 0
        %3591 = vmatpush1.bf16.msra.mxu0 %v3571
        %3592 = vmatprep.subr.bf16.mxu0 0
        %3593 = vmatpush1.bf16.msra.mxu0 %v3572
        %3594 = vmatprep.subr.bf16.mxu0 0
        %3595 = vmatpush1.bf16.msra.mxu0 %v3573
        %3596 = vmatprep.subr.bf16.mxu0 0
        %3597 = vmatpush1.bf16.msra.mxu0 %v3574
        %3598 = vmatprep.subr.bf16.mxu0 0
        %3599 = vmatpush1.bf16.msra.mxu0 %v3575
        %3600 = vmatprep.subr.bf16.mxu0 0
        %3601 = vmatpush1.bf16.msra.mxu0 0
        %3602 = vmatprep.subr.bf16.mxu0 0
        %3603 = vmatpush1.bf16.msra.mxu0 0
        %3604 = vmatprep.subr.bf16.mxu0 0
        %3605 = vmatpush1.bf16.msra.mxu0 0
        %3606 = vmatprep.subr.bf16.mxu0 0
        %3607 = vmatpush1.bf16.msra.mxu0 0
        %3608 = vmatprep.subr.bf16.mxu0 0
        %3609 = vmatpush1.bf16.msra.mxu0 0
        %3610 = vmatprep.subr.bf16.mxu0 0
        %3611 = vmatpush1.bf16.msra.mxu0 0
        %3612 = vmatprep.subr.bf16.mxu0 0
        %3613 = vmatpush1.bf16.msra.mxu0 0
        %3614 = vmatprep.subr.bf16.mxu0 0
        %3615 = vmatpush1.bf16.msra.mxu0 0
        %3616 = vmatprep.mubr.bf16.mxu0 0
        %3617 = vmatmul.mubr.bf16.gmra.mrb[0].mxu0 %v3488
        %v3618 = vpop.f32.mrb[0].mxu0
        %v3619 = vadd.f32 0.0, %v3618
        %v3620 = vpop.f32.mrb[0].mxu0
        %v3621 = vpop.f32.mrb[0].mxu0
        %v3622 = vadd.f32 0.0, %v3621
        %v3623 = vpop.f32.mrb[0].mxu0
        %3624 = vmatprep.mubr.bf16.mxu0 0
        %3625 = vmatmul.mubr.bf16.gmra.mrb[0].mxu0 %v3489
        %v3626 = vpop.f32.mrb[0].mxu0
        %v3627 = vadd.f32 0.0, %v3626
        %v3628 = vpop.f32.mrb[0].mxu0
        %v3629 = vpop.f32.mrb[0].mxu0
        %v3630 = vadd.f32 0.0, %v3629
        %v3631 = vpop.f32.mrb[0].mxu0
        %3632 = vmatprep.mubr.bf16.mxu0 0
        %3633 = vmatmul.mubr.bf16.gmra.mrb[0].mxu0 %v3490
        %v3634 = vpop.f32.mrb[0].mxu0
        %v3635 = vadd.f32 0.0, %v3634
        %v3636 = vpop.f32.mrb[0].mxu0
        %v3637 = vpop.f32.mrb[0].mxu0
        %v3638 = vadd.f32 0.0, %v3637
        %v3639 = vpop.f32.mrb[0].mxu0
        %3640 = vmatprep.mubr.bf16.mxu0 0
        %3641 = vmatmul.mubr.bf16.gmra.mrb[0].mxu0 %v3491
        %v3642 = vpop.f32.mrb[0].mxu0
        %v3643 = vadd.f32 0.0, %v3642
        %v3644 = vpop.f32.mrb[0].mxu0
        %v3645 = vpop.f32.mrb[0].mxu0
        %v3646 = vadd.f32 0.0, %v3645
        %v3647 = vpop.f32.mrb[0].mxu0
        %3648 = vmatprep.mubr.bf16.mxu0 0
        %3649 = vmatmul.mubr.bf16.gmra.mrb[0].mxu0 %v3492
        %v3650 = vpop.f32.mrb[0].mxu0
        %v3651 = vadd.f32 0.0, %v3650
        %v3652 = vpop.f32.mrb[0].mxu0
        %v3653 = vpop.f32.mrb[0].mxu0
        %v3654 = vadd.f32 0.0, %v3653
        %v3655 = vpop.f32.mrb[0].mxu0
        %3656 = vmatprep.mubr.bf16.mxu0 0
        %3657 = vmatmul.mubr.bf16.gmra.mrb[0].mxu0 %v3493
        %v3658 = vpop.f32.mrb[0].mxu0
        %v3659 = vadd.f32 0.0, %v3658
        %v3660 = vpop.f32.mrb[0].mxu0
        %v3661 = vpop.f32.mrb[0].mxu0
        %v3662 = vadd.f32 0.0, %v3661
        %v3663 = vpop.f32.mrb[0].mxu0
        %3664 = vmatprep.mubr.bf16.mxu0 0
        %3665 = vmatmul.mubr.bf16.gmra.mrb[0].mxu0 %v3494
        %v3666 = vpop.f32.mrb[0].mxu0
        %v3667 = vadd.f32 0.0, %v3666
        %v3668 = vpop.f32.mrb[0].mxu0
        %v3669 = vpop.f32.mrb[0].mxu0
        %v3670 = vadd.f32 0.0, %v3669
        %v3671 = vpop.f32.mrb[0].mxu0
        %3672 = vmatprep.mubr.bf16.mxu0 0
        %3673 = vmatmul.mubr.bf16.gmra.mrb[0].mxu0 %v3495
        %v3674 = vpop.f32.mrb[0].mxu0
        %v3675 = vadd.f32 0.0, %v3674
        %v3676 = vpop.f32.mrb[0].mxu0
        %v3677 = vpop.f32.mrb[0].mxu0
        %v3678 = vadd.f32 0.0, %v3677
        %v3679 = vpop.f32.mrb[0].mxu0
        %3680 = vmatprep.mubr.bf16.mxu0 0
        %3681 = vmatmul.mubr.bf16.gmra.mrb[0].mxu0 %v3496
        %v3682 = vpop.f32.mrb[0].mxu0
        %v3683 = vadd.f32 0.0, %v3682
        %v3684 = vpop.f32.mrb[0].mxu0
        %v3685 = vpop.f32.mrb[0].mxu0
        %v3686 = vadd.f32 0.0, %v3685
        %v3687 = vpop.f32.mrb[0].mxu0
        %3688 = vmatprep.mubr.bf16.mxu0 0
        %3689 = vmatmul.mubr.bf16.gmra.mrb[0].mxu0 %v3497
        %v3690 = vpop.f32.mrb[0].mxu0
        %v3691 = vadd.f32 0.0, %v3690
        %v3692 = vpop.f32.mrb[0].mxu0
        %v3693 = vpop.f32.mrb[0].mxu0
        %v3694 = vadd.f32 0.0, %v3693
        %v3695 = vpop.f32.mrb[0].mxu0
        %3696 = vmatprep.mubr.bf16.mxu0 0
        %3697 = vmatmul.mubr.bf16.gmra.mrb[0].mxu0 %v3498
        %v3698 = vpop.f32.mrb[0].mxu0
        %v3699 = vadd.f32 0.0, %v3698
        %v3700 = vpop.f32.mrb[0].mxu0
        %v3701 = vpop.f32.mrb[0].mxu0
        %v3702 = vadd.f32 0.0, %v3701
        %v3703 = vpop.f32.mrb[0].mxu0
        %3704 = vmatprep.mubr.bf16.mxu0 0
        %3705 = vmatmul.mubr.bf16.gmra.mrb[0].mxu0 %v3499
        %v3706 = vpop.f32.mrb[0].mxu0
        %v3707 = vadd.f32 0.0, %v3706
        %v3708 = vpop.f32.mrb[0].mxu0
        %v3709 = vpop.f32.mrb[0].mxu0
        %v3710 = vadd.f32 0.0, %v3709
        %v3711 = vpop.f32.mrb[0].mxu0
        %3712 = vmatprep.mubr.bf16.mxu0 0
        %3713 = vmatmul.mubr.bf16.gmra.mrb[0].mxu0 %v3500
        %v3714 = vpop.f32.mrb[0].mxu0
        %v3715 = vadd.f32 0.0, %v3714
        %v3716 = vpop.f32.mrb[0].mxu0
        %v3717 = vpop.f32.mrb[0].mxu0
        %v3718 = vadd.f32 0.0, %v3717
        %v3719 = vpop.f32.mrb[0].mxu0
        %3720 = vmatprep.mubr.bf16.mxu0 0
        %3721 = vmatmul.mubr.bf16.gmra.mrb[0].mxu0 %v3501
        %v3722 = vpop.f32.mrb[0].mxu0
        %v3723 = vadd.f32 0.0, %v3722
        %v3724 = vpop.f32.mrb[0].mxu0
        %v3725 = vpop.f32.mrb[0].mxu0
        %v3726 = vadd.f32 0.0, %v3725
        %v3727 = vpop.f32.mrb[0].mxu0
        %3728 = vmatprep.mubr.bf16.mxu0 0
        %3729 = vmatmul.mubr.bf16.gmra.mrb[0].mxu0 %v3502
        %v3730 = vpop.f32.mrb[0].mxu0
        %v3731 = vadd.f32 0.0, %v3730
        %v3732 = vpop.f32.mrb[0].mxu0
        %v3733 = vpop.f32.mrb[0].mxu0
        %v3734 = vadd.f32 0.0, %v3733
        %v3735 = vpop.f32.mrb[0].mxu0
        %3736 = vmatprep.mubr.bf16.mxu0 0
        %3737 = vmatmul.mubr.bf16.gmra.mrb[0].mxu0 %v3503
        %v3738 = vpop.f32.mrb[0].mxu0
        %v3739 = vadd.f32 0.0, %v3738
        %v3740 = vpop.f32.mrb[0].mxu0
        %v3741 = vpop.f32.mrb[0].mxu0
        %v3742 = vadd.f32 0.0, %v3741
        %v3743 = vpop.f32.mrb[0].mxu0
        %3744 = vmatprep.mubr.bf16.mxu0 0
        %3745 = vmatmul.mubr.bf16.gmra.mrb[0].mxu0 %v3504
        %v3746 = vpop.f32.mrb[0].mxu0
        %v3747 = vadd.f32 0.0, %v3746
        %v3748 = vpop.f32.mrb[0].mxu0
        %v3749 = vpop.f32.mrb[0].mxu0
        %v3750 = vadd.f32 0.0, %v3749
        %v3751 = vpop.f32.mrb[0].mxu0
        %3752 = vmatprep.mubr.bf16.mxu0 0
        %3753 = vmatmul.mubr.bf16.gmra.mrb[0].mxu0 %v3505
        %v3754 = vpop.f32.mrb[0].mxu0
        %v3755 = vadd.f32 0.0, %v3754
        %v3756 = vpop.f32.mrb[0].mxu0
        %v3757 = vpop.f32.mrb[0].mxu0
        %v3758 = vadd.f32 0.0, %v3757
        %v3759 = vpop.f32.mrb[0].mxu0
        %3760 = vmatprep.mubr.bf16.mxu0 0
        %3761 = vmatmul.mubr.bf16.gmra.mrb[0].mxu0 %v3506
        %v3762 = vpop.f32.mrb[0].mxu0
        %v3763 = vadd.f32 0.0, %v3762
        %v3764 = vpop.f32.mrb[0].mxu0
        %v3765 = vpop.f32.mrb[0].mxu0
        %v3766 = vadd.f32 0.0, %v3765
        %v3767 = vpop.f32.mrb[0].mxu0
        %3768 = vmatprep.mubr.bf16.mxu0 0
        %3769 = vmatmul.mubr.bf16.gmra.mrb[0].mxu0 %v3507
        %v3770 = vpop.f32.mrb[0].mxu0
        %v3771 = vadd.f32 0.0, %v3770
        %v3772 = vpop.f32.mrb[0].mxu0
        %v3773 = vpop.f32.mrb[0].mxu0
        %v3774 = vadd.f32 0.0, %v3773
        %v3775 = vpop.f32.mrb[0].mxu0
        %3776 = vmatprep.mubr.bf16.mxu0 0
        %3777 = vmatmul.mubr.bf16.gmra.mrb[0].mxu0 %v3508
        %v3778 = vpop.f32.mrb[0].mxu0
        %v3779 = vadd.f32 0.0, %v3778
        %v3780 = vpop.f32.mrb[0].mxu0
        %v3781 = vpop.f32.mrb[0].mxu0
        %v3782 = vadd.f32 0.0, %v3781
        %v3783 = vpop.f32.mrb[0].mxu0
        %3784 = vmatprep.mubr.bf16.mxu0 0
        %3785 = vmatmul.mubr.bf16.gmra.mrb[0].mxu0 %v3509
        %v3786 = vpop.f32.mrb[0].mxu0
        %v3787 = vadd.f32 0.0, %v3786
        %v3788 = vpop.f32.mrb[0].mxu0
        %v3789 = vpop.f32.mrb[0].mxu0
        %v3790 = vadd.f32 0.0, %v3789
        %v3791 = vpop.f32.mrb[0].mxu0
        %3792 = vmatprep.mubr.bf16.mxu0 0
        %3793 = vmatmul.mubr.bf16.gmra.mrb[0].mxu0 %v3510
        %v3794 = vpop.f32.mrb[0].mxu0
        %v3795 = vadd.f32 0.0, %v3794
        %v3796 = vpop.f32.mrb[0].mxu0
        %v3797 = vpop.f32.mrb[0].mxu0
        %v3798 = vadd.f32 0.0, %v3797
        %v3799 = vpop.f32.mrb[0].mxu0
        %3800 = vmatprep.mubr.bf16.mxu0 0
        %3801 = vmatmul.mubr.bf16.gmra.mrb[0].mxu0 %v3511
        %v3802 = vpop.f32.mrb[0].mxu0
        %v3803 = vadd.f32 0.0, %v3802
        %v3804 = vpop.f32.mrb[0].mxu0
        %v3805 = vpop.f32.mrb[0].mxu0
        %v3806 = vadd.f32 0.0, %v3805
        %v3807 = vpop.f32.mrb[0].mxu0
        %3808 = vdwg.mxu0
        %v3809 = vadd.f32 %v3279, %v3619
        %v3810 = vadd.f32 %v3280, %v3622
        %v3811 = vadd.f32 %v3281, %v3627
        %v3812 = vadd.f32 %v3282, %v3630
        %v3813 = vadd.f32 %v3283, %v3635
        %v3814 = vadd.f32 %v3284, %v3638
        %v3815 = vadd.f32 %v3285, %v3643
        %v3816 = vadd.f32 %v3286, %v3646
        %v3817 = vadd.f32 %v3287, %v3651
        %v3818 = vadd.f32 %v3288, %v3654
        %v3819 = vadd.f32 %v3289, %v3659
        %v3820 = vadd.f32 %v3290, %v3662
        %v3821 = vadd.f32 %v3291, %v3667
        %v3822 = vadd.f32 %v3292, %v3670
        %v3823 = vadd.f32 %v3293, %v3675
        %v3824 = vadd.f32 %v3294, %v3678
        %v3825 = vadd.f32 %v3295, %v3683
        %v3826 = vadd.f32 %v3296, %v3686
        %v3827 = vadd.f32 %v3297, %v3691
        %v3828 = vadd.f32 %v3298, %v3694
        %v3829 = vadd.f32 %v3299, %v3699
        %v3830 = vadd.f32 %v3300, %v3702
        %v3831 = vadd.f32 %v3301, %v3707
        %v3832 = vadd.f32 %v3302, %v3710
        %v3833 = vadd.f32 %v3303, %v3715
        %v3834 = vadd.f32 %v3304, %v3718
        %v3835 = vadd.f32 %v3305, %v3723
        %v3836 = vadd.f32 %v3306, %v3726
        %v3837 = vadd.f32 %v3307, %v3731
        %v3838 = vadd.f32 %v3308, %v3734
        %v3839 = vadd.f32 %v3309, %v3739
        %v3840 = vadd.f32 %v3310, %v3742
        %v3841 = vadd.f32 %v3311, %v3747
        %v3842 = vadd.f32 %v3312, %v3750
        %v3843 = vadd.f32 %v3313, %v3755
        %v3844 = vadd.f32 %v3314, %v3758
        %v3845 = vadd.f32 %v3315, %v3763
        %v3846 = vadd.f32 %v3316, %v3766
        %v3847 = vadd.f32 %v3317, %v3771
        %v3848 = vadd.f32 %v3318, %v3774
        %v3849 = vadd.f32 %v3319, %v3779
        %v3850 = vadd.f32 %v3320, %v3782
        %v3851 = vadd.f32 %v3321, %v3787
        %v3852 = vadd.f32 %v3322, %v3790
        %v3853 = vadd.f32 %v3323, %v3795
        %v3854 = vadd.f32 %v3324, %v3798
        %v3855 = vadd.f32 %v3325, %v3803
        %v3856 = vadd.f32 %v3326, %v3806
        %v3857 = vld [vmem:[%s206 + $0x18] sm:$0xf]
        %v3858 = vld [vmem:[%s206 + $0x1c] sm:$0xf]
        %v3859 = vld [vmem:[%s206 + $0x20] sm:$0xf]
        %v3860 = vld [vmem:[%s206 + $0x24] sm:$0xf]
        %v3861 = vld [vmem:[%s206 + $0x28] sm:$0xf]
        %v3862 = vld [vmem:[%s206 + $0x2c] sm:$0xf]
        %v3863 = vld [vmem:[%s206 + $0x30] sm:$0xf]
        %v3864 = vld [vmem:[%s206 + $0x34] sm:$0xf]
        %v3865 = vld [vmem:[%s206 + $0x38] sm:$0xf]
        %v3866 = vld [vmem:[%s206 + $0x3c] sm:$0xf]
        %v3867 = vld [vmem:[%s206 + $0x40] sm:$0xf]
        %v3868 = vld [vmem:[%s206 + $0x44] sm:$0xf]
        %v3869 = vld [vmem:[%s206 + $0x48] sm:$0xf]
        %v3870 = vld [vmem:[%s206 + $0x4c] sm:$0xf]
        %v3871 = vld [vmem:[%s206 + $0x50] sm:$0xf]
        %v3872 = vld [vmem:[%s206 + $0x54] sm:$0xf]
        %v3873 = vld [vmem:[%s206 + $0x58] sm:$0xf]
        %v3874 = vld [vmem:[%s206 + $0x5c] sm:$0xf]
        %v3875 = vld [vmem:[%s206 + $0x60] sm:$0xf]
        %v3876 = vld [vmem:[%s206 + $0x64] sm:$0xf]
        %v3877 = vld [vmem:[%s206 + $0x68] sm:$0xf]
        %v3878 = vld [vmem:[%s206 + $0x6c] sm:$0xf]
        %v3879 = vld [vmem:[%s206 + $0x70] sm:$0xf]
        %v3880 = vld [vmem:[%s206 + $0x74] sm:$0xf]
        %v3881 = vld [vmem:[%s206 + $0x78] sm:$0xf]
        %v3882 = vld [vmem:[%s206 + $0x7c] sm:$0xf]
        %v3883 = vld [vmem:[%s206 + $0x80] sm:$0xf]
        %v3884 = vld [vmem:[%s206 + $0x84] sm:$0xf]
        %v3885 = vld [vmem:[%s206 + $0x88] sm:$0xf]
        %v3886 = vld [vmem:[%s206 + $0x8c] sm:$0xf]
        %v3887 = vld [vmem:[%s206 + $0x90] sm:$0xf]
        %v3888 = vld [vmem:[%s206 + $0x94] sm:$0xf]
        %v3889 = vld [vmem:[%s206 + $0x98] sm:$0xf]
        %v3890 = vld [vmem:[%s206 + $0x9c] sm:$0xf]
        %v3891 = vld [vmem:[%s206 + $0xa0] sm:$0xf]
        %v3892 = vld [vmem:[%s206 + $0xa4] sm:$0xf]
        %v3893 = vld [vmem:[%s206 + $0xa8] sm:$0xf]
        %v3894 = vld [vmem:[%s206 + $0xac] sm:$0xf]
        %v3895 = vld [vmem:[%s206 + $0xb0] sm:$0xf]
        %v3896 = vld [vmem:[%s206 + $0xb4] sm:$0xf]
        %v3897 = vld [vmem:[%s206 + $0xb8] sm:$0xf]
        %v3898 = vld [vmem:[%s206 + $0xbc] sm:$0xf]
        %v3899 = vld [vmem:[%s206 + $0xc0] sm:$0xf]
        %v3900 = vld [vmem:[%s206 + $0xc4] sm:$0xf]
        %v3901 = vld [vmem:[%s206 + $0xc8] sm:$0xf]
        %v3902 = vld [vmem:[%s206 + $0xcc] sm:$0xf]
        %v3903 = vld [vmem:[%s206 + $0xd0] sm:$0xf]
        %v3904 = vld [vmem:[%s206 + $0xd4] sm:$0xf]
        %v3905 = vld [vmem:[%s206 + $0xd8] sm:$0x1]
        %s3906 = scalar_lea.vmem [#allocation5], 448
        %v3907 = vld [vmem:[%s3906] sm:$0xf]
        %v3908 = vld [vmem:[%s3906 + $0x4] sm:$0xf]
        %v3909 = vld [vmem:[%s3906 + $0x8] sm:$0xf]
        %v3910 = vld [vmem:[%s3906 + $0xc] sm:$0xf]
        %v3911 = vld [vmem:[%s3906 + $0x10] sm:$0xf]
        %v3912 = vld [vmem:[%s3906 + $0x14] sm:$0xf]
        %v3913 = vld [vmem:[%s3906 + $0x18] sm:$0xf]
        %v3914 = vld [vmem:[%s3906 + $0x1c] sm:$0xf]
        %v3915 = vld [vmem:[%s3906 + $0x20] sm:$0xf]
        %v3916 = vld [vmem:[%s3906 + $0x24] sm:$0xf]
        %v3917 = vld [vmem:[%s3906 + $0x28] sm:$0xf]
        %v3918 = vld [vmem:[%s3906 + $0x2c] sm:$0xf]
        %v3919 = vld [vmem:[%s3906 + $0x30] sm:$0xf]
        %v3920 = vld [vmem:[%s3906 + $0x34] sm:$0xf]
        %v3921 = vld [vmem:[%s3906 + $0x38] sm:$0xf]
        %v3922 = vld [vmem:[%s3906 + $0x3c] sm:$0xf]
        %v3972 = vunpack.c.l.b16 %v3857
        %v3973 = vunpack.c.l.b16 %v3858
        %v3974 = vunpack.c.l.b16 %v3859
        %v3975 = vunpack.c.l.b16 %v3860
        %v3976 = vunpack.c.l.b16 %v3861
        %v3977 = vunpack.c.l.b16 %v3862
        %v3978 = vunpack.c.l.b16 %v3863
        %v3979 = vunpack.c.l.b16 %v3864
        %v3980 = vunpack.c.l.b16 %v3865
        %v3981 = vunpack.c.l.b16 %v3866
        %v3982 = vunpack.c.l.b16 %v3867
        %v3983 = vunpack.c.l.b16 %v3868
        %v3984 = vunpack.c.l.b16 %v3869
        %v3985 = vunpack.c.l.b16 %v3870
        %v3986 = vunpack.c.l.b16 %v3871
        %v3987 = vunpack.c.l.b16 %v3872
        %v3988 = vunpack.c.l.b16 %v3873
        %v3989 = vunpack.c.l.b16 %v3874
        %v3990 = vunpack.c.l.b16 %v3875
        %v3991 = vunpack.c.l.b16 %v3876
        %v3992 = vunpack.c.l.b16 %v3877
        %v3993 = vunpack.c.l.b16 %v3878
        %v3994 = vunpack.c.l.b16 %v3879
        %v3995 = vunpack.c.l.b16 %v3880
        %v3996 = vunpack.c.l.b16 %v3881
        %v3997 = vunpack.c.l.b16 %v3882
        %v3998 = vunpack.c.l.b16 %v3883
        %v3999 = vunpack.c.l.b16 %v3884
        %v4000 = vunpack.c.l.b16 %v3885
        %v4001 = vunpack.c.l.b16 %v3886
        %v4002 = vunpack.c.l.b16 %v3887
        %v4003 = vunpack.c.l.b16 %v3888
        %v4004 = vunpack.c.l.b16 %v3889
        %v4005 = vunpack.c.l.b16 %v3890
        %v4006 = vunpack.c.l.b16 %v3891
        %v4007 = vunpack.c.l.b16 %v3892
        %v4008 = vunpack.c.l.b16 %v3893
        %v4009 = vunpack.c.l.b16 %v3894
        %v4010 = vunpack.c.l.b16 %v3895
        %v4011 = vunpack.c.l.b16 %v3896
        %v4012 = vunpack.c.l.b16 %v3897
        %v4013 = vunpack.c.l.b16 %v3898
        %v4014 = vunpack.c.l.b16 %v3899
        %v4015 = vunpack.c.l.b16 %v3900
        %v4016 = vunpack.c.l.b16 %v3901
        %v4017 = vunpack.c.l.b16 %v3902
        %v4018 = vunpack.c.l.b16 %v3903
        %v4019 = vunpack.c.l.b16 %v3904
        %v4020 = vunpack.c.l.b16 %v3905
        %v4021 = vpack.c.b16 %v3973, %v3972
        %v4022 = vpack.c.b16 %v3975, %v3974
        %v4023 = vpack.c.b16 %v3977, %v3976
        %v4024 = vpack.c.b16 %v3979, %v3978
        %v4025 = vpack.c.b16 %v3981, %v3980
        %v4026 = vpack.c.b16 %v3983, %v3982
        %v4027 = vpack.c.b16 %v3985, %v3984
        %v4028 = vpack.c.b16 %v3987, %v3986
        %v4029 = vpack.c.b16 %v3989, %v3988
        %v4030 = vpack.c.b16 %v3991, %v3990
        %v4031 = vpack.c.b16 %v3993, %v3992
        %v4032 = vpack.c.b16 %v3995, %v3994
        %v4033 = vpack.c.b16 %v3997, %v3996
        %v4034 = vpack.c.b16 %v3999, %v3998
        %v4035 = vpack.c.b16 %v4001, %v4000
        %v4036 = vpack.c.b16 %v4003, %v4002
        %v4037 = vpack.c.b16 %v4005, %v4004
        %v4038 = vpack.c.b16 %v4007, %v4006
        %v4039 = vpack.c.b16 %v4009, %v4008
        %v4040 = vpack.c.b16 %v4011, %v4010
        %v4041 = vpack.c.b16 %v4013, %v4012
        %v4042 = vpack.c.b16 %v4015, %v4014
        %v4043 = vpack.c.b16 %v4017, %v4016
        %v4044 = vpack.c.b16 %v4019, %v4018
        %v4045 = vpack.c.b16 %v4020, %v4020
        %v4047 = vshrl.u32 %v4021, 16
        %v4049 = vshll.u32 %v4021, 16
        %v4051 = vrot.slane %v4049, 1
        %v4052 = vor.u32 %v4047, %v4051
        %v4054 = vshll.u32 %v4022, 16
        %v4056 = vrot.slane %v4054, 1
        %v4057 = vsel %vm445, %v4052, %v4056
        %v4058 = vshrl.u32 %v4022, 16
        %v4060 = vor.u32 %v4058, %v4056
        %v4062 = vshll.u32 %v4023, 16
        %v4064 = vrot.slane %v4062, 1
        %v4065 = vsel %vm445, %v4060, %v4064
        %v4066 = vshrl.u32 %v4023, 16
        %v4068 = vor.u32 %v4066, %v4064
        %v4070 = vshll.u32 %v4024, 16
        %v4072 = vrot.slane %v4070, 1
        %v4073 = vsel %vm445, %v4068, %v4072
        %v4074 = vshrl.u32 %v4024, 16
        %v4076 = vor.u32 %v4074, %v4072
        %v4078 = vshll.u32 %v4025, 16
        %v4080 = vrot.slane %v4078, 1
        %v4081 = vsel %vm445, %v4076, %v4080
        %v4082 = vshrl.u32 %v4025, 16
        %v4084 = vor.u32 %v4082, %v4080
        %v4086 = vshll.u32 %v4026, 16
        %v4088 = vrot.slane %v4086, 1
        %v4089 = vsel %vm445, %v4084, %v4088
        %v4090 = vshrl.u32 %v4026, 16
        %v4092 = vor.u32 %v4090, %v4088
        %v4094 = vshll.u32 %v4027, 16
        %v4096 = vrot.slane %v4094, 1
        %v4097 = vsel %vm445, %v4092, %v4096
        %v4098 = vshrl.u32 %v4027, 16
        %v4100 = vor.u32 %v4098, %v4096
        %v4102 = vshll.u32 %v4028, 16
        %v4104 = vrot.slane %v4102, 1
        %v4105 = vsel %vm445, %v4100, %v4104
        %v4106 = vshrl.u32 %v4028, 16
        %v4108 = vor.u32 %v4106, %v4104
        %v4110 = vshll.u32 %v4029, 16
        %v4112 = vrot.slane %v4110, 1
        %v4113 = vsel %vm445, %v4108, %v4112
        %v4114 = vshrl.u32 %v4029, 16
        %v4116 = vor.u32 %v4114, %v4112
        %v4118 = vshll.u32 %v4030, 16
        %v4120 = vrot.slane %v4118, 1
        %v4121 = vsel %vm445, %v4116, %v4120
        %v4122 = vshrl.u32 %v4030, 16
        %v4124 = vor.u32 %v4122, %v4120
        %v4126 = vshll.u32 %v4031, 16
        %v4128 = vrot.slane %v4126, 1
        %v4129 = vsel %vm445, %v4124, %v4128
        %v4130 = vshrl.u32 %v4031, 16
        %v4132 = vor.u32 %v4130, %v4128
        %v4134 = vshll.u32 %v4032, 16
        %v4136 = vrot.slane %v4134, 1
        %v4137 = vsel %vm445, %v4132, %v4136
        %v4138 = vshrl.u32 %v4032, 16
        %v4140 = vor.u32 %v4138, %v4136
        %v4142 = vshll.u32 %v4033, 16
        %v4144 = vrot.slane %v4142, 1
        %v4145 = vsel %vm445, %v4140, %v4144
        %v4146 = vshrl.u32 %v4033, 16
        %v4148 = vor.u32 %v4146, %v4144
        %v4150 = vshll.u32 %v4034, 16
        %v4152 = vrot.slane %v4150, 1
        %v4153 = vsel %vm445, %v4148, %v4152
        %v4154 = vshrl.u32 %v4034, 16
        %v4156 = vor.u32 %v4154, %v4152
        %v4158 = vshll.u32 %v4035, 16
        %v4160 = vrot.slane %v4158, 1
        %v4161 = vsel %vm445, %v4156, %v4160
        %v4162 = vshrl.u32 %v4035, 16
        %v4164 = vor.u32 %v4162, %v4160
        %v4166 = vshll.u32 %v4036, 16
        %v4168 = vrot.slane %v4166, 1
        %v4169 = vsel %vm445, %v4164, %v4168
        %v4170 = vshrl.u32 %v4036, 16
        %v4172 = vor.u32 %v4170, %v4168
        %v4174 = vshll.u32 %v4037, 16
        %v4176 = vrot.slane %v4174, 1
        %v4177 = vsel %vm445, %v4172, %v4176
        %v4178 = vshrl.u32 %v4037, 16
        %v4180 = vor.u32 %v4178, %v4176
        %v4182 = vshll.u32 %v4038, 16
        %v4184 = vrot.slane %v4182, 1
        %v4185 = vsel %vm445, %v4180, %v4184
        %v4186 = vshrl.u32 %v4038, 16
        %v4188 = vor.u32 %v4186, %v4184
        %v4190 = vshll.u32 %v4039, 16
        %v4192 = vrot.slane %v4190, 1
        %v4193 = vsel %vm445, %v4188, %v4192
        %v4194 = vshrl.u32 %v4039, 16
        %v4196 = vor.u32 %v4194, %v4192
        %v4198 = vshll.u32 %v4040, 16
        %v4200 = vrot.slane %v4198, 1
        %v4201 = vsel %vm445, %v4196, %v4200
        %v4202 = vshrl.u32 %v4040, 16
        %v4204 = vor.u32 %v4202, %v4200
        %v4206 = vshll.u32 %v4041, 16
        %v4208 = vrot.slane %v4206, 1
        %v4209 = vsel %vm445, %v4204, %v4208
        %v4210 = vshrl.u32 %v4041, 16
        %v4212 = vor.u32 %v4210, %v4208
        %v4214 = vshll.u32 %v4042, 16
        %v4216 = vrot.slane %v4214, 1
        %v4217 = vsel %vm445, %v4212, %v4216
        %v4218 = vshrl.u32 %v4042, 16
        %v4220 = vor.u32 %v4218, %v4216
        %v4222 = vshll.u32 %v4043, 16
        %v4224 = vrot.slane %v4222, 1
        %v4225 = vsel %vm445, %v4220, %v4224
        %v4226 = vshrl.u32 %v4043, 16
        %v4228 = vor.u32 %v4226, %v4224
        %v4230 = vshll.u32 %v4044, 16
        %v4232 = vrot.slane %v4230, 1
        %v4233 = vsel %vm445, %v4228, %v4232
        %v4234 = vshrl.u32 %v4044, 16
        %v4236 = vor.u32 %v4234, %v4232
        %v4238 = vshll.u32 %v4045, 16
        %v4240 = vrot.slane %v4238, 1
        %v4241 = vsel %vm445, %v4236, %v4240
        %v4282 = vunpack.c.l.b16 %v3907
        %v4283 = vunpack.c.l.b16 %v3908
        %v4284 = vunpack.c.l.b16 %v3909
        %v4285 = vunpack.c.l.b16 %v3910
        %v4286 = vunpack.c.l.b16 %v3911
        %v4287 = vunpack.c.l.b16 %v3912
        %v4288 = vunpack.c.l.b16 %v3913
        %v4289 = vunpack.c.l.b16 %v3914
        %v4290 = vunpack.c.l.b16 %v3915
        %v4291 = vunpack.c.l.b16 %v3916
        %v4292 = vunpack.c.l.b16 %v3917
        %v4293 = vunpack.c.l.b16 %v3918
        %v4294 = vunpack.c.l.b16 %v3919
        %v4295 = vunpack.c.l.b16 %v3920
        %v4296 = vunpack.c.l.b16 %v3921
        %v4297 = vunpack.c.l.b16 %v3922
        %v4298 = vpack.c.b16 %v4283, %v4282
        %v4299 = vpack.c.b16 %v4285, %v4284
        %v4300 = vpack.c.b16 %v4287, %v4286
        %v4301 = vpack.c.b16 %v4289, %v4288
        %v4302 = vpack.c.b16 %v4291, %v4290
        %v4303 = vpack.c.b16 %v4293, %v4292
        %v4304 = vpack.c.b16 %v4295, %v4294
        %v4305 = vpack.c.b16 %v4297, %v4296
        %4314 = vmatprep.subr.bf16.mxu0 0
        %4315 = vmatpush1.bf16.msra.mxu0 %v4298
        %4316 = vmatprep.subr.bf16.mxu0 0
        %4317 = vmatpush1.bf16.msra.mxu0 %v4299
        %4318 = vmatprep.subr.bf16.mxu0 0
        %4319 = vmatpush1.bf16.msra.mxu0 %v4300
        %4320 = vmatprep.subr.bf16.mxu0 0
        %4321 = vmatpush1.bf16.msra.mxu0 %v4301
        %4322 = vmatprep.subr.bf16.mxu0 0
        %4323 = vmatpush1.bf16.msra.mxu0 %v4302
        %4324 = vmatprep.subr.bf16.mxu0 0
        %4325 = vmatpush1.bf16.msra.mxu0 %v4303
        %4326 = vmatprep.subr.bf16.mxu0 0
        %4327 = vmatpush1.bf16.msra.mxu0 %v4304
        %4328 = vmatprep.subr.bf16.mxu0 0
        %4329 = vmatpush1.bf16.msra.mxu0 %v4305
        %4330 = vmatprep.subr.bf16.mxu0 0
        %4331 = vmatpush1.bf16.msra.mxu0 0
        %4332 = vmatprep.subr.bf16.mxu0 0
        %4333 = vmatpush1.bf16.msra.mxu0 0
        %4334 = vmatprep.subr.bf16.mxu0 0
        %4335 = vmatpush1.bf16.msra.mxu0 0
        %4336 = vmatprep.subr.bf16.mxu0 0
        %4337 = vmatpush1.bf16.msra.mxu0 0
        %4338 = vmatprep.subr.bf16.mxu0 0
        %4339 = vmatpush1.bf16.msra.mxu0 0
        %4340 = vmatprep.subr.bf16.mxu0 0
        %4341 = vmatpush1.bf16.msra.mxu0 0
        %4342 = vmatprep.subr.bf16.mxu0 0
        %4343 = vmatpush1.bf16.msra.mxu0 0
        %4344 = vmatprep.subr.bf16.mxu0 0
        %4345 = vmatpush1.bf16.msra.mxu0 0
        %4346 = vmatprep.mubr.bf16.mxu0 0
        %4347 = vmatmul.mubr.bf16.gmra.mrb[0].mxu0 %v4057
        %v4348 = vpop.f32.mrb[0].mxu0
        %v4349 = vadd.f32 0.0, %v4348
        %v4350 = vpop.f32.mrb[0].mxu0
        %v4351 = vpop.f32.mrb[0].mxu0
        %v4352 = vadd.f32 0.0, %v4351
        %v4353 = vpop.f32.mrb[0].mxu0
        %4354 = vmatprep.mubr.bf16.mxu0 0
        %4355 = vmatmul.mubr.bf16.gmra.mrb[0].mxu0 %v4065
        %v4356 = vpop.f32.mrb[0].mxu0
        %v4357 = vadd.f32 0.0, %v4356
        %v4358 = vpop.f32.mrb[0].mxu0
        %v4359 = vpop.f32.mrb[0].mxu0
        %v4360 = vadd.f32 0.0, %v4359
        %v4361 = vpop.f32.mrb[0].mxu0
        %4362 = vmatprep.mubr.bf16.mxu0 0
        %4363 = vmatmul.mubr.bf16.gmra.mrb[0].mxu0 %v4073
        %v4364 = vpop.f32.mrb[0].mxu0
        %v4365 = vadd.f32 0.0, %v4364
        %v4366 = vpop.f32.mrb[0].mxu0
        %v4367 = vpop.f32.mrb[0].mxu0
        %v4368 = vadd.f32 0.0, %v4367
        %v4369 = vpop.f32.mrb[0].mxu0
        %4370 = vmatprep.mubr.bf16.mxu0 0
        %4371 = vmatmul.mubr.bf16.gmra.mrb[0].mxu0 %v4081
        %v4372 = vpop.f32.mrb[0].mxu0
        %v4373 = vadd.f32 0.0, %v4372
        %v4374 = vpop.f32.mrb[0].mxu0
        %v4375 = vpop.f32.mrb[0].mxu0
        %v4376 = vadd.f32 0.0, %v4375
        %v4377 = vpop.f32.mrb[0].mxu0
        %4378 = vmatprep.mubr.bf16.mxu0 0
        %4379 = vmatmul.mubr.bf16.gmra.mrb[0].mxu0 %v4089
        %v4380 = vpop.f32.mrb[0].mxu0
        %v4381 = vadd.f32 0.0, %v4380
        %v4382 = vpop.f32.mrb[0].mxu0
        %v4383 = vpop.f32.mrb[0].mxu0
        %v4384 = vadd.f32 0.0, %v4383
        %v4385 = vpop.f32.mrb[0].mxu0
        %4386 = vmatprep.mubr.bf16.mxu0 0
        %4387 = vmatmul.mubr.bf16.gmra.mrb[0].mxu0 %v4097
        %v4388 = vpop.f32.mrb[0].mxu0
        %v4389 = vadd.f32 0.0, %v4388
        %v4390 = vpop.f32.mrb[0].mxu0
        %v4391 = vpop.f32.mrb[0].mxu0
        %v4392 = vadd.f32 0.0, %v4391
        %v4393 = vpop.f32.mrb[0].mxu0
        %4394 = vmatprep.mubr.bf16.mxu0 0
        %4395 = vmatmul.mubr.bf16.gmra.mrb[0].mxu0 %v4105
        %v4396 = vpop.f32.mrb[0].mxu0
        %v4397 = vadd.f32 0.0, %v4396
        %v4398 = vpop.f32.mrb[0].mxu0
        %v4399 = vpop.f32.mrb[0].mxu0
        %v4400 = vadd.f32 0.0, %v4399
        %v4401 = vpop.f32.mrb[0].mxu0
        %4402 = vmatprep.mubr.bf16.mxu0 0
        %4403 = vmatmul.mubr.bf16.gmra.mrb[0].mxu0 %v4113
        %v4404 = vpop.f32.mrb[0].mxu0
        %v4405 = vadd.f32 0.0, %v4404
        %v4406 = vpop.f32.mrb[0].mxu0
        %v4407 = vpop.f32.mrb[0].mxu0
        %v4408 = vadd.f32 0.0, %v4407
        %v4409 = vpop.f32.mrb[0].mxu0
        %4410 = vmatprep.mubr.bf16.mxu0 0
        %4411 = vmatmul.mubr.bf16.gmra.mrb[0].mxu0 %v4121
        %v4412 = vpop.f32.mrb[0].mxu0
        %v4413 = vadd.f32 0.0, %v4412
        %v4414 = vpop.f32.mrb[0].mxu0
        %v4415 = vpop.f32.mrb[0].mxu0
        %v4416 = vadd.f32 0.0, %v4415
        %v4417 = vpop.f32.mrb[0].mxu0
        %4418 = vmatprep.mubr.bf16.mxu0 0
        %4419 = vmatmul.mubr.bf16.gmra.mrb[0].mxu0 %v4129
        %v4420 = vpop.f32.mrb[0].mxu0
        %v4421 = vadd.f32 0.0, %v4420
        %v4422 = vpop.f32.mrb[0].mxu0
        %v4423 = vpop.f32.mrb[0].mxu0
        %v4424 = vadd.f32 0.0, %v4423
        %v4425 = vpop.f32.mrb[0].mxu0
        %4426 = vmatprep.mubr.bf16.mxu0 0
        %4427 = vmatmul.mubr.bf16.gmra.mrb[0].mxu0 %v4137
        %v4428 = vpop.f32.mrb[0].mxu0
        %v4429 = vadd.f32 0.0, %v4428
        %v4430 = vpop.f32.mrb[0].mxu0
        %v4431 = vpop.f32.mrb[0].mxu0
        %v4432 = vadd.f32 0.0, %v4431
        %v4433 = vpop.f32.mrb[0].mxu0
        %4434 = vmatprep.mubr.bf16.mxu0 0
        %4435 = vmatmul.mubr.bf16.gmra.mrb[0].mxu0 %v4145
        %v4436 = vpop.f32.mrb[0].mxu0
        %v4437 = vadd.f32 0.0, %v4436
        %v4438 = vpop.f32.mrb[0].mxu0
        %v4439 = vpop.f32.mrb[0].mxu0
        %v4440 = vadd.f32 0.0, %v4439
        %v4441 = vpop.f32.mrb[0].mxu0
        %4442 = vmatprep.mubr.bf16.mxu0 0
        %4443 = vmatmul.mubr.bf16.gmra.mrb[0].mxu0 %v4153
        %v4444 = vpop.f32.mrb[0].mxu0
        %v4445 = vadd.f32 0.0, %v4444
        %v4446 = vpop.f32.mrb[0].mxu0
        %v4447 = vpop.f32.mrb[0].mxu0
        %v4448 = vadd.f32 0.0, %v4447
        %v4449 = vpop.f32.mrb[0].mxu0
        %4450 = vmatprep.mubr.bf16.mxu0 0
        %4451 = vmatmul.mubr.bf16.gmra.mrb[0].mxu0 %v4161
        %v4452 = vpop.f32.mrb[0].mxu0
        %v4453 = vadd.f32 0.0, %v4452
        %v4454 = vpop.f32.mrb[0].mxu0
        %v4455 = vpop.f32.mrb[0].mxu0
        %v4456 = vadd.f32 0.0, %v4455
        %v4457 = vpop.f32.mrb[0].mxu0
        %4458 = vmatprep.mubr.bf16.mxu0 0
        %4459 = vmatmul.mubr.bf16.gmra.mrb[0].mxu0 %v4169
        %v4460 = vpop.f32.mrb[0].mxu0
        %v4461 = vadd.f32 0.0, %v4460
        %v4462 = vpop.f32.mrb[0].mxu0
        %v4463 = vpop.f32.mrb[0].mxu0
        %v4464 = vadd.f32 0.0, %v4463
        %v4465 = vpop.f32.mrb[0].mxu0
        %4466 = vmatprep.mubr.bf16.mxu0 0
        %4467 = vmatmul.mubr.bf16.gmra.mrb[0].mxu0 %v4177
        %v4468 = vpop.f32.mrb[0].mxu0
        %v4469 = vadd.f32 0.0, %v4468
        %v4470 = vpop.f32.mrb[0].mxu0
        %v4471 = vpop.f32.mrb[0].mxu0
        %v4472 = vadd.f32 0.0, %v4471
        %v4473 = vpop.f32.mrb[0].mxu0
        %4474 = vmatprep.mubr.bf16.mxu0 0
        %4475 = vmatmul.mubr.bf16.gmra.mrb[0].mxu0 %v4185
        %v4476 = vpop.f32.mrb[0].mxu0
        %v4477 = vadd.f32 0.0, %v4476
        %v4478 = vpop.f32.mrb[0].mxu0
        %v4479 = vpop.f32.mrb[0].mxu0
        %v4480 = vadd.f32 0.0, %v4479
        %v4481 = vpop.f32.mrb[0].mxu0
        %4482 = vmatprep.mubr.bf16.mxu0 0
        %4483 = vmatmul.mubr.bf16.gmra.mrb[0].mxu0 %v4193
        %v4484 = vpop.f32.mrb[0].mxu0
        %v4485 = vadd.f32 0.0, %v4484
        %v4486 = vpop.f32.mrb[0].mxu0
        %v4487 = vpop.f32.mrb[0].mxu0
        %v4488 = vadd.f32 0.0, %v4487
        %v4489 = vpop.f32.mrb[0].mxu0
        %4490 = vmatprep.mubr.bf16.mxu0 0
        %4491 = vmatmul.mubr.bf16.gmra.mrb[0].mxu0 %v4201
        %v4492 = vpop.f32.mrb[0].mxu0
        %v4493 = vadd.f32 0.0, %v4492
        %v4494 = vpop.f32.mrb[0].mxu0
        %v4495 = vpop.f32.mrb[0].mxu0
        %v4496 = vadd.f32 0.0, %v4495
        %v4497 = vpop.f32.mrb[0].mxu0
        %4498 = vmatprep.mubr.bf16.mxu0 0
        %4499 = vmatmul.mubr.bf16.gmra.mrb[0].mxu0 %v4209
        %v4500 = vpop.f32.mrb[0].mxu0
        %v4501 = vadd.f32 0.0, %v4500
        %v4502 = vpop.f32.mrb[0].mxu0
        %v4503 = vpop.f32.mrb[0].mxu0
        %v4504 = vadd.f32 0.0, %v4503
        %v4505 = vpop.f32.mrb[0].mxu0
        %4506 = vmatprep.mubr.bf16.mxu0 0
        %4507 = vmatmul.mubr.bf16.gmra.mrb[0].mxu0 %v4217
        %v4508 = vpop.f32.mrb[0].mxu0
        %v4509 = vadd.f32 0.0, %v4508
        %v4510 = vpop.f32.mrb[0].mxu0
        %v4511 = vpop.f32.mrb[0].mxu0
        %v4512 = vadd.f32 0.0, %v4511
        %v4513 = vpop.f32.mrb[0].mxu0
        %4514 = vmatprep.mubr.bf16.mxu0 0
        %4515 = vmatmul.mubr.bf16.gmra.mrb[0].mxu0 %v4225
        %v4516 = vpop.f32.mrb[0].mxu0
        %v4517 = vadd.f32 0.0, %v4516
        %v4518 = vpop.f32.mrb[0].mxu0
        %v4519 = vpop.f32.mrb[0].mxu0
        %v4520 = vadd.f32 0.0, %v4519
        %v4521 = vpop.f32.mrb[0].mxu0
        %4522 = vmatprep.mubr.bf16.mxu0 0
        %4523 = vmatmul.mubr.bf16.gmra.mrb[0].mxu0 %v4233
        %v4524 = vpop.f32.mrb[0].mxu0
        %v4525 = vadd.f32 0.0, %v4524
        %v4526 = vpop.f32.mrb[0].mxu0
        %v4527 = vpop.f32.mrb[0].mxu0
        %v4528 = vadd.f32 0.0, %v4527
        %v4529 = vpop.f32.mrb[0].mxu0
        %4530 = vmatprep.mubr.bf16.mxu0 0
        %4531 = vmatmul.mubr.bf16.gmra.mrb[0].mxu0 %v4241
        %v4532 = vpop.f32.mrb[0].mxu0
        %v4533 = vadd.f32 0.0, %v4532
        %v4534 = vpop.f32.mrb[0].mxu0
        %v4535 = vpop.f32.mrb[0].mxu0
        %v4536 = vadd.f32 0.0, %v4535
        %v4537 = vpop.f32.mrb[0].mxu0
        %4538 = vdwg.mxu0
        %v4539 = vadd.f32 %v3809, %v4349
        %v4540 = vadd.f32 %v3810, %v4352
        %v4541 = vadd.f32 %v3811, %v4357
        %v4542 = vadd.f32 %v3812, %v4360
        %v4543 = vadd.f32 %v3813, %v4365
        %v4544 = vadd.f32 %v3814, %v4368
        %v4545 = vadd.f32 %v3815, %v4373
        %v4546 = vadd.f32 %v3816, %v4376
        %v4547 = vadd.f32 %v3817, %v4381
        %v4548 = vadd.f32 %v3818, %v4384
        %v4549 = vadd.f32 %v3819, %v4389
        %v4550 = vadd.f32 %v3820, %v4392
        %v4551 = vadd.f32 %v3821, %v4397
        %v4552 = vadd.f32 %v3822, %v4400
        %v4553 = vadd.f32 %v3823, %v4405
        %v4554 = vadd.f32 %v3824, %v4408
        %v4555 = vadd.f32 %v3825, %v4413
        %v4556 = vadd.f32 %v3826, %v4416
        %v4557 = vadd.f32 %v3827, %v4421
        %v4558 = vadd.f32 %v3828, %v4424
        %v4559 = vadd.f32 %v3829, %v4429
        %v4560 = vadd.f32 %v3830, %v4432
        %v4561 = vadd.f32 %v3831, %v4437
        %v4562 = vadd.f32 %v3832, %v4440
        %v4563 = vadd.f32 %v3833, %v4445
        %v4564 = vadd.f32 %v3834, %v4448
        %v4565 = vadd.f32 %v3835, %v4453
        %v4566 = vadd.f32 %v3836, %v4456
        %v4567 = vadd.f32 %v3837, %v4461
        %v4568 = vadd.f32 %v3838, %v4464
        %v4569 = vadd.f32 %v3839, %v4469
        %v4570 = vadd.f32 %v3840, %v4472
        %v4571 = vadd.f32 %v3841, %v4477
        %v4572 = vadd.f32 %v3842, %v4480
        %v4573 = vadd.f32 %v3843, %v4485
        %v4574 = vadd.f32 %v3844, %v4488
        %v4575 = vadd.f32 %v3845, %v4493
        %v4576 = vadd.f32 %v3846, %v4496
        %v4577 = vadd.f32 %v3847, %v4501
        %v4578 = vadd.f32 %v3848, %v4504
        %v4579 = vadd.f32 %v3849, %v4509
        %v4580 = vadd.f32 %v3850, %v4512
        %v4581 = vadd.f32 %v3851, %v4517
        %v4582 = vadd.f32 %v3852, %v4520
        %v4583 = vadd.f32 %v3853, %v4525
        %v4584 = vadd.f32 %v3854, %v4528
        %v4585 = vadd.f32 %v3855, %v4533
        %v4586 = vadd.f32 %v3856, %v4536
        %v4587 = vld [vmem:[%s206 + $0x18] sm:$0xe]
        %s4588 = scalar_lea.vmem [#allocation5], 512
        %v4589 = vld [vmem:[%s4588] sm:$0xf]
        %v4590 = vld [vmem:[%s4588 + $0x4] sm:$0xf]
        %v4591 = vld [vmem:[%s4588 + $0x8] sm:$0xf]
        %v4592 = vld [vmem:[%s4588 + $0xc] sm:$0xf]
        %v4593 = vld [vmem:[%s4588 + $0x10] sm:$0xf]
        %v4594 = vld [vmem:[%s4588 + $0x14] sm:$0xf]
        %v4595 = vld [vmem:[%s4588 + $0x18] sm:$0xf]
        %v4596 = vld [vmem:[%s4588 + $0x1c] sm:$0xf]
        %v4597 = vld [vmem:[%s4588 + $0x20] sm:$0xf]
        %v4598 = vld [vmem:[%s4588 + $0x24] sm:$0xf]
        %v4599 = vld [vmem:[%s4588 + $0x28] sm:$0xf]
        %v4600 = vld [vmem:[%s4588 + $0x2c] sm:$0xf]
        %v4601 = vld [vmem:[%s4588 + $0x30] sm:$0xf]
        %v4602 = vld [vmem:[%s4588 + $0x34] sm:$0xf]
        %v4603 = vld [vmem:[%s4588 + $0x38] sm:$0xf]
        %v4604 = vld [vmem:[%s4588 + $0x3c] sm:$0xf]
        %v4606 = vunpack.c.l.b16 %v4587
        %v4607 = vpack.c.b16 %v3973, %v4606
        %v4608 = vrot.slane %v4607, 1
        %v4609 = vrot.slane %v4022, 1
        %v4610 = vsel %vm1257, %v4608, %v4609
        %v4611 = vrot.slane %v4023, 1
        %v4612 = vsel %vm1257, %v4609, %v4611
        %v4613 = vrot.slane %v4024, 1
        %v4614 = vsel %vm1257, %v4611, %v4613
        %v4615 = vrot.slane %v4025, 1
        %v4616 = vsel %vm1257, %v4613, %v4615
        %v4617 = vrot.slane %v4026, 1
        %v4618 = vsel %vm1257, %v4615, %v4617
        %v4619 = vrot.slane %v4027, 1
        %v4620 = vsel %vm1257, %v4617, %v4619
        %v4621 = vrot.slane %v4028, 1
        %v4622 = vsel %vm1257, %v4619, %v4621
        %v4623 = vrot.slane %v4029, 1
        %v4624 = vsel %vm1257, %v4621, %v4623
        %v4625 = vrot.slane %v4030, 1
        %v4626 = vsel %vm1257, %v4623, %v4625
        %v4627 = vrot.slane %v4031, 1
        %v4628 = vsel %vm1257, %v4625, %v4627
        %v4629 = vrot.slane %v4032, 1
        %v4630 = vsel %vm1257, %v4627, %v4629
        %v4631 = vrot.slane %v4033, 1
        %v4632 = vsel %vm1257, %v4629, %v4631
        %v4633 = vrot.slane %v4034, 1
        %v4634 = vsel %vm1257, %v4631, %v4633
        %v4635 = vrot.slane %v4035, 1
        %v4636 = vsel %vm1257, %v4633, %v4635
        %v4637 = vrot.slane %v4036, 1
        %v4638 = vsel %vm1257, %v4635, %v4637
        %v4639 = vrot.slane %v4037, 1
        %v4640 = vsel %vm1257, %v4637, %v4639
        %v4641 = vrot.slane %v4038, 1
        %v4642 = vsel %vm1257, %v4639, %v4641
        %v4643 = vrot.slane %v4039, 1
        %v4644 = vsel %vm1257, %v4641, %v4643
        %v4645 = vrot.slane %v4040, 1
        %v4646 = vsel %vm1257, %v4643, %v4645
        %v4647 = vrot.slane %v4041, 1
        %v4648 = vsel %vm1257, %v4645, %v4647
        %v4649 = vrot.slane %v4042, 1
        %v4650 = vsel %vm1257, %v4647, %v4649
        %v4651 = vrot.slane %v4043, 1
        %v4652 = vsel %vm1257, %v4649, %v4651
        %v4653 = vrot.slane %v4044, 1
        %v4654 = vsel %vm1257, %v4651, %v4653
        %v4655 = vrot.slane %v4045, 1
        %v4656 = vsel %vm1257, %v4653, %v4655
        %v4697 = vunpack.c.l.b16 %v4589
        %v4698 = vunpack.c.l.b16 %v4590
        %v4699 = vunpack.c.l.b16 %v4591
        %v4700 = vunpack.c.l.b16 %v4592
        %v4701 = vunpack.c.l.b16 %v4593
        %v4702 = vunpack.c.l.b16 %v4594
        %v4703 = vunpack.c.l.b16 %v4595
        %v4704 = vunpack.c.l.b16 %v4596
        %v4705 = vunpack.c.l.b16 %v4597
        %v4706 = vunpack.c.l.b16 %v4598
        %v4707 = vunpack.c.l.b16 %v4599
        %v4708 = vunpack.c.l.b16 %v4600
        %v4709 = vunpack.c.l.b16 %v4601
        %v4710 = vunpack.c.l.b16 %v4602
        %v4711 = vunpack.c.l.b16 %v4603
        %v4712 = vunpack.c.l.b16 %v4604
        %v4713 = vpack.c.b16 %v4698, %v4697
        %v4714 = vpack.c.b16 %v4700, %v4699
        %v4715 = vpack.c.b16 %v4702, %v4701
        %v4716 = vpack.c.b16 %v4704, %v4703
        %v4717 = vpack.c.b16 %v4706, %v4705
        %v4718 = vpack.c.b16 %v4708, %v4707
        %v4719 = vpack.c.b16 %v4710, %v4709
        %v4720 = vpack.c.b16 %v4712, %v4711
        %4729 = vmatprep.subr.bf16.mxu0 0
        %4730 = vmatpush1.bf16.msra.mxu0 %v4713
        %4731 = vmatprep.subr.bf16.mxu0 0
        %4732 = vmatpush1.bf16.msra.mxu0 %v4714
        %4733 = vmatprep.subr.bf16.mxu0 0
        %4734 = vmatpush1.bf16.msra.mxu0 %v4715
        %4735 = vmatprep.subr.bf16.mxu0 0
        %4736 = vmatpush1.bf16.msra.mxu0 %v4716
        %4737 = vmatprep.subr.bf16.mxu0 0
        %4738 = vmatpush1.bf16.msra.mxu0 %v4717
        %4739 = vmatprep.subr.bf16.mxu0 0
        %4740 = vmatpush1.bf16.msra.mxu0 %v4718
        %4741 = vmatprep.subr.bf16.mxu0 0
        %4742 = vmatpush1.bf16.msra.mxu0 %v4719
        %4743 = vmatprep.subr.bf16.mxu0 0
        %4744 = vmatpush1.bf16.msra.mxu0 %v4720
        %4745 = vmatprep.subr.bf16.mxu0 0
        %4746 = vmatpush1.bf16.msra.mxu0 0
        %4747 = vmatprep.subr.bf16.mxu0 0
        %4748 = vmatpush1.bf16.msra.mxu0 0
        %4749 = vmatprep.subr.bf16.mxu0 0
        %4750 = vmatpush1.bf16.msra.mxu0 0
        %4751 = vmatprep.subr.bf16.mxu0 0
        %4752 = vmatpush1.bf16.msra.mxu0 0
        %4753 = vmatprep.subr.bf16.mxu0 0
        %4754 = vmatpush1.bf16.msra.mxu0 0
        %4755 = vmatprep.subr.bf16.mxu0 0
        %4756 = vmatpush1.bf16.msra.mxu0 0
        %4757 = vmatprep.subr.bf16.mxu0 0
        %4758 = vmatpush1.bf16.msra.mxu0 0
        %4759 = vmatprep.subr.bf16.mxu0 0
        %4760 = vmatpush1.bf16.msra.mxu0 0
        %4761 = vmatprep.mubr.bf16.mxu0 0
        %4762 = vmatmul.mubr.bf16.gmra.mrb[0].mxu0 %v4610
        %v4763 = vpop.f32.mrb[0].mxu0
        %v4764 = vadd.f32 0.0, %v4763
        %v4765 = vpop.f32.mrb[0].mxu0
        %v4766 = vpop.f32.mrb[0].mxu0
        %v4767 = vadd.f32 0.0, %v4766
        %v4768 = vpop.f32.mrb[0].mxu0
        %4769 = vmatprep.mubr.bf16.mxu0 0
        %4770 = vmatmul.mubr.bf16.gmra.mrb[0].mxu0 %v4612
        %v4771 = vpop.f32.mrb[0].mxu0
        %v4772 = vadd.f32 0.0, %v4771
        %v4773 = vpop.f32.mrb[0].mxu0
        %v4774 = vpop.f32.mrb[0].mxu0
        %v4775 = vadd.f32 0.0, %v4774
        %v4776 = vpop.f32.mrb[0].mxu0
        %4777 = vmatprep.mubr.bf16.mxu0 0
        %4778 = vmatmul.mubr.bf16.gmra.mrb[0].mxu0 %v4614
        %v4779 = vpop.f32.mrb[0].mxu0
        %v4780 = vadd.f32 0.0, %v4779
        %v4781 = vpop.f32.mrb[0].mxu0
        %v4782 = vpop.f32.mrb[0].mxu0
        %v4783 = vadd.f32 0.0, %v4782
        %v4784 = vpop.f32.mrb[0].mxu0
        %4785 = vmatprep.mubr.bf16.mxu0 0
        %4786 = vmatmul.mubr.bf16.gmra.mrb[0].mxu0 %v4616
        %v4787 = vpop.f32.mrb[0].mxu0
        %v4788 = vadd.f32 0.0, %v4787
        %v4789 = vpop.f32.mrb[0].mxu0
        %v4790 = vpop.f32.mrb[0].mxu0
        %v4791 = vadd.f32 0.0, %v4790
        %v4792 = vpop.f32.mrb[0].mxu0
        %4793 = vmatprep.mubr.bf16.mxu0 0
        %4794 = vmatmul.mubr.bf16.gmra.mrb[0].mxu0 %v4618
        %v4795 = vpop.f32.mrb[0].mxu0
        %v4796 = vadd.f32 0.0, %v4795
        %v4797 = vpop.f32.mrb[0].mxu0
        %v4798 = vpop.f32.mrb[0].mxu0
        %v4799 = vadd.f32 0.0, %v4798
        %v4800 = vpop.f32.mrb[0].mxu0
        %4801 = vmatprep.mubr.bf16.mxu0 0
        %4802 = vmatmul.mubr.bf16.gmra.mrb[0].mxu0 %v4620
        %v4803 = vpop.f32.mrb[0].mxu0
        %v4804 = vadd.f32 0.0, %v4803
        %v4805 = vpop.f32.mrb[0].mxu0
        %v4806 = vpop.f32.mrb[0].mxu0
        %v4807 = vadd.f32 0.0, %v4806
        %v4808 = vpop.f32.mrb[0].mxu0
        %4809 = vmatprep.mubr.bf16.mxu0 0
        %4810 = vmatmul.mubr.bf16.gmra.mrb[0].mxu0 %v4622
        %v4811 = vpop.f32.mrb[0].mxu0
        %v4812 = vadd.f32 0.0, %v4811
        %v4813 = vpop.f32.mrb[0].mxu0
        %v4814 = vpop.f32.mrb[0].mxu0
        %v4815 = vadd.f32 0.0, %v4814
        %v4816 = vpop.f32.mrb[0].mxu0
        %4817 = vmatprep.mubr.bf16.mxu0 0
        %4818 = vmatmul.mubr.bf16.gmra.mrb[0].mxu0 %v4624
        %v4819 = vpop.f32.mrb[0].mxu0
        %v4820 = vadd.f32 0.0, %v4819
        %v4821 = vpop.f32.mrb[0].mxu0
        %v4822 = vpop.f32.mrb[0].mxu0
        %v4823 = vadd.f32 0.0, %v4822
        %v4824 = vpop.f32.mrb[0].mxu0
        %4825 = vmatprep.mubr.bf16.mxu0 0
        %4826 = vmatmul.mubr.bf16.gmra.mrb[0].mxu0 %v4626
        %v4827 = vpop.f32.mrb[0].mxu0
        %v4828 = vadd.f32 0.0, %v4827
        %v4829 = vpop.f32.mrb[0].mxu0
        %v4830 = vpop.f32.mrb[0].mxu0
        %v4831 = vadd.f32 0.0, %v4830
        %v4832 = vpop.f32.mrb[0].mxu0
        %4833 = vmatprep.mubr.bf16.mxu0 0
        %4834 = vmatmul.mubr.bf16.gmra.mrb[0].mxu0 %v4628
        %v4835 = vpop.f32.mrb[0].mxu0
        %v4836 = vadd.f32 0.0, %v4835
        %v4837 = vpop.f32.mrb[0].mxu0
        %v4838 = vpop.f32.mrb[0].mxu0
        %v4839 = vadd.f32 0.0, %v4838
        %v4840 = vpop.f32.mrb[0].mxu0
        %4841 = vmatprep.mubr.bf16.mxu0 0
        %4842 = vmatmul.mubr.bf16.gmra.mrb[0].mxu0 %v4630
        %v4843 = vpop.f32.mrb[0].mxu0
        %v4844 = vadd.f32 0.0, %v4843
        %v4845 = vpop.f32.mrb[0].mxu0
        %v4846 = vpop.f32.mrb[0].mxu0
        %v4847 = vadd.f32 0.0, %v4846
        %v4848 = vpop.f32.mrb[0].mxu0
        %4849 = vmatprep.mubr.bf16.mxu0 0
        %4850 = vmatmul.mubr.bf16.gmra.mrb[0].mxu0 %v4632
        %v4851 = vpop.f32.mrb[0].mxu0
        %v4852 = vadd.f32 0.0, %v4851
        %v4853 = vpop.f32.mrb[0].mxu0
        %v4854 = vpop.f32.mrb[0].mxu0
        %v4855 = vadd.f32 0.0, %v4854
        %v4856 = vpop.f32.mrb[0].mxu0
        %4857 = vmatprep.mubr.bf16.mxu0 0
        %4858 = vmatmul.mubr.bf16.gmra.mrb[0].mxu0 %v4634
        %v4859 = vpop.f32.mrb[0].mxu0
        %v4860 = vadd.f32 0.0, %v4859
        %v4861 = vpop.f32.mrb[0].mxu0
        %v4862 = vpop.f32.mrb[0].mxu0
        %v4863 = vadd.f32 0.0, %v4862
        %v4864 = vpop.f32.mrb[0].mxu0
        %4865 = vmatprep.mubr.bf16.mxu0 0
        %4866 = vmatmul.mubr.bf16.gmra.mrb[0].mxu0 %v4636
        %v4867 = vpop.f32.mrb[0].mxu0
        %v4868 = vadd.f32 0.0, %v4867
        %v4869 = vpop.f32.mrb[0].mxu0
        %v4870 = vpop.f32.mrb[0].mxu0
        %v4871 = vadd.f32 0.0, %v4870
        %v4872 = vpop.f32.mrb[0].mxu0
        %4873 = vmatprep.mubr.bf16.mxu0 0
        %4874 = vmatmul.mubr.bf16.gmra.mrb[0].mxu0 %v4638
        %v4875 = vpop.f32.mrb[0].mxu0
        %v4876 = vadd.f32 0.0, %v4875
        %v4877 = vpop.f32.mrb[0].mxu0
        %v4878 = vpop.f32.mrb[0].mxu0
        %v4879 = vadd.f32 0.0, %v4878
        %v4880 = vpop.f32.mrb[0].mxu0
        %4881 = vmatprep.mubr.bf16.mxu0 0
        %4882 = vmatmul.mubr.bf16.gmra.mrb[0].mxu0 %v4640
        %v4883 = vpop.f32.mrb[0].mxu0
        %v4884 = vadd.f32 0.0, %v4883
        %v4885 = vpop.f32.mrb[0].mxu0
        %v4886 = vpop.f32.mrb[0].mxu0
        %v4887 = vadd.f32 0.0, %v4886
        %v4888 = vpop.f32.mrb[0].mxu0
        %4889 = vmatprep.mubr.bf16.mxu0 0
        %4890 = vmatmul.mubr.bf16.gmra.mrb[0].mxu0 %v4642
        %v4891 = vpop.f32.mrb[0].mxu0
        %v4892 = vadd.f32 0.0, %v4891
        %v4893 = vpop.f32.mrb[0].mxu0
        %v4894 = vpop.f32.mrb[0].mxu0
        %v4895 = vadd.f32 0.0, %v4894
        %v4896 = vpop.f32.mrb[0].mxu0
        %4897 = vmatprep.mubr.bf16.mxu0 0
        %4898 = vmatmul.mubr.bf16.gmra.mrb[0].mxu0 %v4644
        %v4899 = vpop.f32.mrb[0].mxu0
        %v4900 = vadd.f32 0.0, %v4899
        %v4901 = vpop.f32.mrb[0].mxu0
        %v4902 = vpop.f32.mrb[0].mxu0
        %v4903 = vadd.f32 0.0, %v4902
        %v4904 = vpop.f32.mrb[0].mxu0
        %4905 = vmatprep.mubr.bf16.mxu0 0
        %4906 = vmatmul.mubr.bf16.gmra.mrb[0].mxu0 %v4646
        %v4907 = vpop.f32.mrb[0].mxu0
        %v4908 = vadd.f32 0.0, %v4907
        %v4909 = vpop.f32.mrb[0].mxu0
        %v4910 = vpop.f32.mrb[0].mxu0
        %v4911 = vadd.f32 0.0, %v4910
        %v4912 = vpop.f32.mrb[0].mxu0
        %4913 = vmatprep.mubr.bf16.mxu0 0
        %4914 = vmatmul.mubr.bf16.gmra.mrb[0].mxu0 %v4648
        %v4915 = vpop.f32.mrb[0].mxu0
        %v4916 = vadd.f32 0.0, %v4915
        %v4917 = vpop.f32.mrb[0].mxu0
        %v4918 = vpop.f32.mrb[0].mxu0
        %v4919 = vadd.f32 0.0, %v4918
        %v4920 = vpop.f32.mrb[0].mxu0
        %4921 = vmatprep.mubr.bf16.mxu0 0
        %4922 = vmatmul.mubr.bf16.gmra.mrb[0].mxu0 %v4650
        %v4923 = vpop.f32.mrb[0].mxu0
        %v4924 = vadd.f32 0.0, %v4923
        %v4925 = vpop.f32.mrb[0].mxu0
        %v4926 = vpop.f32.mrb[0].mxu0
        %v4927 = vadd.f32 0.0, %v4926
        %v4928 = vpop.f32.mrb[0].mxu0
        %4929 = vmatprep.mubr.bf16.mxu0 0
        %4930 = vmatmul.mubr.bf16.gmra.mrb[0].mxu0 %v4652
        %v4931 = vpop.f32.mrb[0].mxu0
        %v4932 = vadd.f32 0.0, %v4931
        %v4933 = vpop.f32.mrb[0].mxu0
        %v4934 = vpop.f32.mrb[0].mxu0
        %v4935 = vadd.f32 0.0, %v4934
        %v4936 = vpop.f32.mrb[0].mxu0
        %4937 = vmatprep.mubr.bf16.mxu0 0
        %4938 = vmatmul.mubr.bf16.gmra.mrb[0].mxu0 %v4654
        %v4939 = vpop.f32.mrb[0].mxu0
        %v4940 = vadd.f32 0.0, %v4939
        %v4941 = vpop.f32.mrb[0].mxu0
        %v4942 = vpop.f32.mrb[0].mxu0
        %v4943 = vadd.f32 0.0, %v4942
        %v4944 = vpop.f32.mrb[0].mxu0
        %4945 = vmatprep.mubr.bf16.mxu0 0
        %4946 = vmatmul.mubr.bf16.gmra.mrb[0].mxu0 %v4656
        %v4947 = vpop.f32.mrb[0].mxu0
        %v4948 = vadd.f32 0.0, %v4947
        %v4949 = vpop.f32.mrb[0].mxu0
        %v4950 = vpop.f32.mrb[0].mxu0
        %v4951 = vadd.f32 0.0, %v4950
        %v4952 = vpop.f32.mrb[0].mxu0
        %4953 = vdwg.mxu0
        %v4954 = vadd.f32 %v4539, %v4764
        %v4955 = vadd.f32 %v4540, %v4767
        %v4956 = vadd.f32 %v4541, %v4772
        %v4957 = vadd.f32 %v4542, %v4775
        %v4958 = vadd.f32 %v4543, %v4780
        %v4959 = vadd.f32 %v4544, %v4783
        %v4960 = vadd.f32 %v4545, %v4788
        %v4961 = vadd.f32 %v4546, %v4791
        %v4962 = vadd.f32 %v4547, %v4796
        %v4963 = vadd.f32 %v4548, %v4799
        %v4964 = vadd.f32 %v4549, %v4804
        %v4965 = vadd.f32 %v4550, %v4807
        %v4966 = vadd.f32 %v4551, %v4812
        %v4967 = vadd.f32 %v4552, %v4815
        %v4968 = vadd.f32 %v4553, %v4820
        %v4969 = vadd.f32 %v4554, %v4823
        %v4970 = vadd.f32 %v4555, %v4828
        %v4971 = vadd.f32 %v4556, %v4831
        %v4972 = vadd.f32 %v4557, %v4836
        %v4973 = vadd.f32 %v4558, %v4839
        %v4974 = vadd.f32 %v4559, %v4844
        %v4975 = vadd.f32 %v4560, %v4847
        %v4976 = vadd.f32 %v4561, %v4852
        %v4977 = vadd.f32 %v4562, %v4855
        %v4978 = vadd.f32 %v4563, %v4860
        %v4979 = vadd.f32 %v4564, %v4863
        %v4980 = vadd.f32 %v4565, %v4868
        %v4981 = vadd.f32 %v4566, %v4871
        %v4982 = vadd.f32 %v4567, %v4876
        %v4983 = vadd.f32 %v4568, %v4879
        %v4984 = vadd.f32 %v4569, %v4884
        %v4985 = vadd.f32 %v4570, %v4887
        %v4986 = vadd.f32 %v4571, %v4892
        %v4987 = vadd.f32 %v4572, %v4895
        %v4988 = vadd.f32 %v4573, %v4900
        %v4989 = vadd.f32 %v4574, %v4903
        %v4990 = vadd.f32 %v4575, %v4908
        %v4991 = vadd.f32 %v4576, %v4911
        %v4992 = vadd.f32 %v4577, %v4916
        %v4993 = vadd.f32 %v4578, %v4919
        %v4994 = vadd.f32 %v4579, %v4924
        %v4995 = vadd.f32 %v4580, %v4927
        %v4996 = vadd.f32 %v4581, %v4932
        %v4997 = vadd.f32 %v4582, %v4935
        %v4998 = vadd.f32 %v4583, %v4940
        %v4999 = vadd.f32 %v4584, %v4943
        %v5000 = vadd.f32 %v4585, %v4948
        %v5001 = vadd.f32 %v4586, %v4951
        %v5002 = vld [vmem:[%s238] sm:$0x1]
        %v5004 = vlaneseq
        %v5005 = vshrl.u32 %v5004, 7
        %v5006 = vsub.s32 0, %v5005
        %v5007 = vrot.slane %v5002, %v5006
        %v5009 = vadd.f32 %v4954, %v5007
        %v5010 = vadd.f32 %v4955, %v5007
        %v5011 = vadd.f32 %v4956, %v5007
        %v5012 = vadd.f32 %v4957, %v5007
        %v5013 = vadd.f32 %v4958, %v5007
        %v5014 = vadd.f32 %v4959, %v5007
        %v5015 = vadd.f32 %v4960, %v5007
        %v5016 = vadd.f32 %v4961, %v5007
        %v5017 = vadd.f32 %v4962, %v5007
        %v5018 = vadd.f32 %v4963, %v5007
        %v5019 = vadd.f32 %v4964, %v5007
        %v5020 = vadd.f32 %v4965, %v5007
        %v5021 = vadd.f32 %v4966, %v5007
        %v5022 = vadd.f32 %v4967, %v5007
        %v5023 = vadd.f32 %v4968, %v5007
        %v5024 = vadd.f32 %v4969, %v5007
        %v5025 = vadd.f32 %v4970, %v5007
        %v5026 = vadd.f32 %v4971, %v5007
        %v5027 = vadd.f32 %v4972, %v5007
        %v5028 = vadd.f32 %v4973, %v5007
        %v5029 = vadd.f32 %v4974, %v5007
        %v5030 = vadd.f32 %v4975, %v5007
        %v5031 = vadd.f32 %v4976, %v5007
        %v5032 = vadd.f32 %v4977, %v5007
        %v5033 = vadd.f32 %v4978, %v5007
        %v5034 = vadd.f32 %v4979, %v5007
        %v5035 = vadd.f32 %v4980, %v5007
        %v5036 = vadd.f32 %v4981, %v5007
        %v5037 = vadd.f32 %v4982, %v5007
        %v5038 = vadd.f32 %v4983, %v5007
        %v5039 = vadd.f32 %v4984, %v5007
        %v5040 = vadd.f32 %v4985, %v5007
        %v5041 = vadd.f32 %v4986, %v5007
        %v5042 = vadd.f32 %v4987, %v5007
        %v5043 = vadd.f32 %v4988, %v5007
        %v5044 = vadd.f32 %v4989, %v5007
        %v5045 = vadd.f32 %v4990, %v5007
        %v5046 = vadd.f32 %v4991, %v5007
        %v5047 = vadd.f32 %v4992, %v5007
        %v5048 = vadd.f32 %v4993, %v5007
        %v5049 = vadd.f32 %v4994, %v5007
        %v5050 = vadd.f32 %v4995, %v5007
        %v5051 = vadd.f32 %v4996, %v5007
        %v5052 = vadd.f32 %v4997, %v5007
        %v5053 = vadd.f32 %v4998, %v5007
        %v5054 = vadd.f32 %v4999, %v5007
        %v5055 = vadd.f32 %v5000, %v5007
        %v5056 = vadd.f32 %v5001, %v5007
        %v5057 = vmax.f32 %v5009, 0.0
        %v5058 = vmax.f32 %v5010, 0.0
        %v5059 = vmax.f32 %v5011, 0.0
        %v5060 = vmax.f32 %v5012, 0.0
        %v5061 = vmax.f32 %v5013, 0.0
        %v5062 = vmax.f32 %v5014, 0.0
        %v5063 = vmax.f32 %v5015, 0.0
        %v5064 = vmax.f32 %v5016, 0.0
        %v5065 = vmax.f32 %v5017, 0.0
        %v5066 = vmax.f32 %v5018, 0.0
        %v5067 = vmax.f32 %v5019, 0.0
        %v5068 = vmax.f32 %v5020, 0.0
        %v5069 = vmax.f32 %v5021, 0.0
        %v5070 = vmax.f32 %v5022, 0.0
        %v5071 = vmax.f32 %v5023, 0.0
        %v5072 = vmax.f32 %v5024, 0.0
        %v5073 = vmax.f32 %v5025, 0.0
        %v5074 = vmax.f32 %v5026, 0.0
        %v5075 = vmax.f32 %v5027, 0.0
        %v5076 = vmax.f32 %v5028, 0.0
        %v5077 = vmax.f32 %v5029, 0.0
        %v5078 = vmax.f32 %v5030, 0.0
        %v5079 = vmax.f32 %v5031, 0.0
        %v5080 = vmax.f32 %v5032, 0.0
        %v5081 = vmax.f32 %v5033, 0.0
        %v5082 = vmax.f32 %v5034, 0.0
        %v5083 = vmax.f32 %v5035, 0.0
        %v5084 = vmax.f32 %v5036, 0.0
        %v5085 = vmax.f32 %v5037, 0.0
        %v5086 = vmax.f32 %v5038, 0.0
        %v5087 = vmax.f32 %v5039, 0.0
        %v5088 = vmax.f32 %v5040, 0.0
        %v5089 = vmax.f32 %v5041, 0.0
        %v5090 = vmax.f32 %v5042, 0.0
        %v5091 = vmax.f32 %v5043, 0.0
        %v5092 = vmax.f32 %v5044, 0.0
        %v5093 = vmax.f32 %v5045, 0.0
        %v5094 = vmax.f32 %v5046, 0.0
        %v5095 = vmax.f32 %v5047, 0.0
        %v5096 = vmax.f32 %v5048, 0.0
        %v5097 = vmax.f32 %v5049, 0.0
        %v5098 = vmax.f32 %v5050, 0.0
        %v5099 = vmax.f32 %v5051, 0.0
        %v5100 = vmax.f32 %v5052, 0.0
        %v5101 = vmax.f32 %v5053, 0.0
        %v5102 = vmax.f32 %v5054, 0.0
        %v5103 = vmax.f32 %v5055, 0.0
        %v5104 = vmax.f32 %v5056, 0.0
        %v5105 = vpack.c.bf16 %v5058, %v5057
        %v5106 = vpack.c.bf16 %v5060, %v5059
        %v5107 = vpack.c.bf16 %v5062, %v5061
        %v5108 = vpack.c.bf16 %v5064, %v5063
        %v5109 = vpack.c.bf16 %v5066, %v5065
        %v5110 = vpack.c.bf16 %v5068, %v5067
        %v5111 = vpack.c.bf16 %v5070, %v5069
        %v5112 = vpack.c.bf16 %v5072, %v5071
        %v5113 = vpack.c.bf16 %v5074, %v5073
        %v5114 = vpack.c.bf16 %v5076, %v5075
        %v5115 = vpack.c.bf16 %v5078, %v5077
        %v5116 = vpack.c.bf16 %v5080, %v5079
        %v5117 = vpack.c.bf16 %v5082, %v5081
        %v5118 = vpack.c.bf16 %v5084, %v5083
        %v5119 = vpack.c.bf16 %v5086, %v5085
        %v5120 = vpack.c.bf16 %v5088, %v5087
        %v5121 = vpack.c.bf16 %v5090, %v5089
        %v5122 = vpack.c.bf16 %v5092, %v5091
        %v5123 = vpack.c.bf16 %v5094, %v5093
        %v5124 = vpack.c.bf16 %v5096, %v5095
        %v5125 = vpack.c.bf16 %v5098, %v5097
        %v5126 = vpack.c.bf16 %v5100, %v5099
        %v5127 = vpack.c.bf16 %v5102, %v5101
        %v5128 = vpack.c.bf16 %v5104, %v5103
        %v5153 = vunpack.c.l.b16 %v5105
        %v5154 = vunpack.c.h.b16 %v5105
        %v5155 = vunpack.c.l.b16 %v5106
        %v5156 = vunpack.c.h.b16 %v5106
        %v5157 = vunpack.c.l.b16 %v5107
        %v5158 = vunpack.c.h.b16 %v5107
        %v5159 = vunpack.c.l.b16 %v5108
        %v5160 = vunpack.c.h.b16 %v5108
        %v5161 = vunpack.c.l.b16 %v5109
        %v5162 = vunpack.c.h.b16 %v5109
        %v5163 = vunpack.c.l.b16 %v5110
        %v5164 = vunpack.c.h.b16 %v5110
        %v5165 = vunpack.c.l.b16 %v5111
        %v5166 = vunpack.c.h.b16 %v5111
        %v5167 = vunpack.c.l.b16 %v5112
        %v5168 = vunpack.c.h.b16 %v5112
        %v5169 = vunpack.c.l.b16 %v5113
        %v5170 = vunpack.c.h.b16 %v5113
        %v5171 = vunpack.c.l.b16 %v5114
        %v5172 = vunpack.c.h.b16 %v5114
        %v5173 = vunpack.c.l.b16 %v5115
        %v5174 = vunpack.c.h.b16 %v5115
        %v5175 = vunpack.c.l.b16 %v5116
        %v5176 = vunpack.c.h.b16 %v5116
        %v5177 = vunpack.c.l.b16 %v5117
        %v5178 = vunpack.c.h.b16 %v5117
        %v5179 = vunpack.c.l.b16 %v5118
        %v5180 = vunpack.c.h.b16 %v5118
        %v5181 = vunpack.c.l.b16 %v5119
        %v5182 = vunpack.c.h.b16 %v5119
        %v5183 = vunpack.c.l.b16 %v5120
        %v5184 = vunpack.c.h.b16 %v5120
        %v5185 = vunpack.c.l.b16 %v5121
        %v5186 = vunpack.c.h.b16 %v5121
        %v5187 = vunpack.c.l.b16 %v5122
        %v5188 = vunpack.c.h.b16 %v5122
        %v5189 = vunpack.c.l.b16 %v5123
        %v5190 = vunpack.c.h.b16 %v5123
        %v5191 = vunpack.c.l.b16 %v5124
        %v5192 = vunpack.c.h.b16 %v5124
        %v5193 = vunpack.c.l.b16 %v5125
        %v5194 = vunpack.c.h.b16 %v5125
        %v5195 = vunpack.c.l.b16 %v5126
        %v5196 = vunpack.c.h.b16 %v5126
        %v5197 = vunpack.c.l.b16 %v5127
        %v5198 = vunpack.c.h.b16 %v5127
        %v5199 = vunpack.c.l.b16 %v5128
        %v5200 = vunpack.c.h.b16 %v5128
        %v5201 = vpack.c.b16 %v5153, %v5153
        %v5202 = vpack.c.b16 %v5154, %v5154
        %v5203 = vpack.c.b16 %v5155, %v5155
        %v5204 = vpack.c.b16 %v5156, %v5156
        %v5205 = vpack.c.b16 %v5157, %v5157
        %v5206 = vpack.c.b16 %v5158, %v5158
        %v5207 = vpack.c.b16 %v5159, %v5159
        %v5208 = vpack.c.b16 %v5160, %v5160
        %v5209 = vpack.c.b16 %v5161, %v5161
        %v5210 = vpack.c.b16 %v5162, %v5162
        %v5211 = vpack.c.b16 %v5163, %v5163
        %v5212 = vpack.c.b16 %v5164, %v5164
        %v5213 = vpack.c.b16 %v5165, %v5165
        %v5214 = vpack.c.b16 %v5166, %v5166
        %v5215 = vpack.c.b16 %v5167, %v5167
        %v5216 = vpack.c.b16 %v5168, %v5168
        %v5217 = vpack.c.b16 %v5169, %v5169
        %v5218 = vpack.c.b16 %v5170, %v5170
        %v5219 = vpack.c.b16 %v5171, %v5171
        %v5220 = vpack.c.b16 %v5172, %v5172
        %v5221 = vpack.c.b16 %v5173, %v5173
        %v5222 = vpack.c.b16 %v5174, %v5174
        %v5223 = vpack.c.b16 %v5175, %v5175
        %v5224 = vpack.c.b16 %v5176, %v5176
        %v5225 = vpack.c.b16 %v5177, %v5177
        %v5226 = vpack.c.b16 %v5178, %v5178
        %v5227 = vpack.c.b16 %v5179, %v5179
        %v5228 = vpack.c.b16 %v5180, %v5180
        %v5229 = vpack.c.b16 %v5181, %v5181
        %v5230 = vpack.c.b16 %v5182, %v5182
        %v5231 = vpack.c.b16 %v5183, %v5183
        %v5232 = vpack.c.b16 %v5184, %v5184
        %v5233 = vpack.c.b16 %v5185, %v5185
        %v5234 = vpack.c.b16 %v5186, %v5186
        %v5235 = vpack.c.b16 %v5187, %v5187
        %v5236 = vpack.c.b16 %v5188, %v5188
        %v5237 = vpack.c.b16 %v5189, %v5189
        %v5238 = vpack.c.b16 %v5190, %v5190
        %v5239 = vpack.c.b16 %v5191, %v5191
        %v5240 = vpack.c.b16 %v5192, %v5192
        %v5241 = vpack.c.b16 %v5193, %v5193
        %v5242 = vpack.c.b16 %v5194, %v5194
        %v5243 = vpack.c.b16 %v5195, %v5195
        %v5244 = vpack.c.b16 %v5196, %v5196
        %v5245 = vpack.c.b16 %v5197, %v5197
        %v5246 = vpack.c.b16 %v5198, %v5198
        %v5247 = vpack.c.b16 %v5199, %v5199
        %v5248 = vpack.c.b16 %v5200, %v5200
        %5297 = vst [vmem:[%s235] sm:$0xf] %v5201
        %5298 = vst [vmem:[%s235 + $0x4] sm:$0xf] %v5202
        %5299 = vst [vmem:[%s235 + $0x8] sm:$0xf] %v5203
        %5300 = vst [vmem:[%s235 + $0xc] sm:$0xf] %v5204
        %5301 = vst [vmem:[%s235 + $0x10] sm:$0xf] %v5205
        %5302 = vst [vmem:[%s235 + $0x14] sm:$0xf] %v5206
        %5303 = vst [vmem:[%s235 + $0x18] sm:$0xf] %v5207
        %5304 = vst [vmem:[%s235 + $0x1c] sm:$0xf] %v5208
        %5305 = vst [vmem:[%s235 + $0x20] sm:$0xf] %v5209
        %5306 = vst [vmem:[%s235 + $0x24] sm:$0xf] %v5210
        %5307 = vst [vmem:[%s235 + $0x28] sm:$0xf] %v5211
        %5308 = vst [vmem:[%s235 + $0x2c] sm:$0xf] %v5212
        %5309 = vst [vmem:[%s235 + $0x30] sm:$0xf] %v5213
        %5310 = vst [vmem:[%s235 + $0x34] sm:$0xf] %v5214
        %5311 = vst [vmem:[%s235 + $0x38] sm:$0xf] %v5215
        %5312 = vst [vmem:[%s235 + $0x3c] sm:$0xf] %v5216
        %5313 = vst [vmem:[%s235 + $0x40] sm:$0xf] %v5217
        %5314 = vst [vmem:[%s235 + $0x44] sm:$0xf] %v5218
        %5315 = vst [vmem:[%s235 + $0x48] sm:$0xf] %v5219
        %5316 = vst [vmem:[%s235 + $0x4c] sm:$0xf] %v5220
        %5317 = vst [vmem:[%s235 + $0x50] sm:$0xf] %v5221
        %5318 = vst [vmem:[%s235 + $0x54] sm:$0xf] %v5222
        %5319 = vst [vmem:[%s235 + $0x58] sm:$0xf] %v5223
        %5320 = vst [vmem:[%s235 + $0x5c] sm:$0xf] %v5224
        %5321 = vst [vmem:[%s235 + $0x60] sm:$0xf] %v5225
        %5322 = vst [vmem:[%s235 + $0x64] sm:$0xf] %v5226
        %5323 = vst [vmem:[%s235 + $0x68] sm:$0xf] %v5227
        %5324 = vst [vmem:[%s235 + $0x6c] sm:$0xf] %v5228
        %5325 = vst [vmem:[%s235 + $0x70] sm:$0xf] %v5229
        %5326 = vst [vmem:[%s235 + $0x74] sm:$0xf] %v5230
        %5327 = vst [vmem:[%s235 + $0x78] sm:$0xf] %v5231
        %5328 = vst [vmem:[%s235 + $0x7c] sm:$0xf] %v5232
        %5329 = vst [vmem:[%s235 + $0x80] sm:$0xf] %v5233
        %5330 = vst [vmem:[%s235 + $0x84] sm:$0xf] %v5234
        %5331 = vst [vmem:[%s235 + $0x88] sm:$0xf] %v5235
        %5332 = vst [vmem:[%s235 + $0x8c] sm:$0xf] %v5236
        %5333 = vst [vmem:[%s235 + $0x90] sm:$0xf] %v5237
        %5334 = vst [vmem:[%s235 + $0x94] sm:$0xf] %v5238
        %5335 = vst [vmem:[%s235 + $0x98] sm:$0xf] %v5239
        %5336 = vst [vmem:[%s235 + $0x9c] sm:$0xf] %v5240
        %5337 = vst [vmem:[%s235 + $0xa0] sm:$0xf] %v5241
        %5338 = vst [vmem:[%s235 + $0xa4] sm:$0xf] %v5242
        %5339 = vst [vmem:[%s235 + $0xa8] sm:$0xf] %v5243
        %5340 = vst [vmem:[%s235 + $0xac] sm:$0xf] %v5244
        %5341 = vst [vmem:[%s235 + $0xb0] sm:$0xf] %v5245
        %5342 = vst [vmem:[%s235 + $0xb4] sm:$0xf] %v5246
        %5343 = vst [vmem:[%s235 + $0xb8] sm:$0xf] %v5247
        %5344 = vst [vmem:[%s235 + $0xbc] sm:$0xf] %v5248
        %s5345 = sand.u32 %s121, 1
        %s5346 = scalar_lea.sflag [#allocation4], %s5345
        %s5347 = sand.u32 %s121, 1
        %s5348 = smul.addr %s5347, 192
        %s5349 = scalar_lea.vmem [#allocation7], %s5348
        // Predicated region
        $region41: #{tpu_custom_call.1} parent=31 // pred_check
          %p5350 = pneg %p131
        $region42: #{tpu_custom_call.1} parent=31 // pred_check_branch
          %5352 = sbr.rel (%p5350) target = $region44
        $region43: #{tpu_custom_call.1} parent=31 // pred_region
          %s5354 = ssub.s32 3072, 3072
          %5355 = vsyncadd %s5346, %s5354
          %s5356 = smul.addr %s25, 48
          %s5357 = sadd.s32 %s26, %s5356
          %s5358 = smul.addr %s5357, 64
          %s5359 = scalar_lea.hbm %s3, %s5358
          %s5360 = sshll.u32 %s5349, 4
          %s5361 = int_to_ptr.vmem [resolvable:$true] %s5360
          %5366 = dma.vmem_to_hbm [thread:$0]  %s5361, 3072, %s5359, %s5346, 64, 64, 4
        $region44: #{tpu_custom_call.1} parent=31 // pred_fallthru
          _
      $region32: #{tpu_custom_call.1} parent=5 // pred_fallthru
        _
      %p5367 = scmp.le.s32.totalorder 2, %s16
      // Predicated region
      $region45: #{tpu_custom_call.1} parent=5 // pred_check
        %p5368 = pneg %p5367
      $region46: #{tpu_custom_call.1} parent=5 // pred_check_branch
        %5370 = sbr.rel (%p5368) target = $region48
      $region47: #{tpu_custom_call.1} parent=5 // pred_region
        %s5371 = ssub.s32 %s16, 2
        // Predicated region
        $region49: #{tpu_custom_call.1} parent=47 // pred_check
          %p5372 = pneg %p137
        $region50: #{tpu_custom_call.1} parent=47 // pred_check_branch
          %5374 = sbr.rel (%p5372) target = $region52
        $region51: #{tpu_custom_call.1} parent=47 // pred_region
          %s5375 = sand.u32 %s122, 1
          %s5376 = scalar_lea.sflag [#allocation4], %s5375
          %s5377 = sand.u32 %s122, 1
          %s5378 = smul.addr %s5377, 192
          %s5379 = scalar_lea.vmem [#allocation7], %s5378
          %5380 = dma.done %s5376, 3072
        $region52: #{tpu_custom_call.1} parent=47 // pred_fallthru
          _
      $region48: #{tpu_custom_call.1} parent=5 // pred_fallthru
        _
    $region6: #{tpu_custom_call.1} parent=1 // loop_footer
      %s20 = sadd.s32 1, %s16
    $region7: #{tpu_custom_call.1} parent=1 // loop_footer_branch
      %15 = sbr.rel target = $region3
    $region8: #{tpu_custom_call.1} parent=1 // loop_exit
      _
    %5381 = vsyncpa [#allocation3], 1
    %s5382 = scalar_lea.sflag [#allocation3], 1
    %5383 = vsyncpa %s5382, 1
    %5384 = vsyncpa [#allocation6], 1
    %5385 = vsyncpa [#allocation4], 1
    %s5386 = scalar_lea.sflag [#allocation4], 1
    %5387 = vsyncpa %s5386, 1

</llo_original>
